<compile_context>
chip_gen: v5e
topology: v5e:2x2
jax: 0.10.0
libtpu: 0.0.40
codegen_flags: <defaults>
</compile_context>

<pallas_src>
import functools

import jax
import jax.numpy as jnp
from jax.experimental import pallas as pl
from jax.experimental.pallas import tpu as pltpu


def _round_up(x, m):
    return (x + m - 1) // m * m


def _vmem_limit_bytes():
    try:
        cap = int(getattr(pltpu.get_tpu_info(), "vmem_capacity_bytes", 0) or 0)
        if cap > 0:
            return int(min(cap * 3 // 4, 96 * 1024 * 1024))
    except Exception:
        pass
    return 48 * 1024 * 1024          # safe on v7x (64 MiB physical)


_VMEM_LIMIT = _vmem_limit_bytes()
_TILE_BUDGET = _VMEM_LIMIT // 2


def _pick_tile(S, cap):
    """Spatial tile TS (multiple of 16, or == S) and padded extent S_pad.
    Prefers an even split (zero padding) so downstream :S slices are no-ops."""
    cap = max(16, cap - cap % 16)
    if S <= cap:
        return S, S                               # full-dim block: always legal
    for t in range(cap, 15, -16):
        if S % t == 0:
            return t, S
    return cap, _round_up(S, cap)                 # rare non-power-of-two fallback


# ----------------------------------------------------------------------------
# Kernel A: tiled GEMM (+bias, optional fused per-sample affine / activation,
# optional per-(phase, sample) BatchNorm partial statistics).
#   grid = (P, N, S_pad // TS)
#   patches: (P, N, S_pad, K)  bf16   block (1, 1, TS, K)
#   weights: (P, K, Cp)        bf16   block (1, K, Cp)      (resident over N, S)
#   bias   : (1, Cp)           f32    block (1, Cp)
#   [scale/shift: (N, 1, Cp)   f32    block (1, 1, Cp)]     (fused FiLM affine)
#   y      : (P, N, S_pad, Cp) bf16   block (1, 1, TS, Cp)  (lane-dense stores)
#   [stats : (P, N, 2, Cp)     f32    block (1, 1, 2, Cp)]  revisited along S only
# ----------------------------------------------------------------------------
def _gemm_kernel(x_ref, w_ref, b_ref, *rest, post_act, compute_stats, fuse_affine):
    if fuse_affine:
        sc_ref, sh_ref, y_ref = rest
    elif compute_stats:
        y_ref, stats_ref = rest
    else:
        (y_ref,) = rest

    a = x_ref[0, 0]                                   # (TS, K)  bf16
    w = w_ref[0]                                      # (K, Cp)  bf16
    b = b_ref[...]                                    # (1, Cp)  f32
    y = jnp.dot(a, w, preferred_element_type=jnp.float32) + b

    if compute_stats:
        d = y - b                                     # exact 0 on zero-padded rows

        @pl.when(pl.program_id(2) == 0)
        def _init():
            stats_ref[...] = jnp.zeros_like(stats_ref)

        sums = jnp.sum(d, axis=0, keepdims=True)      # (1, Cp)
        sqs = jnp.sum(d * d, axis=0, keepdims=True)   # (1, Cp)
        stats_ref[:, :, 0:1, :] += sums[None, None]
        stats_ref[:, :, 1:2, :] += sqs[None, None]

    if fuse_affine:
        y = y * sc_ref[0] + sh_ref[0]

    if post_act == "tanh":
        y = jnp.tanh(y)
    elif post_act == "sigmoid":
        y = 1.0 / (1.0 + jnp.exp(-y))

    y_ref[0, 0] = y.astype(y_ref.dtype)


def gemm_conv(patches, wmat, bias, *, post_act="none", compute_stats=False,
              scale=None, shift=None):
    """patches: (P, N, S, K) bf16; wmat: (P, K, Cout) f32; bias: (Cout,) f32.
    scale/shift: optional (N, Cout) per-sample affine fused before post_act.
    Returns (y (P, N, S_pad, Cp) bf16, S_pad, (mean, var) over real rows or None)."""
    assert not (compute_stats and (post_act != "none" or scale is not None))
    P, N, S, K = patches.shape
    Cout = wmat.shape[-1]
    Cp = _round_up(Cout, 128)                      # lane-dense GEMM output columns

    fixed = 4 * K * Cp                             # double-buffered bf16 weights
    row = 4 * (K + Cp) + 8                         # per-row bf16 patches + y (x2 buf)
    cap = min(512, max(16, (_TILE_BUDGET - fixed) // row))
    TS, S_pad = _pick_tile(S, cap)
    grid = (P, N, S_pad // TS)

    x = patches
    if S_pad != S:
        x = jnp.pad(x, ((0, 0), (0, 0), (0, S_pad - S), (0, 0)))
    x = x.astype(jnp.bfloat16)                     # no-op: patches already bf16
    w = jnp.pad(wmat, ((0, 0), (0, 0), (0, Cp - Cout))).astype(jnp.bfloat16)
    b = jnp.pad(bias.astype(jnp.float32), (0, Cp - Cout)).reshape(1, Cp)

    in_specs = [pl.BlockSpec((1, 1, TS, K), lambda p, n, s: (p, n, s, 0)),
                pl.BlockSpec((1, K, Cp), lambda p, n, s: (p, 0, 0)),
                pl.BlockSpec((1, Cp), lambda p, n, s: (0, 0))]
    ins = [x, w, b]
    fuse_affine = scale is not None
    if fuse_affine:
        sc = jnp.pad(scale.astype(jnp.float32), ((0, 0), (0, Cp - Cout)))
        sh = jnp.pad(shift.astype(jnp.float32), ((0, 0), (0, Cp - Cout)))
        in_specs += [pl.BlockSpec((1, 1, Cp), lambda p, n, s: (n, 0, 0)),
                     pl.BlockSpec((1, 1, Cp), lambda p, n, s: (n, 0, 0))]
        ins += [sc.reshape(N, 1, Cp), sh.reshape(N, 1, Cp)]

    y_spec = pl.BlockSpec((1, 1, TS, Cp), lambda p, n, s: (p, n, s, 0))
    y_shape = jax.ShapeDtypeStruct((P, N, S_pad, Cp), jnp.bfloat16)

    kernel = functools.partial(_gemm_kernel, post_act=post_act,
                               compute_stats=compute_stats, fuse_affine=fuse_affine)
    if compute_stats:
        out_specs = (y_spec,
                     pl.BlockSpec((1, 1, 2, Cp), lambda p, n, s: (p, n, 0, 0)))
        out_shape = (y_shape, jax.ShapeDtypeStruct((P, N, 2, Cp), jnp.float32))
        # Partial stats per (phase, sample) -> only the S axis is revisited.
        sem = ("parallel", "parallel", "arbitrary")
    else:
        out_specs = y_spec
        out_shape = y_shape
        sem = ("parallel", "parallel", "parallel")

    res = pl.pallas_call(
        kernel, grid=grid, in_specs=in_specs, out_specs=out_specs,
        out_shape=out_shape,
        compiler_params=pltpu.CompilerParams(
            dimension_semantics=sem, vmem_limit_bytes=_VMEM_LIMIT),
    )(*ins)

    if not compute_stats:
        return res, S_pad, None
    y, stats = res
    s = jnp.sum(stats, axis=(0, 1))                # (2, Cp) f32 reduction of partials
    count = float(P * N * S)                       # padded rows contribute exactly 0
    s1 = s[0, :Cout] / count
    s2 = s[1, :Cout] / count
    mean = s1 + bias.astype(jnp.float32)
    var = jnp.maximum(s2 - s1 * s1, 0.0)
    return y, S_pad, (mean, var)


# ----------------------------------------------------------------------------
# Kernel B: per-(sample, channel) affine (fused BatchNorm * FiLM) + activation.
# Reads the lane-padded GEMM output in its phase-major layout, folds the :Cout
# column slice into the output block, writes bf16.
#   y: (P, N, S_pad, Cp) bf16   grid (P, N, S_pad // TS)
#   scale/shift: (N, 1, Cout) f32
#   out: (P, N, S_pad, Cout) bf16
# ----------------------------------------------------------------------------
def _affine_kernel(z_ref, s_ref, t_ref, o_ref, *, act, cout):
    z = z_ref[0, 0][:, :cout].astype(jnp.float32)     # (TS, Cout)
    y = z * s_ref[0] + t_ref[0]
    if act == "sigmoid":
        y = 1.0 / (1.0 + jnp.exp(-y))
    elif act == "tanh":
        y = jnp.tanh(y)
    o_ref[0, 0] = y.astype(o_ref.dtype)


def bn_epilogue(y, scale, shift, Cout, *, act):
    P, N, S_pad, Cp = y.shape
    TS, _ = _pick_tile(S_pad, 2048)                   # never re-pads (2048 >= GEMM cap)
    grid = (P, N, S_pad // TS)
    sc = scale.astype(jnp.float32).reshape(N, 1, Cout)
    sh = shift.astype(jnp.float32).reshape(N, 1, Cout)
    kernel = functools.partial(_affine_kernel, act=act, cout=Cout)
    return pl.pallas_call(
        kernel, grid=grid,
        in_specs=[pl.BlockSpec((1, 1, TS, Cp), lambda p, n, s: (p, n, s, 0)),
                  pl.BlockSpec((1, 1, Cout), lambda p, n, s: (n, 0, 0)),
                  pl.BlockSpec((1, 1, Cout), lambda p, n, s: (n, 0, 0))],
        out_specs=pl.BlockSpec((1, 1, TS, Cout), lambda p, n, s: (p, n, s, 0)),
        out_shape=jax.ShapeDtypeStruct((P, N, S_pad, Cout), jnp.bfloat16),
        compiler_params=pltpu.CompilerParams(
            dimension_semantics=("parallel", "parallel", "parallel"),
            vmem_limit_bytes=_VMEM_LIMIT),
    )(y, sc, sh)


# ----------------------------------------------------------------------------
# JAX glue: patch extraction (channels-last, bf16), layer wrappers, init, forward
# ----------------------------------------------------------------------------
def _pre_activate(x, pre_act):
    if pre_act == "leaky_relu":
        return jnp.where(x >= 0, x, x * jnp.asarray(0.2, x.dtype))
    if pre_act == "relu":
        return jnp.maximum(x, jnp.asarray(0, x.dtype))
    return x


def _im2col_ndhwc(xpad, k, stride, out_dhw):
    # xpad: (N, Dp, Hp, Wp, C) -> (N, Do*Ho*Wo, k^3*C), K ordered (kd, kh, kw, C)
    N, C = xpad.shape[0], xpad.shape[-1]
    Do, Ho, Wo = out_dhw
    di = (jnp.arange(Do) * stride)[:, None] + jnp.arange(k)[None, :]
    hi = (jnp.arange(Ho) * stride)[:, None] + jnp.arange(k)[None, :]
    wi = (jnp.arange(Wo) * stride)[:, None] + jnp.arange(k)[None, :]
    p = xpad[:, di]                                  # (N, Do, k, Hp, Wp, C)
    p = p[:, :, :, hi]                               # (N, Do, k, Ho, k, Wp, C)
    p = p[:, :, :, :, :, wi]                         # (N, Do, k, Ho, k, Wo, k, C)
    p = p.transpose(0, 1, 3, 5, 2, 4, 6, 7)          # (N, Do, Ho, Wo, kd, kh, kw, C)
    return p.reshape(N, Do * Ho * Wo, k * k * k * C)


def conv3d_down_layer(x, wt, bias, *, pre_act, use_bn, gamma=None, beta=None):
    """x: NDHWC; wt: (Cout, Cin, 4, 4, 4) (PyTorch Conv3d layout); stride 2, pad 1."""
    x = _pre_activate(x, pre_act).astype(jnp.bfloat16)   # cast BEFORE patch extraction
    N, D, H, W, Cin = x.shape
    Do, Ho, Wo = D // 2, H // 2, W // 2
    S = Do * Ho * Wo
    Cout = wt.shape[0]
    xpad = jnp.pad(x, ((0, 0), (1, 1), (1, 1), (1, 1), (0, 0)))
    patches = _im2col_ndhwc(xpad, 4, 2, (Do, Ho, Wo))     # (N, S, 64*Cin) bf16
    wmat = jnp.transpose(wt, (2, 3, 4, 1, 0)).reshape(64 * Cin, Cout)
    use_film = gamma is not None

    if use_bn:
        # BatchNorm3d (training-mode batch stats, eps=1e-5, affine=(1,0)); the
        # affine depends on batch stats -> applied in kernel B, fused with FiLM.
        y, S_pad, (mean, var) = gemm_conv(patches[None], wmat[None], bias,
                                          compute_stats=True)
        inv = jax.lax.rsqrt(var + 1e-5)
        base_scale, base_shift = inv, -mean * inv
        if use_film:
            scale = gamma[:, None] * base_scale[None, :]
            shift = gamma[:, None] * base_shift[None, :] + beta[:, None]
        else:
            scale = jnp.broadcast_to(base_scale[None, :], (N, Cout))
            shift = jnp.broadcast_to(base_shift[None, :], (N, Cout))
        z = bn_epilogue(y, scale, shift, Cout, act="none")    # (1, N, S_pad, Cout)
        z = z[0, :, :S, :]
    else:
        # No BN: the per-sample FiLM affine is known up-front -> fuse into kernel A.
        scale = shift = None
        if use_film:
            scale = jnp.broadcast_to(gamma[:, None], (N, Cout))
            shift = jnp.broadcast_to(beta[:, None], (N, Cout))
        y, S_pad, _ = gemm_conv(patches[None], wmat[None], bias,
                                scale=scale, shift=shift)
        z = y[0, :, :S, :Cout]
    return z.reshape(N, Do, Ho, Wo, Cout)


# Sub-pixel decomposition of ConvTranspose3d(k=4, s=2, p=1):
#   even output o=2m:  x[m]*w[1] + x[m-1]*w[3]   (padded offsets 1, 0)
#   odd  output o=2m+1: x[m]*w[2] + x[m+1]*w[0]  (padded offsets 1, 2)
_OFFS = ((0, 1), (1, 2))
_KKS = ((3, 1), (2, 0))


def _subpixel_phases(x, wt):
    """x: NDHWC bf16; wt: (Cin, Cout, 4, 4, 4).  Returns the 8 dense phase GEMM
    operands: patches (8, N, D*H*W, 8*Cin) bf16 and weights (8, 8*Cin, Cout)."""
    N, D, H, W, Cin = x.shape
    xpad = jnp.pad(x, ((0, 0), (1, 1), (1, 1), (1, 1), (0, 0)))
    w_t = jnp.transpose(wt, (2, 3, 4, 0, 1))         # (kd, kh, kw, Cin, Cout)
    patches, wmats = [], []
    for pd in (0, 1):
        for ph in (0, 1):
            for pw in (0, 1):
                cols, rows = [], []
                for td in (0, 1):
                    for th in (0, 1):
                        for tw in (0, 1):
                            od, oh, ow = _OFFS[pd][td], _OFFS[ph][th], _OFFS[pw][tw]
                            sl = xpad[:, od:od + D, oh:oh + H, ow:ow + W, :]
                            cols.append(sl.reshape(N, D * H * W, Cin))
                            rows.append(w_t[_KKS[pd][td], _KKS[ph][th], _KKS[pw][tw]])
                patches.append(jnp.concatenate(cols, axis=-1))
                wmats.append(jnp.concatenate(rows, axis=0))
    return jnp.stack(patches, axis=0), jnp.stack(wmats, axis=0)


def convtranspose3d_up_layer(x, wt, bias, *, pre_act, use_bn, post_act):
    """x: NDHWC; wt: (Cin, Cout, 4, 4, 4) (PyTorch ConvTranspose3d layout)."""
    x = _pre_activate(x, pre_act).astype(jnp.bfloat16)
    N, D, H, W, Cin = x.shape
    S = D * H * W
    Cout = wt.shape[1]
    patches_p, wmat_p = _subpixel_phases(x, wt)
    if use_bn:
        y, S_pad, (mean, var) = gemm_conv(patches_p, wmat_p, bias, compute_stats=True)
        inv = jax.lax.rsqrt(var + 1e-5)
        scale = jnp.broadcast_to(inv[None, :], (N, Cout))
        shift = jnp.broadcast_to((-mean * inv)[None, :], (N, Cout))
        # Affine + activation on the phase-major layout BEFORE the interleave
        # transpose (scale/shift are phase-independent); :Cout slice folded in.
        z = bn_epilogue(y, scale, shift, Cout, act=post_act)  # (8, N, S_pad, Cout)
        z = z[:, :, :S, :]
    else:
        y, S_pad, _ = gemm_conv(patches_p, wmat_p, bias, post_act=post_act)
        z = y[:, :, :S, :Cout]
    full = z.reshape(2, 2, 2, N, D, H, W, Cout)
    full = full.transpose(3, 4, 0, 5, 1, 6, 2, 7).reshape(N, 2 * D, 2 * H, 2 * W, Cout)
    return full


def init_params(key, in_c=1, out_c=1, nf=4, layers=3):
    filters = [nf * 8 if 2 ** i >= 8 else nf * 2 ** i for i in range(layers - 1)]
    keys = iter(jax.random.split(key, 128))

    def w(shape, scale=0.05):
        return jax.random.normal(next(keys), shape, jnp.float32) * scale

    params = {"filters": filters}
    params["in_conv"] = {"w": w((nf, in_c, 4, 4, 4)), "b": w((nf,))}
    enc = []
    for i in range(layers - 2):
        enc.append({"w": w((filters[i + 1], filters[i], 4, 4, 4)),
                    "b": w((filters[i + 1],)),
                    "film_w": w((2, 1), 0.5), "film_b": w((2,), 0.5),
                    "innermost": False})
    enc.append({"w": w((filters[-1], filters[-1], 4, 4, 4)),
                "b": w((filters[-1],)),
                "film_w": w((2, 1), 0.5), "film_b": w((2,), 0.5),
                "innermost": True})
    params["enc"] = enc
    dec = [{"w": w((filters[-1], filters[-1], 4, 4, 4)), "b": w((filters[-1],))}]
    for i in range(layers - 2, 0, -1):
        dec.append({"w": w((filters[i] * 2, filters[i - 1], 4, 4, 4)),
                    "b": w((filters[i - 1],))})
    params["dec"] = dec
    params["out_conv"] = {"w": w((nf * 2, out_c, 4, 4, 4)), "b": w((out_c,))}
    return params


def generator_forward(params, X, delta):
    # X: (N, in_c, D, H, W) NCDHW -> NDHWC once; all layers run channels-last bf16.
    x = jnp.transpose(X, (0, 2, 3, 4, 1))
    out = conv3d_down_layer(x, params["in_conv"]["w"], params["in_conv"]["b"],
                            pre_act="none", use_bn=False)
    shortcuts = [out]
    for ep in params["enc"]:
        gb = delta @ ep["film_w"].T + ep["film_b"]        # FiLM Linear(1, 2)
        gamma, beta = gb[:, 0], gb[:, 1]                  # per-sample scalars
        out = conv3d_down_layer(out, ep["w"], ep["b"], pre_act="leaky_relu",
                                use_bn=not ep["innermost"], gamma=gamma, beta=beta)
        shortcuts.append(out)
    shortcuts = shortcuts[-2::-1]
    for i, dp in enumerate(params["dec"]):
        # TODO(synk): Dropout(0.5) of the training-mode decoder is omitted (eval behavior).
        out = convtranspose3d_up_layer(out, dp["w"], dp["b"], pre_act="relu",
                                       use_bn=True, post_act="sigmoid")
        out = jnp.concatenate([out, shortcuts[i]], axis=-1)
    out = convtranspose3d_up_layer(out, params["out_conv"]["w"],
                                   params["out_conv"]["b"],
                                   pre_act="relu", use_bn=False, post_act="tanh")
    return jnp.transpose(out, (0, 4, 1, 2, 3)).astype(jnp.float32)   # back to NCDHW


if __name__ == "__main__":
    key = jax.random.PRNGKey(0)
    kp, kx, kd = jax.random.split(key, 3)
    # small Generator: in_c=1, out_c=1, nf=4, layers=3 -> spatial divisible by 2**3
    params = init_params(kp, in_c=1, out_c=1, nf=4, layers=3)
    X = jax.random.normal(kx, (2, 1, 8, 8, 8), jnp.float32)
    delta = jax.random.normal(kd, (2, 1), jnp.float32)

    fwd = jax.jit(lambda x, d: generator_forward(params, x, d))
    out = jax.block_until_ready(fwd(X, delta))

    assert out.shape == (2, 1, 8, 8, 8), out.shape
    assert bool(jnp.all(jnp.isfinite(out)))
    assert bool(jnp.all(jnp.abs(out) <= 1.0))  # tanh output range
    print("KERNEL_OK")
</pallas_src>

<mosaic_0001>
module attributes {stable_mosaic.version = 11 : i64} {
  func.func @_gemm_kernel(%arg0: i32, %arg1: i32, %arg2: i32, %arg3: memref<1x1x64x64xbf16, #tpu.memory_space<vmem>>, %arg4: memref<1x64x128xbf16, #tpu.memory_space<vmem>>, %arg5: memref<1x128xf32, #tpu.memory_space<vmem>>, %arg6: memref<1x1x64x128xbf16, #tpu.memory_space<vmem>>) attributes {dimension_semantics = [#tpu.dimension_semantics<parallel>, #tpu.dimension_semantics<parallel>, #tpu.dimension_semantics<parallel>], iteration_bounds = array<i64: 1, 2, 1>, scalar_prefetch = 0 : i64, scratch_operands = 0 : i64, tpu.core_type = #tpu.core_type<tc>, window_params = [{transform_indices = @transform_0, window_bounds = array<i64: 1, 1, 64, 64>}, {transform_indices = @transform_1, window_bounds = array<i64: 1, 64, 128>}, {pipeline_mode = #tpu.pipeline_mode<synchronous>, transform_indices = @transform_2, window_bounds = array<i64: 1, 128>}, {transform_indices = @transform_3, window_bounds = array<i64: 1, 1, 64, 128>}]} {
    %c0 = arith.constant 0 : index
    %c0_0 = arith.constant 0 : index
    %c0_1 = arith.constant 0 : index
    %c0_2 = arith.constant 0 : index
    %0 = vector.load %arg3[%c0, %c0_0, %c0_1, %c0_2] : memref<1x1x64x64xbf16, #tpu.memory_space<vmem>>, vector<1x1x64x64xbf16>
    %1 = vector.shape_cast %0 : vector<1x1x64x64xbf16> to vector<64x64xbf16>
    %c0_3 = arith.constant 0 : index
    %c0_4 = arith.constant 0 : index
    %c0_5 = arith.constant 0 : index
    %2 = vector.load %arg4[%c0_3, %c0_4, %c0_5] : memref<1x64x128xbf16, #tpu.memory_space<vmem>>, vector<1x64x128xbf16>
    %3 = vector.shape_cast %2 : vector<1x64x128xbf16> to vector<64x128xbf16>
    %c0_6 = arith.constant 0 : index
    %c0_7 = arith.constant 0 : index
    %4 = vector.load %arg5[%c0_6, %c0_7] : memref<1x128xf32, #tpu.memory_space<vmem>>, vector<1x128xf32>
    %cst = arith.constant dense<0.000000e+00> : vector<64x128xf32>
    %5 = tpu.matmul %1, %3, %cst {dimension_numbers = #tpu.dot_dimension_numbers<[1], [0], [0], [1], [0, 0, 1, 1], [], []>} : vector<64x64xbf16>, vector<64x128xbf16>, vector<64x128xf32> -> vector<64x128xf32>
    %6 = vector.broadcast %4 : vector<1x128xf32> to vector<64x128xf32>
    %7 = arith.addf %5, %6 : vector<64x128xf32>
    %8 = arith.truncf %7 : vector<64x128xf32> to vector<64x128xbf16>
    %c0_8 = arith.constant 0 : index
    %c0_9 = arith.constant 0 : index
    %c0_10 = arith.constant 0 : index
    %c0_11 = arith.constant 0 : index
    %9 = vector.load %arg6[%c0_8, %c0_9, %c0_10, %c0_11] : memref<1x1x64x128xbf16, #tpu.memory_space<vmem>>, vector<1x1x64x128xbf16>
    %10 = vector.shape_cast %9 : vector<1x1x64x128xbf16> to vector<64x128xbf16>
    %11 = vector.shape_cast %8 : vector<64x128xbf16> to vector<1x1x64x128xbf16>
    tpu.vector_store %arg6[%c0_8, %c0_9, %c0_10, %c0_11], %11 {strides = array<i32>} : memref<1x1x64x128xbf16, #tpu.memory_space<vmem>>, vector<1x1x64x128xbf16>,
    return
  }
  func.func @transform_0(%arg0: i32, %arg1: i32, %arg2: i32) -> (i32, i32, i32, i32) {
    %c0_i32 = arith.constant 0 : i32
    %c0_i32_0 = arith.constant 0 : i32
    return %arg0, %arg1, %arg2, %c0_i32 : i32, i32, i32, i32
  }
  func.func @transform_1(%arg0: i32, %arg1: i32, %arg2: i32) -> (i32, i32, i32) {
    %c0_i32 = arith.constant 0 : i32
    %c0_i32_0 = arith.constant 0 : i32
    %c0_i32_1 = arith.constant 0 : i32
    return %arg0, %c0_i32, %c0_i32_0 : i32, i32, i32
  }
  func.func @transform_2(%arg0: i32, %arg1: i32, %arg2: i32) -> (i32, i32) {
    %c0_i32 = arith.constant 0 : i32
    %c0_i32_0 = arith.constant 0 : i32
    %c0_i32_1 = arith.constant 0 : i32
    return %c0_i32, %c0_i32_0 : i32, i32
  }
  func.func @transform_3(%arg0: i32, %arg1: i32, %arg2: i32) -> (i32, i32, i32, i32) {
    %c0_i32 = arith.constant 0 : i32
    %c0_i32_0 = arith.constant 0 : i32
    return %arg0, %arg1, %arg2, %c0_i32 : i32, i32, i32, i32
  }
}

module attributes {stable_mosaic.version = 11 : i64} {
  func.func @_gemm_kernel(%arg0: i32, %arg1: i32, %arg2: i32, %arg3: memref<1x1x8x256xbf16, #tpu.memory_space<vmem>>, %arg4: memref<1x256x128xbf16, #tpu.memory_space<vmem>>, %arg5: memref<1x128xf32, #tpu.memory_space<vmem>>, %arg6: memref<1x1x8x128xbf16, #tpu.memory_space<vmem>>, %arg7: memref<1x1x2x128xf32, #tpu.memory_space<vmem>>) attributes {dimension_semantics = [#tpu.dimension_semantics<parallel>, #tpu.dimension_semantics<parallel>, #tpu.dimension_semantics<arbitrary>], iteration_bounds = array<i64: 1, 2, 1>, scalar_prefetch = 0 : i64, scratch_operands = 0 : i64, tpu.core_type = #tpu.core_type<tc>, window_params = [{transform_indices = @transform_0, window_bounds = array<i64: 1, 1, 8, 256>}, {transform_indices = @transform_1, window_bounds = array<i64: 1, 256, 128>}, {pipeline_mode = #tpu.pipeline_mode<synchronous>, transform_indices = @transform_2, window_bounds = array<i64: 1, 128>}, {transform_indices = @transform_3, window_bounds = array<i64: 1, 1, 8, 128>}, {transform_indices = @transform_4, window_bounds = array<i64: 1, 1, 2, 128>}]} {
    %c0 = arith.constant 0 : index
    %c0_0 = arith.constant 0 : index
    %c0_1 = arith.constant 0 : index
    %c0_2 = arith.constant 0 : index
    %0 = vector.load %arg3[%c0, %c0_0, %c0_1, %c0_2] : memref<1x1x8x256xbf16, #tpu.memory_space<vmem>>, vector<1x1x8x256xbf16>
    %1 = vector.shape_cast %0 : vector<1x1x8x256xbf16> to vector<8x256xbf16>
    %c0_3 = arith.constant 0 : index
    %c0_4 = arith.constant 0 : index
    %c0_5 = arith.constant 0 : index
    %2 = vector.load %arg4[%c0_3, %c0_4, %c0_5] : memref<1x256x128xbf16, #tpu.memory_space<vmem>>, vector<1x256x128xbf16>
    %3 = vector.shape_cast %2 : vector<1x256x128xbf16> to vector<256x128xbf16>
    %c0_6 = arith.constant 0 : index
    %c0_7 = arith.constant 0 : index
    %4 = vector.load %arg5[%c0_6, %c0_7] : memref<1x128xf32, #tpu.memory_space<vmem>>, vector<1x128xf32>
    %cst = arith.constant dense<0.000000e+00> : vector<8x128xf32>
    %5 = tpu.matmul %1, %3, %cst {dimension_numbers = #tpu.dot_dimension_numbers<[1], [0], [0], [1], [0, 0, 1, 1], [], []>} : vector<8x256xbf16>, vector<256x128xbf16>, vector<8x128xf32> -> vector<8x128xf32>
    %6 = vector.broadcast %4 : vector<1x128xf32> to vector<8x128xf32>
    %7 = arith.addf %5, %6 : vector<8x128xf32>
    %8 = vector.broadcast %4 : vector<1x128xf32> to vector<8x128xf32>
    %9 = arith.subf %7, %8 : vector<8x128xf32>
    %c0_i32 = arith.constant 0 : i32
    %10 = arith.cmpi eq, %arg2, %c0_i32 : i32
    %11 = arith.extui %10 : i1 to i32
    %c0_i32_8 = arith.constant 0 : i32
    %12 = arith.cmpi ne, %11, %c0_i32_8 : i32
    scf.if %12 {
      %cst_30 = arith.constant 0.000000e+00 : f32
      %30 = vector.broadcast %cst_30 : f32 to vector<1x1x2x128xf32>
      %c0_31 = arith.constant 0 : index
      %c0_32 = arith.constant 0 : index
      %c0_33 = arith.constant 0 : index
      %c0_34 = arith.constant 0 : index
      %31 = vector.load %arg7[%c0_31, %c0_32, %c0_33, %c0_34] : memref<1x1x2x128xf32, #tpu.memory_space<vmem>>, vector<1x1x2x128xf32>
      tpu.vector_store %arg7[%c0_31, %c0_32, %c0_33, %c0_34], %30 {strides = array<i32>} : memref<1x1x2x128xf32, #tpu.memory_space<vmem>>, vector<1x1x2x128xf32>,
    } else {
    }
    %cst_9 = arith.constant dense<0.000000e+00> : vector<128xf32>
    %13 = vector.multi_reduction <add>, %9, %cst_9 [0] : vector<8x128xf32> to vector<128xf32>
    %14 = vector.shape_cast %13 : vector<128xf32> to vector<1x128xf32>
    %15 = arith.mulf %9, %9 : vector<8x128xf32>
    %cst_10 = arith.constant dense<0.000000e+00> : vector<128xf32>
    %16 = vector.multi_reduction <add>, %15, %cst_10 [0] : vector<8x128xf32> to vector<128xf32>
    %17 = vector.shape_cast %16 : vector<128xf32> to vector<1x128xf32>
    %c0_11 = arith.constant 0 : index
    %c0_12 = arith.constant 0 : index
    %c0_13 = arith.constant 0 : index
    %c0_14 = arith.constant 0 : index
    %18 = vector.load %arg7[%c0_11, %c0_12, %c0_13, %c0_14] : memref<1x1x2x128xf32, #tpu.memory_space<vmem>>, vector<1x1x1x128xf32>
    %19 = vector.shape_cast %14 : vector<1x128xf32> to vector<1x1x1x128xf32>
    %20 = arith.addf %18, %19 : vector<1x1x1x128xf32>
    %c0_15 = arith.constant 0 : index
    %c0_16 = arith.constant 0 : index
    %c0_17 = arith.constant 0 : index
    %c0_18 = arith.constant 0 : index
    %21 = vector.load %arg7[%c0_15, %c0_16, %c0_17, %c0_18] : memref<1x1x2x128xf32, #tpu.memory_space<vmem>>, vector<1x1x1x128xf32>
    tpu.vector_store %arg7[%c0_15, %c0_16, %c0_17, %c0_18], %20 {strides = array<i32>} : memref<1x1x2x128xf32, #tpu.memory_space<vmem>>, vector<1x1x1x128xf32>,
    %c0_19 = arith.constant 0 : index
    %c0_20 = arith.constant 0 : index
    %c1 = arith.constant 1 : index
    %c0_21 = arith.constant 0 : index
    %22 = vector.load %arg7[%c0_19, %c0_20, %c1, %c0_21] : memref<1x1x2x128xf32, #tpu.memory_space<vmem>>, vector<1x1x1x128xf32>
    %23 = vector.shape_cast %17 : vector<1x128xf32> to vector<1x1x1x128xf32>
    %24 = arith.addf %22, %23 : vector<1x1x1x128xf32>
    %c0_22 = arith.constant 0 : index
    %c0_23 = arith.constant 0 : index
    %c1_24 = arith.constant 1 : index
    %c0_25 = arith.constant 0 : index
    %25 = vector.load %arg7[%c0_22, %c0_23, %c1_24, %c0_25] : memref<1x1x2x128xf32, #tpu.memory_space<vmem>>, vector<1x1x1x128xf32>
    tpu.vector_store %arg7[%c0_22, %c0_23, %c1_24, %c0_25], %24 {strides = array<i32>} : memref<1x1x2x128xf32, #tpu.memory_space<vmem>>, vector<1x1x1x128xf32>,
    %26 = arith.truncf %7 : vector<8x128xf32> to vector<8x128xbf16>
    %c0_26 = arith.constant 0 : index
    %c0_27 = arith.constant 0 : index
    %c0_28 = arith.constant 0 : index
    %c0_29 = arith.constant 0 : index
    %27 = vector.load %arg6[%c0_26, %c0_27, %c0_28, %c0_29] : memref<1x1x8x128xbf16, #tpu.memory_space<vmem>>, vector<1x1x8x128xbf16>
    %28 = vector.shape_cast %27 : vector<1x1x8x128xbf16> to vector<8x128xbf16>
    %29 = vector.shape_cast %26 : vector<8x128xbf16> to vector<1x1x8x128xbf16>
    tpu.vector_store %arg6[%c0_26, %c0_27, %c0_28, %c0_29], %29 {strides = array<i32>} : memref<1x1x8x128xbf16, #tpu.memory_space<vmem>>, vector<1x1x8x128xbf16>,
    return
  }
  func.func @transform_0(%arg0: i32, %arg1: i32, %arg2: i32) -> (i32, i32, i32, i32) {
    %c0_i32 = arith.constant 0 : i32
    %c0_i32_0 = arith.constant 0 : i32
    return %arg0, %arg1, %arg2, %c0_i32 : i32, i32, i32, i32
  }
  func.func @transform_1(%arg0: i32, %arg1: i32, %arg2: i32) -> (i32, i32, i32) {
    %c0_i32 = arith.constant 0 : i32
    %c0_i32_0 = arith.constant 0 : i32
    %c0_i32_1 = arith.constant 0 : i32
    return %arg0, %c0_i32, %c0_i32_0 : i32, i32, i32
  }
  func.func @transform_2(%arg0: i32, %arg1: i32, %arg2: i32) -> (i32, i32) {
    %c0_i32 = arith.constant 0 : i32
    %c0_i32_0 = arith.constant 0 : i32
    %c0_i32_1 = arith.constant 0 : i32
    return %c0_i32, %c0_i32_0 : i32, i32
  }
  func.func @transform_3(%arg0: i32, %arg1: i32, %arg2: i32) -> (i32, i32, i32, i32) {
    %c0_i32 = arith.constant 0 : i32
    %c0_i32_0 = arith.constant 0 : i32
    return %arg0, %arg1, %arg2, %c0_i32 : i32, i32, i32, i32
  }
  func.func @transform_4(%arg0: i32, %arg1: i32, %arg2: i32) -> (i32, i32, i32, i32) {
    %c0_i32 = arith.constant 0 : i32
    %c0_i32_0 = arith.constant 0 : i32
    %c0_i32_1 = arith.constant 0 : i32
    return %arg0, %arg1, %c0_i32, %c0_i32_0 : i32, i32, i32, i32
  }
}

module attributes {stable_mosaic.version = 11 : i64} {
  func.func @_affine_kernel(%arg0: i32, %arg1: i32, %arg2: i32, %arg3: memref<1x1x8x128xbf16, #tpu.memory_space<vmem>>, %arg4: memref<1x1x8xf32, #tpu.memory_space<vmem>>, %arg5: memref<1x1x8xf32, #tpu.memory_space<vmem>>, %arg6: memref<1x1x8x8xbf16, #tpu.memory_space<vmem>>) attributes {dimension_semantics = [#tpu.dimension_semantics<parallel>, #tpu.dimension_semantics<parallel>, #tpu.dimension_semantics<parallel>], iteration_bounds = array<i64: 1, 2, 1>, scalar_prefetch = 0 : i64, scratch_operands = 0 : i64, tpu.core_type = #tpu.core_type<tc>, window_params = [{transform_indices = @transform_0, window_bounds = array<i64: 1, 1, 8, 128>}, {transform_indices = @transform_1, window_bounds = array<i64: 1, 1, 8>}, {transform_indices = @transform_2, window_bounds = array<i64: 1, 1, 8>}, {transform_indices = @transform_3, window_bounds = array<i64: 1, 1, 8, 8>}]} {
    %c0 = arith.constant 0 : index
    %c0_0 = arith.constant 0 : index
    %c0_1 = arith.constant 0 : index
    %c0_2 = arith.constant 0 : index
    %0 = vector.load %arg3[%c0, %c0_0, %c0_1, %c0_2] : memref<1x1x8x128xbf16, #tpu.memory_space<vmem>>, vector<1x1x8x128xbf16>
    %1 = vector.shape_cast %0 : vector<1x1x8x128xbf16> to vector<8x128xbf16>
    %2 = vector.extract_strided_slice %1 {offsets = [0, 0], sizes = [8, 8], strides = [1, 1]} : vector<8x128xbf16> to vector<8x8xbf16>
    %3 = arith.extf %2 : vector<8x8xbf16> to vector<8x8xf32>
    %c0_3 = arith.constant 0 : index
    %c0_4 = arith.constant 0 : index
    %c0_5 = arith.constant 0 : index
    %4 = vector.load %arg4[%c0_3, %c0_4, %c0_5] : memref<1x1x8xf32, #tpu.memory_space<vmem>>, vector<1x1x8xf32>
    %5 = vector.shape_cast %4 : vector<1x1x8xf32> to vector<1x8xf32>
    %6 = vector.broadcast %5 : vector<1x8xf32> to vector<8x8xf32>
    %7 = arith.mulf %3, %6 : vector<8x8xf32>
    %c0_6 = arith.constant 0 : index
    %c0_7 = arith.constant 0 : index
    %c0_8 = arith.constant 0 : index
    %8 = vector.load %arg5[%c0_6, %c0_7, %c0_8] : memref<1x1x8xf32, #tpu.memory_space<vmem>>, vector<1x1x8xf32>
    %9 = vector.shape_cast %8 : vector<1x1x8xf32> to vector<1x8xf32>
    %10 = vector.broadcast %9 : vector<1x8xf32> to vector<8x8xf32>
    %11 = arith.addf %7, %10 : vector<8x8xf32>
    %12 = arith.truncf %11 : vector<8x8xf32> to vector<8x8xbf16>
    %c0_9 = arith.constant 0 : index
    %c0_10 = arith.constant 0 : index
    %c0_11 = arith.constant 0 : index
    %c0_12 = arith.constant 0 : index
    %13 = vector.load %arg6[%c0_9, %c0_10, %c0_11, %c0_12] : memref<1x1x8x8xbf16, #tpu.memory_space<vmem>>, vector<1x1x8x8xbf16>
    %14 = vector.shape_cast %13 : vector<1x1x8x8xbf16> to vector<8x8xbf16>
    %15 = vector.shape_cast %12 : vector<8x8xbf16> to vector<1x1x8x8xbf16>
    tpu.vector_store %arg6[%c0_9, %c0_10, %c0_11, %c0_12], %15 {strides = array<i32>} : memref<1x1x8x8xbf16, #tpu.memory_space<vmem>>, vector<1x1x8x8xbf16>,
    return
  }
  func.func @transform_0(%arg0: i32, %arg1: i32, %arg2: i32) -> (i32, i32, i32, i32) {
    %c0_i32 = arith.constant 0 : i32
    %c0_i32_0 = arith.constant 0 : i32
    return %arg0, %arg1, %arg2, %c0_i32 : i32, i32, i32, i32
  }
  func.func @transform_1(%arg0: i32, %arg1: i32, %arg2: i32) -> (i32, i32, i32) {
    %c0_i32 = arith.constant 0 : i32
    %c0_i32_0 = arith.constant 0 : i32
    %c0_i32_1 = arith.constant 0 : i32
    return %arg1, %c0_i32, %c0_i32_0 : i32, i32, i32
  }
  func.func @transform_2(%arg0: i32, %arg1: i32, %arg2: i32) -> (i32, i32, i32) {
    %c0_i32 = arith.constant 0 : i32
    %c0_i32_0 = arith.constant 0 : i32
    %c0_i32_1 = arith.constant 0 : i32
    return %arg1, %c0_i32, %c0_i32_0 : i32, i32, i32
  }
  func.func @transform_3(%arg0: i32, %arg1: i32, %arg2: i32) -> (i32, i32, i32, i32) {
    %c0_i32 = arith.constant 0 : i32
    %c0_i32_0 = arith.constant 0 : i32
    return %arg0, %arg1, %arg2, %c0_i32 : i32, i32, i32, i32
  }
}

module attributes {stable_mosaic.version = 11 : i64} {
  func.func @_gemm_kernel(%arg0: i32, %arg1: i32, %arg2: i32, %arg3: memref<1x1x1x512xbf16, #tpu.memory_space<vmem>>, %arg4: memref<1x512x128xbf16, #tpu.memory_space<vmem>>, %arg5: memref<1x128xf32, #tpu.memory_space<vmem>>, %arg6: memref<1x1x128xf32, #tpu.memory_space<vmem>>, %arg7: memref<1x1x128xf32, #tpu.memory_space<vmem>>, %arg8: memref<1x1x1x128xbf16, #tpu.memory_space<vmem>>) attributes {dimension_semantics = [#tpu.dimension_semantics<parallel>, #tpu.dimension_semantics<parallel>, #tpu.dimension_semantics<parallel>], iteration_bounds = array<i64: 1, 2, 1>, scalar_prefetch = 0 : i64, scratch_operands = 0 : i64, tpu.core_type = #tpu.core_type<tc>, window_params = [{transform_indices = @transform_0, window_bounds = array<i64: 1, 1, 1, 512>}, {transform_indices = @transform_1, window_bounds = array<i64: 1, 512, 128>}, {pipeline_mode = #tpu.pipeline_mode<synchronous>, transform_indices = @transform_2, window_bounds = array<i64: 1, 128>}, {transform_indices = @transform_3, window_bounds = array<i64: 1, 1, 128>}, {transform_indices = @transform_4, window_bounds = array<i64: 1, 1, 128>}, {transform_indices = @transform_5, window_bounds = array<i64: 1, 1, 1, 128>}]} {
    %c0 = arith.constant 0 : index
    %c0_0 = arith.constant 0 : index
    %c0_1 = arith.constant 0 : index
    %c0_2 = arith.constant 0 : index
    %0 = vector.load %arg3[%c0, %c0_0, %c0_1, %c0_2] : memref<1x1x1x512xbf16, #tpu.memory_space<vmem>>, vector<1x1x1x512xbf16>
    %1 = vector.shape_cast %0 : vector<1x1x1x512xbf16> to vector<1x512xbf16>
    %c0_3 = arith.constant 0 : index
    %c0_4 = arith.constant 0 : index
    %c0_5 = arith.constant 0 : index
    %2 = vector.load %arg4[%c0_3, %c0_4, %c0_5] : memref<1x512x128xbf16, #tpu.memory_space<vmem>>, vector<1x512x128xbf16>
    %3 = vector.shape_cast %2 : vector<1x512x128xbf16> to vector<512x128xbf16>
    %c0_6 = arith.constant 0 : index
    %c0_7 = arith.constant 0 : index
    %4 = vector.load %arg5[%c0_6, %c0_7] : memref<1x128xf32, #tpu.memory_space<vmem>>, vector<1x128xf32>
    %cst = arith.constant dense<0.000000e+00> : vector<1x128xf32>
    %5 = tpu.matmul %1, %3, %cst {dimension_numbers = #tpu.dot_dimension_numbers<[1], [0], [0], [1], [0, 0, 1, 1], [], []>} : vector<1x512xbf16>, vector<512x128xbf16>, vector<1x128xf32> -> vector<1x128xf32>
    %6 = arith.addf %5, %4 : vector<1x128xf32>
    %c0_8 = arith.constant 0 : index
    %c0_9 = arith.constant 0 : index
    %c0_10 = arith.constant 0 : index
    %7 = vector.load %arg6[%c0_8, %c0_9, %c0_10] : memref<1x1x128xf32, #tpu.memory_space<vmem>>, vector<1x1x128xf32>
    %8 = vector.shape_cast %7 : vector<1x1x128xf32> to vector<1x128xf32>
    %9 = arith.mulf %6, %8 : vector<1x128xf32>
    %c0_11 = arith.constant 0 : index
    %c0_12 = arith.constant 0 : index
    %c0_13 = arith.constant 0 : index
    %10 = vector.load %arg7[%c0_11, %c0_12, %c0_13] : memref<1x1x128xf32, #tpu.memory_space<vmem>>, vector<1x1x128xf32>
    %11 = vector.shape_cast %10 : vector<1x1x128xf32> to vector<1x128xf32>
    %12 = arith.addf %9, %11 : vector<1x128xf32>
    %13 = arith.truncf %12 : vector<1x128xf32> to vector<1x128xbf16>
    %c0_14 = arith.constant 0 : index
    %c0_15 = arith.constant 0 : index
    %c0_16 = arith.constant 0 : index
    %c0_17 = arith.constant 0 : index
    %14 = vector.load %arg8[%c0_14, %c0_15, %c0_16, %c0_17] : memref<1x1x1x128xbf16, #tpu.memory_space<vmem>>, vector<1x1x1x128xbf16>
    %15 = vector.shape_cast %14 : vector<1x1x1x128xbf16> to vector<1x128xbf16>
    %16 = vector.shape_cast %13 : vector<1x128xbf16> to vector<1x1x1x128xbf16>
    tpu.vector_store %arg8[%c0_14, %c0_15, %c0_16, %c0_17], %16 {strides = array<i32>} : memref<1x1x1x128xbf16, #tpu.memory_space<vmem>>, vector<1x1x1x128xbf16>,
    return
  }
  func.func @transform_0(%arg0: i32, %arg1: i32, %arg2: i32) -> (i32, i32, i32, i32) {
    %c0_i32 = arith.constant 0 : i32
    %c0_i32_0 = arith.constant 0 : i32
    return %arg0, %arg1, %arg2, %c0_i32 : i32, i32, i32, i32
  }
  func.func @transform_1(%arg0: i32, %arg1: i32, %arg2: i32) -> (i32, i32, i32) {
    %c0_i32 = arith.constant 0 : i32
    %c0_i32_0 = arith.constant 0 : i32
    %c0_i32_1 = arith.constant 0 : i32
    return %arg0, %c0_i32, %c0_i32_0 : i32, i32, i32
  }
  func.func @transform_2(%arg0: i32, %arg1: i32, %arg2: i32) -> (i32, i32) {
    %c0_i32 = arith.constant 0 : i32
    %c0_i32_0 = arith.constant 0 : i32
    %c0_i32_1 = arith.constant 0 : i32
    return %c0_i32, %c0_i32_0 : i32, i32
  }
  func.func @transform_3(%arg0: i32, %arg1: i32, %arg2: i32) -> (i32, i32, i32) {
    %c0_i32 = arith.constant 0 : i32
    %c0_i32_0 = arith.constant 0 : i32
    %c0_i32_1 = arith.constant 0 : i32
    return %arg1, %c0_i32, %c0_i32_0 : i32, i32, i32
  }
  func.func @transform_4(%arg0: i32, %arg1: i32, %arg2: i32) -> (i32, i32, i32) {
    %c0_i32 = arith.constant 0 : i32
    %c0_i32_0 = arith.constant 0 : i32
    %c0_i32_1 = arith.constant 0 : i32
    return %arg1, %c0_i32, %c0_i32_0 : i32, i32, i32
  }
  func.func @transform_5(%arg0: i32, %arg1: i32, %arg2: i32) -> (i32, i32, i32, i32) {
    %c0_i32 = arith.constant 0 : i32
    %c0_i32_0 = arith.constant 0 : i32
    return %arg0, %arg1, %arg2, %c0_i32 : i32, i32, i32, i32
  }
}

module attributes {stable_mosaic.version = 11 : i64} {
  func.func @_gemm_kernel(%arg0: i32, %arg1: i32, %arg2: i32, %arg3: memref<1x1x1x64xbf16, #tpu.memory_space<vmem>>, %arg4: memref<1x64x128xbf16, #tpu.memory_space<vmem>>, %arg5: memref<1x128xf32, #tpu.memory_space<vmem>>, %arg6: memref<1x1x1x128xbf16, #tpu.memory_space<vmem>>, %arg7: memref<1x1x2x128xf32, #tpu.memory_space<vmem>>) attributes {dimension_semantics = [#tpu.dimension_semantics<parallel>, #tpu.dimension_semantics<parallel>, #tpu.dimension_semantics<arbitrary>], iteration_bounds = array<i64: 8, 2, 1>, scalar_prefetch = 0 : i64, scratch_operands = 0 : i64, tpu.core_type = #tpu.core_type<tc>, window_params = [{transform_indices = @transform_0, window_bounds = array<i64: 1, 1, 1, 64>}, {transform_indices = @transform_1, window_bounds = array<i64: 1, 64, 128>}, {pipeline_mode = #tpu.pipeline_mode<synchronous>, transform_indices = @transform_2, window_bounds = array<i64: 1, 128>}, {transform_indices = @transform_3, window_bounds = array<i64: 1, 1, 1, 128>}, {transform_indices = @transform_4, window_bounds = array<i64: 1, 1, 2, 128>}]} {
    %c0 = arith.constant 0 : index
    %c0_0 = arith.constant 0 : index
    %c0_1 = arith.constant 0 : index
    %c0_2 = arith.constant 0 : index
    %0 = vector.load %arg3[%c0, %c0_0, %c0_1, %c0_2] : memref<1x1x1x64xbf16, #tpu.memory_space<vmem>>, vector<1x1x1x64xbf16>
    %1 = vector.shape_cast %0 : vector<1x1x1x64xbf16> to vector<1x64xbf16>
    %c0_3 = arith.constant 0 : index
    %c0_4 = arith.constant 0 : index
    %c0_5 = arith.constant 0 : index
    %2 = vector.load %arg4[%c0_3, %c0_4, %c0_5] : memref<1x64x128xbf16, #tpu.memory_space<vmem>>, vector<1x64x128xbf16>
    %3 = vector.shape_cast %2 : vector<1x64x128xbf16> to vector<64x128xbf16>
    %c0_6 = arith.constant 0 : index
    %c0_7 = arith.constant 0 : index
    %4 = vector.load %arg5[%c0_6, %c0_7] : memref<1x128xf32, #tpu.memory_space<vmem>>, vector<1x128xf32>
    %cst = arith.constant dense<0.000000e+00> : vector<1x128xf32>
    %5 = tpu.matmul %1, %3, %cst {dimension_numbers = #tpu.dot_dimension_numbers<[1], [0], [0], [1], [0, 0, 1, 1], [], []>} : vector<1x64xbf16>, vector<64x128xbf16>, vector<1x128xf32> -> vector<1x128xf32>
    %6 = arith.addf %5, %4 : vector<1x128xf32>
    %7 = arith.subf %6, %4 : vector<1x128xf32>
    %c0_i32 = arith.constant 0 : i32
    %8 = arith.cmpi eq, %arg2, %c0_i32 : i32
    %9 = arith.extui %8 : i1 to i32
    %c0_i32_8 = arith.constant 0 : i32
    %10 = arith.cmpi ne, %9, %c0_i32_8 : i32
    scf.if %10 {
      %cst_30 = arith.constant 0.000000e+00 : f32
      %28 = vector.broadcast %cst_30 : f32 to vector<1x1x2x128xf32>
      %c0_31 = arith.constant 0 : index
      %c0_32 = arith.constant 0 : index
      %c0_33 = arith.constant 0 : index
      %c0_34 = arith.constant 0 : index
      %29 = vector.load %arg7[%c0_31, %c0_32, %c0_33, %c0_34] : memref<1x1x2x128xf32, #tpu.memory_space<vmem>>, vector<1x1x2x128xf32>
      tpu.vector_store %arg7[%c0_31, %c0_32, %c0_33, %c0_34], %28 {strides = array<i32>} : memref<1x1x2x128xf32, #tpu.memory_space<vmem>>, vector<1x1x2x128xf32>,
    } else {
    }
    %cst_9 = arith.constant dense<0.000000e+00> : vector<128xf32>
    %11 = vector.multi_reduction <add>, %7, %cst_9 [0] : vector<1x128xf32> to vector<128xf32>
    %12 = vector.shape_cast %11 : vector<128xf32> to vector<1x128xf32>
    %13 = arith.mulf %7, %7 : vector<1x128xf32>
    %cst_10 = arith.constant dense<0.000000e+00> : vector<128xf32>
    %14 = vector.multi_reduction <add>, %13, %cst_10 [0] : vector<1x128xf32> to vector<128xf32>
    %15 = vector.shape_cast %14 : vector<128xf32> to vector<1x128xf32>
    %c0_11 = arith.constant 0 : index
    %c0_12 = arith.constant 0 : index
    %c0_13 = arith.constant 0 : index
    %c0_14 = arith.constant 0 : index
    %16 = vector.load %arg7[%c0_11, %c0_12, %c0_13, %c0_14] : memref<1x1x2x128xf32, #tpu.memory_space<vmem>>, vector<1x1x1x128xf32>
    %17 = vector.shape_cast %12 : vector<1x128xf32> to vector<1x1x1x128xf32>
    %18 = arith.addf %16, %17 : vector<1x1x1x128xf32>
    %c0_15 = arith.constant 0 : index
    %c0_16 = arith.constant 0 : index
    %c0_17 = arith.constant 0 : index
    %c0_18 = arith.constant 0 : index
    %19 = vector.load %arg7[%c0_15, %c0_16, %c0_17, %c0_18] : memref<1x1x2x128xf32, #tpu.memory_space<vmem>>, vector<1x1x1x128xf32>
    tpu.vector_store %arg7[%c0_15, %c0_16, %c0_17, %c0_18], %18 {strides = array<i32>} : memref<1x1x2x128xf32, #tpu.memory_space<vmem>>, vector<1x1x1x128xf32>,
    %c0_19 = arith.constant 0 : index
    %c0_20 = arith.constant 0 : index
    %c1 = arith.constant 1 : index
    %c0_21 = arith.constant 0 : index
    %20 = vector.load %arg7[%c0_19, %c0_20, %c1, %c0_21] : memref<1x1x2x128xf32, #tpu.memory_space<vmem>>, vector<1x1x1x128xf32>
    %21 = vector.shape_cast %15 : vector<1x128xf32> to vector<1x1x1x128xf32>
    %22 = arith.addf %20, %21 : vector<1x1x1x128xf32>
    %c0_22 = arith.constant 0 : index
    %c0_23 = arith.constant 0 : index
    %c1_24 = arith.constant 1 : index
    %c0_25 = arith.constant 0 : index
    %23 = vector.load %arg7[%c0_22, %c0_23, %c1_24, %c0_25] : memref<1x1x2x128xf32, #tpu.memory_space<vmem>>, vector<1x1x1x128xf32>
    tpu.vector_store %arg7[%c0_22, %c0_23, %c1_24, %c0_25], %22 {strides = array<i32>} : memref<1x1x2x128xf32, #tpu.memory_space<vmem>>, vector<1x1x1x128xf32>,
    %24 = arith.truncf %6 : vector<1x128xf32> to vector<1x128xbf16>
    %c0_26 = arith.constant 0 : index
    %c0_27 = arith.constant 0 : index
    %c0_28 = arith.constant 0 : index
    %c0_29 = arith.constant 0 : index
    %25 = vector.load %arg6[%c0_26, %c0_27, %c0_28, %c0_29] : memref<1x1x1x128xbf16, #tpu.memory_space<vmem>>, vector<1x1x1x128xbf16>
    %26 = vector.shape_cast %25 : vector<1x1x1x128xbf16> to vector<1x128xbf16>
    %27 = vector.shape_cast %24 : vector<1x128xbf16> to vector<1x1x1x128xbf16>
    tpu.vector_store %arg6[%c0_26, %c0_27, %c0_28, %c0_29], %27 {strides = array<i32>} : memref<1x1x1x128xbf16, #tpu.memory_space<vmem>>, vector<1x1x1x128xbf16>,
    return
  }
  func.func @transform_0(%arg0: i32, %arg1: i32, %arg2: i32) -> (i32, i32, i32, i32) {
    %c0_i32 = arith.constant 0 : i32
    %c0_i32_0 = arith.constant 0 : i32
    return %arg0, %arg1, %arg2, %c0_i32 : i32, i32, i32, i32
  }
  func.func @transform_1(%arg0: i32, %arg1: i32, %arg2: i32) -> (i32, i32, i32) {
    %c0_i32 = arith.constant 0 : i32
    %c0_i32_0 = arith.constant 0 : i32
    %c0_i32_1 = arith.constant 0 : i32
    return %arg0, %c0_i32, %c0_i32_0 : i32, i32, i32
  }
  func.func @transform_2(%arg0: i32, %arg1: i32, %arg2: i32) -> (i32, i32) {
    %c0_i32 = arith.constant 0 : i32
    %c0_i32_0 = arith.constant 0 : i32
    %c0_i32_1 = arith.constant 0 : i32
    return %c0_i32, %c0_i32_0 : i32, i32
  }
  func.func @transform_3(%arg0: i32, %arg1: i32, %arg2: i32) -> (i32, i32, i32, i32) {
    %c0_i32 = arith.constant 0 : i32
    %c0_i32_0 = arith.constant 0 : i32
    return %arg0, %arg1, %arg2, %c0_i32 : i32, i32, i32, i32
  }
  func.func @transform_4(%arg0: i32, %arg1: i32, %arg2: i32) -> (i32, i32, i32, i32) {
    %c0_i32 = arith.constant 0 : i32
    %c0_i32_0 = arith.constant 0 : i32
    %c0_i32_1 = arith.constant 0 : i32
    return %arg0, %arg1, %c0_i32, %c0_i32_0 : i32, i32, i32, i32
  }
}

module attributes {stable_mosaic.version = 11 : i64} {
  func.func @_affine_kernel(%arg0: i32, %arg1: i32, %arg2: i32, %arg3: memref<1x1x1x128xbf16, #tpu.memory_space<vmem>>, %arg4: memref<1x1x8xf32, #tpu.memory_space<vmem>>, %arg5: memref<1x1x8xf32, #tpu.memory_space<vmem>>, %arg6: memref<1x1x1x8xbf16, #tpu.memory_space<vmem>>) attributes {dimension_semantics = [#tpu.dimension_semantics<parallel>, #tpu.dimension_semantics<parallel>, #tpu.dimension_semantics<parallel>], iteration_bounds = array<i64: 8, 2, 1>, scalar_prefetch = 0 : i64, scratch_operands = 0 : i64, tpu.core_type = #tpu.core_type<tc>, window_params = [{transform_indices = @transform_0, window_bounds = array<i64: 1, 1, 1, 128>}, {transform_indices = @transform_1, window_bounds = array<i64: 1, 1, 8>}, {transform_indices = @transform_2, window_bounds = array<i64: 1, 1, 8>}, {transform_indices = @transform_3, window_bounds = array<i64: 1, 1, 1, 8>}]} {
    %c0 = arith.constant 0 : index
    %c0_0 = arith.constant 0 : index
    %c0_1 = arith.constant 0 : index
    %c0_2 = arith.constant 0 : index
    %0 = vector.load %arg3[%c0, %c0_0, %c0_1, %c0_2] : memref<1x1x1x128xbf16, #tpu.memory_space<vmem>>, vector<1x1x1x128xbf16>
    %1 = vector.shape_cast %0 : vector<1x1x1x128xbf16> to vector<1x128xbf16>
    %2 = vector.extract_strided_slice %1 {offsets = [0, 0], sizes = [1, 8], strides = [1, 1]} : vector<1x128xbf16> to vector<1x8xbf16>
    %3 = arith.extf %2 : vector<1x8xbf16> to vector<1x8xf32>
    %c0_3 = arith.constant 0 : index
    %c0_4 = arith.constant 0 : index
    %c0_5 = arith.constant 0 : index
    %4 = vector.load %arg4[%c0_3, %c0_4, %c0_5] : memref<1x1x8xf32, #tpu.memory_space<vmem>>, vector<1x1x8xf32>
    %5 = vector.shape_cast %4 : vector<1x1x8xf32> to vector<1x8xf32>
    %6 = arith.mulf %3, %5 : vector<1x8xf32>
    %c0_6 = arith.constant 0 : index
    %c0_7 = arith.constant 0 : index
    %c0_8 = arith.constant 0 : index
    %7 = vector.load %arg5[%c0_6, %c0_7, %c0_8] : memref<1x1x8xf32, #tpu.memory_space<vmem>>, vector<1x1x8xf32>
    %8 = vector.shape_cast %7 : vector<1x1x8xf32> to vector<1x8xf32>
    %9 = arith.addf %6, %8 : vector<1x8xf32>
    %cst = arith.constant 0.000000e+00 : f32
    %10 = vector.broadcast %cst : f32 to vector<1x8xf32>
    %11 = arith.subf %10, %9 : vector<1x8xf32>
    %12 = math.exp %11 : vector<1x8xf32>
    %cst_9 = arith.constant 1.000000e+00 : f32
    %13 = vector.broadcast %cst_9 : f32 to vector<1x8xf32>
    %14 = arith.addf %13, %12 : vector<1x8xf32>
    %cst_10 = arith.constant 1.000000e+00 : f32
    %15 = vector.broadcast %cst_10 : f32 to vector<1x8xf32>
    %16 = arith.divf %15, %14 : vector<1x8xf32>
    %17 = arith.truncf %16 : vector<1x8xf32> to vector<1x8xbf16>
    %c0_11 = arith.constant 0 : index
    %c0_12 = arith.constant 0 : index
    %c0_13 = arith.constant 0 : index
    %c0_14 = arith.constant 0 : index
    %18 = vector.load %arg6[%c0_11, %c0_12, %c0_13, %c0_14] : memref<1x1x1x8xbf16, #tpu.memory_space<vmem>>, vector<1x1x1x8xbf16>
    %19 = vector.shape_cast %18 : vector<1x1x1x8xbf16> to vector<1x8xbf16>
    %20 = vector.shape_cast %17 : vector<1x8xbf16> to vector<1x1x1x8xbf16>
    tpu.vector_store %arg6[%c0_11, %c0_12, %c0_13, %c0_14], %20 {strides = array<i32>} : memref<1x1x1x8xbf16, #tpu.memory_space<vmem>>, vector<1x1x1x8xbf16>,
    return
  }
  func.func @transform_0(%arg0: i32, %arg1: i32, %arg2: i32) -> (i32, i32, i32, i32) {
    %c0_i32 = arith.constant 0 : i32
    %c0_i32_0 = arith.constant 0 : i32
    return %arg0, %arg1, %arg2, %c0_i32 : i32, i32, i32, i32
  }
  func.func @transform_1(%arg0: i32, %arg1: i32, %arg2: i32) -> (i32, i32, i32) {
    %c0_i32 = arith.constant 0 : i32
    %c0_i32_0 = arith.constant 0 : i32
    %c0_i32_1 = arith.constant 0 : i32
    return %arg1, %c0_i32, %c0_i32_0 : i32, i32, i32
  }
  func.func @transform_2(%arg0: i32, %arg1: i32, %arg2: i32) -> (i32, i32, i32) {
    %c0_i32 = arith.constant 0 : i32
    %c0_i32_0 = arith.constant 0 : i32
    %c0_i32_1 = arith.constant 0 : i32
    return %arg1, %c0_i32, %c0_i32_0 : i32, i32, i32
  }
  func.func @transform_3(%arg0: i32, %arg1: i32, %arg2: i32) -> (i32, i32, i32, i32) {
    %c0_i32 = arith.constant 0 : i32
    %c0_i32_0 = arith.constant 0 : i32
    return %arg0, %arg1, %arg2, %c0_i32 : i32, i32, i32, i32
  }
}

module attributes {stable_mosaic.version = 11 : i64} {
  func.func @_affine_kernel(%arg0: i32, %arg1: i32, %arg2: i32, %arg3: memref<1x1x8x128xbf16, #tpu.memory_space<vmem>>, %arg4: memref<1x1x4xf32, #tpu.memory_space<vmem>>, %arg5: memref<1x1x4xf32, #tpu.memory_space<vmem>>, %arg6: memref<1x1x8x4xbf16, #tpu.memory_space<vmem>>) attributes {dimension_semantics = [#tpu.dimension_semantics<parallel>, #tpu.dimension_semantics<parallel>, #tpu.dimension_semantics<parallel>], iteration_bounds = array<i64: 8, 2, 1>, scalar_prefetch = 0 : i64, scratch_operands = 0 : i64, tpu.core_type = #tpu.core_type<tc>, window_params = [{transform_indices = @transform_0, window_bounds = array<i64: 1, 1, 8, 128>}, {transform_indices = @transform_1, window_bounds = array<i64: 1, 1, 4>}, {transform_indices = @transform_2, window_bounds = array<i64: 1, 1, 4>}, {transform_indices = @transform_3, window_bounds = array<i64: 1, 1, 8, 4>}]} {
    %c0 = arith.constant 0 : index
    %c0_0 = arith.constant 0 : index
    %c0_1 = arith.constant 0 : index
    %c0_2 = arith.constant 0 : index
    %0 = vector.load %arg3[%c0, %c0_0, %c0_1, %c0_2] : memref<1x1x8x128xbf16, #tpu.memory_space<vmem>>, vector<1x1x8x128xbf16>
    %1 = vector.shape_cast %0 : vector<1x1x8x128xbf16> to vector<8x128xbf16>
    %2 = vector.extract_strided_slice %1 {offsets = [0, 0], sizes = [8, 4], strides = [1, 1]} : vector<8x128xbf16> to vector<8x4xbf16>
    %3 = arith.extf %2 : vector<8x4xbf16> to vector<8x4xf32>
    %c0_3 = arith.constant 0 : index
    %c0_4 = arith.constant 0 : index
    %c0_5 = arith.constant 0 : index
    %4 = vector.load %arg4[%c0_3, %c0_4, %c0_5] : memref<1x1x4xf32, #tpu.memory_space<vmem>>, vector<1x1x4xf32>
    %5 = vector.shape_cast %4 : vector<1x1x4xf32> to vector<1x4xf32>
    %6 = vector.broadcast %5 : vector<1x4xf32> to vector<8x4xf32>
    %7 = arith.mulf %3, %6 : vector<8x4xf32>
    %c0_6 = arith.constant 0 : index
    %c0_7 = arith.constant 0 : index
    %c0_8 = arith.constant 0 : index
    %8 = vector.load %arg5[%c0_6, %c0_7, %c0_8] : memref<1x1x4xf32, #tpu.memory_space<vmem>>, vector<1x1x4xf32>
    %9 = vector.shape_cast %8 : vector<1x1x4xf32> to vector<1x4xf32>
    %10 = vector.broadcast %9 : vector<1x4xf32> to vector<8x4xf32>
    %11 = arith.addf %7, %10 : vector<8x4xf32>
    %cst = arith.constant 0.000000e+00 : f32
    %12 = vector.broadcast %cst : f32 to vector<8x4xf32>
    %13 = arith.subf %12, %11 : vector<8x4xf32>
    %14 = math.exp %13 : vector<8x4xf32>
    %cst_9 = arith.constant 1.000000e+00 : f32
    %15 = vector.broadcast %cst_9 : f32 to vector<8x4xf32>
    %16 = arith.addf %15, %14 : vector<8x4xf32>
    %cst_10 = arith.constant 1.000000e+00 : f32
    %17 = vector.broadcast %cst_10 : f32 to vector<8x4xf32>
    %18 = arith.divf %17, %16 : vector<8x4xf32>
    %19 = arith.truncf %18 : vector<8x4xf32> to vector<8x4xbf16>
    %c0_11 = arith.constant 0 : index
    %c0_12 = arith.constant 0 : index
    %c0_13 = arith.constant 0 : index
    %c0_14 = arith.constant 0 : index
    %20 = vector.load %arg6[%c0_11, %c0_12, %c0_13, %c0_14] : memref<1x1x8x4xbf16, #tpu.memory_space<vmem>>, vector<1x1x8x4xbf16>
    %21 = vector.shape_cast %20 : vector<1x1x8x4xbf16> to vector<8x4xbf16>
    %22 = vector.shape_cast %19 : vector<8x4xbf16> to vector<1x1x8x4xbf16>
    tpu.vector_store %arg6[%c0_11, %c0_12, %c0_13, %c0_14], %22 {strides = array<i32>} : memref<1x1x8x4xbf16, #tpu.memory_space<vmem>>, vector<1x1x8x4xbf16>,
    return
  }
  func.func @transform_0(%arg0: i32, %arg1: i32, %arg2: i32) -> (i32, i32, i32, i32) {
    %c0_i32 = arith.constant 0 : i32
    %c0_i32_0 = arith.constant 0 : i32
    return %arg0, %arg1, %arg2, %c0_i32 : i32, i32, i32, i32
  }
  func.func @transform_1(%arg0: i32, %arg1: i32, %arg2: i32) -> (i32, i32, i32) {
    %c0_i32 = arith.constant 0 : i32
    %c0_i32_0 = arith.constant 0 : i32
    %c0_i32_1 = arith.constant 0 : i32
    return %arg1, %c0_i32, %c0_i32_0 : i32, i32, i32
  }
  func.func @transform_2(%arg0: i32, %arg1: i32, %arg2: i32) -> (i32, i32, i32) {
    %c0_i32 = arith.constant 0 : i32
    %c0_i32_0 = arith.constant 0 : i32
    %c0_i32_1 = arith.constant 0 : i32
    return %arg1, %c0_i32, %c0_i32_0 : i32, i32, i32
  }
  func.func @transform_3(%arg0: i32, %arg1: i32, %arg2: i32) -> (i32, i32, i32, i32) {
    %c0_i32 = arith.constant 0 : i32
    %c0_i32_0 = arith.constant 0 : i32
    return %arg0, %arg1, %arg2, %c0_i32 : i32, i32, i32, i32
  }
}

module attributes {stable_mosaic.version = 11 : i64} {
  func.func @_gemm_kernel(%arg0: i32, %arg1: i32, %arg2: i32, %arg3: memref<1x1x8x128xbf16, #tpu.memory_space<vmem>>, %arg4: memref<1x128x128xbf16, #tpu.memory_space<vmem>>, %arg5: memref<1x128xf32, #tpu.memory_space<vmem>>, %arg6: memref<1x1x8x128xbf16, #tpu.memory_space<vmem>>, %arg7: memref<1x1x2x128xf32, #tpu.memory_space<vmem>>) attributes {dimension_semantics = [#tpu.dimension_semantics<parallel>, #tpu.dimension_semantics<parallel>, #tpu.dimension_semantics<arbitrary>], iteration_bounds = array<i64: 8, 2, 1>, scalar_prefetch = 0 : i64, scratch_operands = 0 : i64, tpu.core_type = #tpu.core_type<tc>, window_params = [{transform_indices = @transform_0, window_bounds = array<i64: 1, 1, 8, 128>}, {transform_indices = @transform_1, window_bounds = array<i64: 1, 128, 128>}, {pipeline_mode = #tpu.pipeline_mode<synchronous>, transform_indices = @transform_2, window_bounds = array<i64: 1, 128>}, {transform_indices = @transform_3, window_bounds = array<i64: 1, 1, 8, 128>}, {transform_indices = @transform_4, window_bounds = array<i64: 1, 1, 2, 128>}]} {
    %c0 = arith.constant 0 : index
    %c0_0 = arith.constant 0 : index
    %c0_1 = arith.constant 0 : index
    %c0_2 = arith.constant 0 : index
    %0 = vector.load %arg3[%c0, %c0_0, %c0_1, %c0_2] : memref<1x1x8x128xbf16, #tpu.memory_space<vmem>>, vector<1x1x8x128xbf16>
    %1 = vector.shape_cast %0 : vector<1x1x8x128xbf16> to vector<8x128xbf16>
    %c0_3 = arith.constant 0 : index
    %c0_4 = arith.constant 0 : index
    %c0_5 = arith.constant 0 : index
    %2 = vector.load %arg4[%c0_3, %c0_4, %c0_5] : memref<1x128x128xbf16, #tpu.memory_space<vmem>>, vector<1x128x128xbf16>
    %3 = vector.shape_cast %2 : vector<1x128x128xbf16> to vector<128x128xbf16>
    %c0_6 = arith.constant 0 : index
    %c0_7 = arith.constant 0 : index
    %4 = vector.load %arg5[%c0_6, %c0_7] : memref<1x128xf32, #tpu.memory_space<vmem>>, vector<1x128xf32>
    %cst = arith.constant dense<0.000000e+00> : vector<8x128xf32>
    %5 = tpu.matmul %1, %3, %cst {dimension_numbers = #tpu.dot_dimension_numbers<[1], [0], [0], [1], [0, 0, 1, 1], [], []>} : vector<8x128xbf16>, vector<128x128xbf16>, vector<8x128xf32> -> vector<8x128xf32>
    %6 = vector.broadcast %4 : vector<1x128xf32> to vector<8x128xf32>
    %7 = arith.addf %5, %6 : vector<8x128xf32>
    %8 = vector.broadcast %4 : vector<1x128xf32> to vector<8x128xf32>
    %9 = arith.subf %7, %8 : vector<8x128xf32>
    %c0_i32 = arith.constant 0 : i32
    %10 = arith.cmpi eq, %arg2, %c0_i32 : i32
    %11 = arith.extui %10 : i1 to i32
    %c0_i32_8 = arith.constant 0 : i32
    %12 = arith.cmpi ne, %11, %c0_i32_8 : i32
    scf.if %12 {
      %cst_30 = arith.constant 0.000000e+00 : f32
      %30 = vector.broadcast %cst_30 : f32 to vector<1x1x2x128xf32>
      %c0_31 = arith.constant 0 : index
      %c0_32 = arith.constant 0 : index
      %c0_33 = arith.constant 0 : index
      %c0_34 = arith.constant 0 : index
      %31 = vector.load %arg7[%c0_31, %c0_32, %c0_33, %c0_34] : memref<1x1x2x128xf32, #tpu.memory_space<vmem>>, vector<1x1x2x128xf32>
      tpu.vector_store %arg7[%c0_31, %c0_32, %c0_33, %c0_34], %30 {strides = array<i32>} : memref<1x1x2x128xf32, #tpu.memory_space<vmem>>, vector<1x1x2x128xf32>,
    } else {
    }
    %cst_9 = arith.constant dense<0.000000e+00> : vector<128xf32>
    %13 = vector.multi_reduction <add>, %9, %cst_9 [0] : vector<8x128xf32> to vector<128xf32>
    %14 = vector.shape_cast %13 : vector<128xf32> to vector<1x128xf32>
    %15 = arith.mulf %9, %9 : vector<8x128xf32>
    %cst_10 = arith.constant dense<0.000000e+00> : vector<128xf32>
    %16 = vector.multi_reduction <add>, %15, %cst_10 [0] : vector<8x128xf32> to vector<128xf32>
    %17 = vector.shape_cast %16 : vector<128xf32> to vector<1x128xf32>
    %c0_11 = arith.constant 0 : index
    %c0_12 = arith.constant 0 : index
    %c0_13 = arith.constant 0 : index
    %c0_14 = arith.constant 0 : index
    %18 = vector.load %arg7[%c0_11, %c0_12, %c0_13, %c0_14] : memref<1x1x2x128xf32, #tpu.memory_space<vmem>>, vector<1x1x1x128xf32>
    %19 = vector.shape_cast %14 : vector<1x128xf32> to vector<1x1x1x128xf32>
    %20 = arith.addf %18, %19 : vector<1x1x1x128xf32>
    %c0_15 = arith.constant 0 : index
    %c0_16 = arith.constant 0 : index
    %c0_17 = arith.constant 0 : index
    %c0_18 = arith.constant 0 : index
    %21 = vector.load %arg7[%c0_15, %c0_16, %c0_17, %c0_18] : memref<1x1x2x128xf32, #tpu.memory_space<vmem>>, vector<1x1x1x128xf32>
    tpu.vector_store %arg7[%c0_15, %c0_16, %c0_17, %c0_18], %20 {strides = array<i32>} : memref<1x1x2x128xf32, #tpu.memory_space<vmem>>, vector<1x1x1x128xf32>,
    %c0_19 = arith.constant 0 : index
    %c0_20 = arith.constant 0 : index
    %c1 = arith.constant 1 : index
    %c0_21 = arith.constant 0 : index
    %22 = vector.load %arg7[%c0_19, %c0_20, %c1, %c0_21] : memref<1x1x2x128xf32, #tpu.memory_space<vmem>>, vector<1x1x1x128xf32>
    %23 = vector.shape_cast %17 : vector<1x128xf32> to vector<1x1x1x128xf32>
    %24 = arith.addf %22, %23 : vector<1x1x1x128xf32>
    %c0_22 = arith.constant 0 : index
    %c0_23 = arith.constant 0 : index
    %c1_24 = arith.constant 1 : index
    %c0_25 = arith.constant 0 : index
    %25 = vector.load %arg7[%c0_22, %c0_23, %c1_24, %c0_25] : memref<1x1x2x128xf32, #tpu.memory_space<vmem>>, vector<1x1x1x128xf32>
    tpu.vector_store %arg7[%c0_22, %c0_23, %c1_24, %c0_25], %24 {strides = array<i32>} : memref<1x1x2x128xf32, #tpu.memory_space<vmem>>, vector<1x1x1x128xf32>,
    %26 = arith.truncf %7 : vector<8x128xf32> to vector<8x128xbf16>
    %c0_26 = arith.constant 0 : index
    %c0_27 = arith.constant 0 : index
    %c0_28 = arith.constant 0 : index
    %c0_29 = arith.constant 0 : index
    %27 = vector.load %arg6[%c0_26, %c0_27, %c0_28, %c0_29] : memref<1x1x8x128xbf16, #tpu.memory_space<vmem>>, vector<1x1x8x128xbf16>
    %28 = vector.shape_cast %27 : vector<1x1x8x128xbf16> to vector<8x128xbf16>
    %29 = vector.shape_cast %26 : vector<8x128xbf16> to vector<1x1x8x128xbf16>
    tpu.vector_store %arg6[%c0_26, %c0_27, %c0_28, %c0_29], %29 {strides = array<i32>} : memref<1x1x8x128xbf16, #tpu.memory_space<vmem>>, vector<1x1x8x128xbf16>,
    return
  }
  func.func @transform_0(%arg0: i32, %arg1: i32, %arg2: i32) -> (i32, i32, i32, i32) {
    %c0_i32 = arith.constant 0 : i32
    %c0_i32_0 = arith.constant 0 : i32
    return %arg0, %arg1, %arg2, %c0_i32 : i32, i32, i32, i32
  }
  func.func @transform_1(%arg0: i32, %arg1: i32, %arg2: i32) -> (i32, i32, i32) {
    %c0_i32 = arith.constant 0 : i32
    %c0_i32_0 = arith.constant 0 : i32
    %c0_i32_1 = arith.constant 0 : i32
    return %arg0, %c0_i32, %c0_i32_0 : i32, i32, i32
  }
  func.func @transform_2(%arg0: i32, %arg1: i32, %arg2: i32) -> (i32, i32) {
    %c0_i32 = arith.constant 0 : i32
    %c0_i32_0 = arith.constant 0 : i32
    %c0_i32_1 = arith.constant 0 : i32
    return %c0_i32, %c0_i32_0 : i32, i32
  }
  func.func @transform_3(%arg0: i32, %arg1: i32, %arg2: i32) -> (i32, i32, i32, i32) {
    %c0_i32 = arith.constant 0 : i32
    %c0_i32_0 = arith.constant 0 : i32
    return %arg0, %arg1, %arg2, %c0_i32 : i32, i32, i32, i32
  }
  func.func @transform_4(%arg0: i32, %arg1: i32, %arg2: i32) -> (i32, i32, i32, i32) {
    %c0_i32 = arith.constant 0 : i32
    %c0_i32_0 = arith.constant 0 : i32
    %c0_i32_1 = arith.constant 0 : i32
    return %arg0, %arg1, %c0_i32, %c0_i32_0 : i32, i32, i32, i32
  }
}

module attributes {stable_mosaic.version = 11 : i64} {
  func.func @_gemm_kernel(%arg0: i32, %arg1: i32, %arg2: i32, %arg3: memref<1x1x64x64xbf16, #tpu.memory_space<vmem>>, %arg4: memref<1x64x128xbf16, #tpu.memory_space<vmem>>, %arg5: memref<1x128xf32, #tpu.memory_space<vmem>>, %arg6: memref<1x1x64x128xbf16, #tpu.memory_space<vmem>>) attributes {dimension_semantics = [#tpu.dimension_semantics<parallel>, #tpu.dimension_semantics<parallel>, #tpu.dimension_semantics<parallel>], iteration_bounds = array<i64: 8, 2, 1>, scalar_prefetch = 0 : i64, scratch_operands = 0 : i64, tpu.core_type = #tpu.core_type<tc>, window_params = [{transform_indices = @transform_0, window_bounds = array<i64: 1, 1, 64, 64>}, {transform_indices = @transform_1, window_bounds = array<i64: 1, 64, 128>}, {pipeline_mode = #tpu.pipeline_mode<synchronous>, transform_indices = @transform_2, window_bounds = array<i64: 1, 128>}, {transform_indices = @transform_3, window_bounds = array<i64: 1, 1, 64, 128>}]} {
    %c0 = arith.constant 0 : index
    %c0_0 = arith.constant 0 : index
    %c0_1 = arith.constant 0 : index
    %c0_2 = arith.constant 0 : index
    %0 = vector.load %arg3[%c0, %c0_0, %c0_1, %c0_2] : memref<1x1x64x64xbf16, #tpu.memory_space<vmem>>, vector<1x1x64x64xbf16>
    %1 = vector.shape_cast %0 : vector<1x1x64x64xbf16> to vector<64x64xbf16>
    %c0_3 = arith.constant 0 : index
    %c0_4 = arith.constant 0 : index
    %c0_5 = arith.constant 0 : index
    %2 = vector.load %arg4[%c0_3, %c0_4, %c0_5] : memref<1x64x128xbf16, #tpu.memory_space<vmem>>, vector<1x64x128xbf16>
    %3 = vector.shape_cast %2 : vector<1x64x128xbf16> to vector<64x128xbf16>
    %c0_6 = arith.constant 0 : index
    %c0_7 = arith.constant 0 : index
    %4 = vector.load %arg5[%c0_6, %c0_7] : memref<1x128xf32, #tpu.memory_space<vmem>>, vector<1x128xf32>
    %cst = arith.constant dense<0.000000e+00> : vector<64x128xf32>
    %5 = tpu.matmul %1, %3, %cst {dimension_numbers = #tpu.dot_dimension_numbers<[1], [0], [0], [1], [0, 0, 1, 1], [], []>} : vector<64x64xbf16>, vector<64x128xbf16>, vector<64x128xf32> -> vector<64x128xf32>
    %6 = vector.broadcast %4 : vector<1x128xf32> to vector<64x128xf32>
    %7 = arith.addf %5, %6 : vector<64x128xf32>
    %8 = math.tanh %7 : vector<64x128xf32>
    %9 = arith.truncf %8 : vector<64x128xf32> to vector<64x128xbf16>
    %c0_8 = arith.constant 0 : index
    %c0_9 = arith.constant 0 : index
    %c0_10 = arith.constant 0 : index
    %c0_11 = arith.constant 0 : index
    %10 = vector.load %arg6[%c0_8, %c0_9, %c0_10, %c0_11] : memref<1x1x64x128xbf16, #tpu.memory_space<vmem>>, vector<1x1x64x128xbf16>
    %11 = vector.shape_cast %10 : vector<1x1x64x128xbf16> to vector<64x128xbf16>
    %12 = vector.shape_cast %9 : vector<64x128xbf16> to vector<1x1x64x128xbf16>
    tpu.vector_store %arg6[%c0_8, %c0_9, %c0_10, %c0_11], %12 {strides = array<i32>} : memref<1x1x64x128xbf16, #tpu.memory_space<vmem>>, vector<1x1x64x128xbf16>,
    return
  }
  func.func @transform_0(%arg0: i32, %arg1: i32, %arg2: i32) -> (i32, i32, i32, i32) {
    %c0_i32 = arith.constant 0 : i32
    %c0_i32_0 = arith.constant 0 : i32
    return %arg0, %arg1, %arg2, %c0_i32 : i32, i32, i32, i32
  }
  func.func @transform_1(%arg0: i32, %arg1: i32, %arg2: i32) -> (i32, i32, i32) {
    %c0_i32 = arith.constant 0 : i32
    %c0_i32_0 = arith.constant 0 : i32
    %c0_i32_1 = arith.constant 0 : i32
    return %arg0, %c0_i32, %c0_i32_0 : i32, i32, i32
  }
  func.func @transform_2(%arg0: i32, %arg1: i32, %arg2: i32) -> (i32, i32) {
    %c0_i32 = arith.constant 0 : i32
    %c0_i32_0 = arith.constant 0 : i32
    %c0_i32_1 = arith.constant 0 : i32
    return %c0_i32, %c0_i32_0 : i32, i32
  }
  func.func @transform_3(%arg0: i32, %arg1: i32, %arg2: i32) -> (i32, i32, i32, i32) {
    %c0_i32 = arith.constant 0 : i32
    %c0_i32_0 = arith.constant 0 : i32
    return %arg0, %arg1, %arg2, %c0_i32 : i32, i32, i32, i32
  }
}

</mosaic_0001>

<llo_original>
// kernel: _lambda_.9
$region0: #{_lambda_.9}
  #allocation0 [shape = 'u32[]', space=smem, size = 0x4, offset = 0x4, fixed_abs, tag = 'smem constant byte address 0x4 - core index']
  #allocation1 [shape = 'u32[72,128]{1,0:T(1,128)}', space=vmem, size = 0x9000, scoped, tag = 'internal scratch']
  %s0 = inlined_call_operand.vmem [shape: bf16[1,2,64,64], index: 0, kind: input, shape index: {}]
  %s1 = inlined_call_operand.vmem [shape: bf16[1,64,128], index: 1, kind: input, shape index: {}]
  %s2 = inlined_call_operand.vmem [shape: f32[1,128], index: 2, kind: input, shape index: {}]
  %s3 = inlined_call_operand.vmem [shape: bf16[1,2,64,128], index: 3, kind: output, shape index: {}]
  %s4 = sld [smem:[#allocation0]]
  $region45: #{_lambda_.9} parent=0
    _
  %s6 = ssub.s32 1, %s4
  %s7 = scalar_select 0, %s6, %s4
  loop: start=0, step=1, limit=4
  $region2: #{_lambda_.9} parent=0 // loop_pre_header
    _
  $region3: #{_lambda_.9} parent=0 // loop_header
    %s9 = sphi 0, %s13
    %p10 = scmp.ge.s32.totalorder %s9, 4
    %s16 = sphi 0, %s35
    %s17 = sphi 0, %s31
    %s18 = sphi 0, %s27
    %s19 = sphi 0, %s16
    %s20 = sphi 0, %s17
    %s21 = sphi 0, %s18
    %s22 = sphi 0, %s19
    %s23 = sphi 0, %s20
    %s24 = sphi 0, %s21
    %s42 = sphi 0, %s44
    %s45 = sphi 0, %s42
    %s46 = sphi 0, %s45
    %s62 = sphi 0, %s46
    %s68 = sphi 0, %s70
    %s71 = sphi 0, %s68
    %s72 = sphi 0, %s71
    %s88 = sphi 0, %s72
    %s92 = sphi 0, %s92
    %s94 = sphi 0, %s92
    %s95 = sphi 0, %s94
    %s109 = sphi 0, %s95
    %s119 = sphi 0, %s121
    %s122 = sphi 0, %s119
    %s123 = sphi 0, %s122
    %s139 = sphi 0, %s123
  $region4: #{_lambda_.9} parent=0 // loop_header_branch
    %12 = sbr.rel (%p10) target = $region8
  $region5: #{_lambda_.9} parent=0 // loop_body
    %s14 = ssub.s32 %s9, 1
    %s15 = ssub.s32 %s9, 2
    %s25 = sadd.s32 1, %s18
    %p26 = scmp.ge.s32.totalorder %s25, 1
    %s27 = scalar_select %p26, 0, %s25
    %s28 = sadd.s32 1, %s17
    %s29 = scalar_select %p26, %s28, %s17
    %p30 = scmp.ge.s32.totalorder %s29, 2
    %s31 = scalar_select %p30, 0, %s29
    %s32 = sadd.s32 1, %s16
    %s33 = scalar_select %p30, %s32, %s16
    %p34 = scmp.ge.s32.totalorder %s33, 1
    %s35 = scalar_select %p34, 0, %s33
    %s36 = ssub.s32 %s16, %s35
    %s37 = ssub.s32 %s17, %s31
    %s38 = sor.u32 %s36, %s37
    %s39 = ssub.s32 %s18, %s27
    %s40 = sor.u32 %s38, %s39
    %p41 = scmp.eq.s32.totalorder %s40, 0
    %s43 = sadd.s32 %s42, 1
    %s44 = scalar_select %p41, %s42, %s43
    %p47 = pneg %p41
    %p48 = scmp.eq.s32.totalorder %s9, 1
    %p49 = por %p47, %p48
    %p50 = scmp.ne.s32.totalorder %s42, %s45
    %p51 = scmp.eq.s32.totalorder %s9, 0
    %p52 = por %p50, %p51
    %p53 = scmp.ne.s32.totalorder %s42, %s45
    %p54 = scmp.eq.s32.totalorder %s14, 1
    %p55 = por %p53, %p54
    %p56 = scmp.ne.s32.totalorder %s45, %s46
    %p57 = scmp.eq.s32.totalorder %s14, 0
    %p58 = por %p56, %p57
    %p59 = scmp.ne.s32.totalorder %s45, %s46
    %p60 = scmp.eq.s32.totalorder %s15, 1
    %p61 = por %p59, %p60
    %p63 = scmp.ne.s32.totalorder %s46, %s62
    %p64 = scmp.eq.s32.totalorder %s15, 0
    %p65 = por %p63, %p64
    %s66 = ssub.s32 %s16, %s35
    %p67 = scmp.eq.s32.totalorder %s66, 0
    %s69 = sadd.s32 %s68, 1
    %s70 = scalar_select %p67, %s68, %s69
    %p73 = pneg %p67
    %p74 = scmp.eq.s32.totalorder %s9, 1
    %p75 = por %p73, %p74
    %p76 = scmp.ne.s32.totalorder %s68, %s71
    %p77 = scmp.eq.s32.totalorder %s9, 0
    %p78 = por %p76, %p77
    %p79 = scmp.ne.s32.totalorder %s68, %s71
    %p80 = scmp.eq.s32.totalorder %s14, 1
    %p81 = por %p79, %p80
    %p82 = scmp.ne.s32.totalorder %s71, %s72
    %p83 = scmp.eq.s32.totalorder %s14, 0
    %p84 = por %p82, %p83
    %p85 = scmp.ne.s32.totalorder %s71, %s72
    %p86 = scmp.eq.s32.totalorder %s15, 1
    %p87 = por %p85, %p86
    %p89 = scmp.ne.s32.totalorder %s72, %s88
    %p90 = scmp.eq.s32.totalorder %s15, 0
    %p91 = por %p89, %p90
    %s93 = sadd.s32 %s92, 1
    %p96 = scmp.eq.s32.totalorder %s9, 1
    %p97 = scmp.ne.s32.totalorder %s92, %s94
    %p98 = scmp.eq.s32.totalorder %s9, 0
    %p99 = por %p97, %p98
    %p100 = scmp.ne.s32.totalorder %s92, %s94
    %p101 = scmp.eq.s32.totalorder %s14, 1
    %p102 = por %p100, %p101
    %p103 = scmp.ne.s32.totalorder %s94, %s95
    %p104 = scmp.eq.s32.totalorder %s14, 0
    %p105 = por %p103, %p104
    %p106 = scmp.ne.s32.totalorder %s94, %s95
    %p107 = scmp.eq.s32.totalorder %s15, 1
    %p108 = por %p106, %p107
    %p110 = scmp.ne.s32.totalorder %s95, %s109
    %p111 = scmp.eq.s32.totalorder %s15, 0
    %p112 = por %p110, %p111
    %s113 = ssub.s32 %s16, %s35
    %s114 = ssub.s32 %s17, %s31
    %s115 = sor.u32 %s113, %s114
    %s116 = ssub.s32 %s18, %s27
    %s117 = sor.u32 %s115, %s116
    %p118 = scmp.eq.s32.totalorder %s117, 0
    %s120 = sadd.s32 %s119, 1
    %s121 = scalar_select %p118, %s119, %s120
    %p124 = pneg %p118
    %p125 = scmp.eq.s32.totalorder %s9, 1
    %p126 = por %p124, %p125
    %p127 = scmp.ne.s32.totalorder %s119, %s122
    %p128 = scmp.eq.s32.totalorder %s9, 0
    %p129 = por %p127, %p128
    %p130 = scmp.ne.s32.totalorder %s119, %s122
    %p131 = scmp.eq.s32.totalorder %s14, 1
    %p132 = por %p130, %p131
    %p133 = scmp.ne.s32.totalorder %s122, %s123
    %p134 = scmp.eq.s32.totalorder %s14, 0
    %p135 = por %p133, %p134
    %p136 = scmp.ne.s32.totalorder %s122, %s123
    %p137 = scmp.eq.s32.totalorder %s15, 1
    %p138 = por %p136, %p137
    %p140 = scmp.ne.s32.totalorder %s123, %s139
    %p141 = scmp.eq.s32.totalorder %s15, 0
    %p142 = por %p140, %p141
    %p143 = scmp.le.s32.totalorder 1, %s9
    %p144 = scmp.lt.s32.totalorder %s9, 3
    %p145 = pnand %p143, %p144
    %p146 = pneg %p145
    // Predicated region
    $region9: #{_lambda_.9} parent=5 // pred_check
      _
    $region10: #{_lambda_.9} parent=5 // pred_check_branch
      %148 = sbr.rel (%p145) target = $region12
    $region11: #{_lambda_.9} parent=5 // pred_region
      %s149 = ssub.s32 %s9, 1
      // Predicated region
      $region13: #{_lambda_.9} parent=11 // pred_check
        %p150 = pneg %p84
      $region14: #{_lambda_.9} parent=11 // pred_check_branch
        %152 = sbr.rel (%p150) target = $region16
      $region15: #{_lambda_.9} parent=11 // pred_region
        %p153 = scmp.lt.s32.totalorder %s19, 0
        %s154 = scalar_select %p153, %s19, 0
        %s155 = smul.addr %s154, 8
        %s156 = smul.addr %s155, 4
        %s157 = scalar_lea.vmem %s1, %s156
      $region16: #{_lambda_.9} parent=11 // pred_fallthru
        _
      // Predicated region
      $region17: #{_lambda_.9} parent=11 // pred_check
        %p158 = pneg %p105
      $region18: #{_lambda_.9} parent=11 // pred_check_branch
        %160 = sbr.rel (%p158) target = $region20
      $region19: #{_lambda_.9} parent=11 // pred_region
        _
      $region20: #{_lambda_.9} parent=11 // pred_fallthru
        _
    $region12: #{_lambda_.9} parent=5 // pred_fallthru
      _
    %p161 = scmp.lt.s32.totalorder %s9, 2
    // Predicated region
    $region21: #{_lambda_.9} parent=5 // pred_check
      %p162 = pneg %p161
    $region22: #{_lambda_.9} parent=5 // pred_check_branch
      %164 = sbr.rel (%p162) target = $region24
    $region23: #{_lambda_.9} parent=5 // pred_region
      // Predicated region
      $region25: #{_lambda_.9} parent=23 // pred_check
        %p165 = pneg %p52
      $region26: #{_lambda_.9} parent=23 // pred_check_branch
        %167 = sbr.rel (%p165) target = $region28
      $region27: #{_lambda_.9} parent=23 // pred_region
        %s168 = smul.u32 8, %s18
        %p169 = scmp.lt.s32.totalorder %s16, 0
        %s170 = scalar_select %p169, %s16, 0
        %p171 = scmp.lt.s32.totalorder %s17, 1
        %s172 = scalar_select %p171, %s17, 1
        %p173 = scmp.lt.s32.totalorder %s168, 7
        %s174 = scalar_select %p173, %s168, 7
        %s175 = smul.addr %s172, 8
        %s176 = sadd.s32 %s174, %s175
        %s177 = smul.addr %s170, 16
        %s178 = sadd.s32 %s176, %s177
        %s179 = smul.addr %s178, 4
        %s180 = scalar_lea.vmem %s0, %s179
        %s181 = smul.u32 8, %s18
      $region28: #{_lambda_.9} parent=23 // pred_fallthru
        _
    $region24: #{_lambda_.9} parent=5 // pred_fallthru
      _
    %p182 = scmp.le.s32.totalorder 1, %s9
    %p183 = scmp.lt.s32.totalorder %s9, 3
    %p184 = pnand %p182, %p183
    %p185 = pneg %p184
    // Predicated region
    $region29: #{_lambda_.9} parent=5 // pred_check
      _
    $region30: #{_lambda_.9} parent=5 // pred_check_branch
      %187 = sbr.rel (%p184) target = $region32
    $region31: #{_lambda_.9} parent=5 // pred_region
      %s188 = ssub.s32 %s9, 1
      %s189 = smul.u32 8, %s21
      %p190 = scmp.lt.s32.totalorder %s19, 0
      %s191 = scalar_select %p190, %s19, 0
      %p192 = scmp.lt.s32.totalorder %s20, 1
      %s193 = scalar_select %p192, %s20, 1
      %p194 = scmp.lt.s32.totalorder %s189, 7
      %s195 = scalar_select %p194, %s189, 7
      %s196 = smul.addr %s193, 8
      %s197 = sadd.s32 %s195, %s196
      %s198 = smul.addr %s191, 16
      %s199 = sadd.s32 %s197, %s198
      %s200 = smul.addr %s199, 4
      %s201 = scalar_lea.vmem %s0, %s200
      %p202 = pneg %p58
      %p203 = pneg %p55
      %p204 = scmp.lt.s32.totalorder %s19, 0
      %s205 = scalar_select %p204, %s19, 0
      %s206 = smul.addr %s205, 8
      %s207 = smul.addr %s206, 4
      %s208 = scalar_lea.vmem %s1, %s207
      %p209 = pneg %p84
      %p210 = pneg %p81
      %p211 = pneg %p105
      %p212 = pneg %p102
      %p213 = pneg %p135
      %p214 = pneg %p132
      %s215 = smul.u32 8, %s21
      %p216 = scmp.lt.s32.totalorder %s19, 0
      %s217 = scalar_select %p216, %s19, 0
      %p218 = scmp.lt.s32.totalorder %s20, 1
      %s219 = scalar_select %p218, %s20, 1
      %p220 = scmp.lt.s32.totalorder %s215, 7
      %s221 = scalar_select %p220, %s215, 7
      %s222 = smul.addr %s219, 8
      %s223 = sadd.s32 %s221, %s222
      %s224 = smul.addr %s217, 16
      %s225 = sadd.s32 %s223, %s224
      %s226 = smul.addr %s225, 4
      %s227 = scalar_lea.vmem %s3, %s226
      %s228 = smul.u32 8, %s21
      %p229 = scmp.lt.s32.totalorder %s19, 0
      %s230 = scalar_select %p229, %s19, 0
      %p231 = scmp.lt.s32.totalorder %s20, 1
      %s232 = scalar_select %p231, %s20, 1
      %p233 = scmp.lt.s32.totalorder %s228, 7
      %s234 = scalar_select %p233, %s228, 7
      %s235 = smul.addr %s232, 8
      %s236 = sadd.s32 %s234, %s235
      %s237 = smul.addr %s230, 16
      %s238 = sadd.s32 %s236, %s237
      %s239 = smul.addr %s238, 4
      %s240 = scalar_lea.vmem %s0, %s239
      %s241 = smul.u32 8, %s21
      %p242 = scmp.lt.s32.totalorder %s19, 0
      %s243 = scalar_select %p242, %s19, 0
      %s244 = smul.addr %s243, 8
      %s245 = smul.addr %s244, 4
      %s246 = scalar_lea.vmem %s1, %s245
      %s247 = smul.u32 8, %s21
      %p248 = scmp.lt.s32.totalorder %s19, 0
      %s249 = scalar_select %p248, %s19, 0
      %p250 = scmp.lt.s32.totalorder %s20, 1
      %s251 = scalar_select %p250, %s20, 1
      %p252 = scmp.lt.s32.totalorder %s247, 7
      %s253 = scalar_select %p252, %s247, 7
      %s254 = smul.addr %s251, 8
      %s255 = sadd.s32 %s253, %s254
      %s256 = smul.addr %s249, 16
      %s257 = sadd.s32 %s255, %s256
      %s258 = smul.addr %s257, 4
      %s259 = scalar_lea.vmem %s3, %s258
      %s260 = smul.u32 8, %s21
      %v262 = vld [vmem:[%s240] sm:$0xf]
      %v263 = vld [vmem:[%s240 + $0x4] sm:$0xf]
      %v264 = vld [vmem:[%s240 + $0x8] sm:$0xf]
      %v265 = vld [vmem:[%s240 + $0xc] sm:$0xf]
      %v266 = vld [vmem:[%s240 + $0x10] sm:$0xf]
      %v267 = vld [vmem:[%s240 + $0x14] sm:$0xf]
      %v268 = vld [vmem:[%s240 + $0x18] sm:$0xf]
      %v269 = vld [vmem:[%s240 + $0x1c] sm:$0xf]
      %v270 = vld [vmem:[%s246] sm:$0xf]
      %v271 = vld [vmem:[%s246 + $0x4] sm:$0xf]
      %v272 = vld [vmem:[%s246 + $0x8] sm:$0xf]
      %v273 = vld [vmem:[%s246 + $0xc] sm:$0xf]
      %v274 = vld [vmem:[%s246 + $0x10] sm:$0xf]
      %v275 = vld [vmem:[%s246 + $0x14] sm:$0xf]
      %v276 = vld [vmem:[%s246 + $0x18] sm:$0xf]
      %v277 = vld [vmem:[%s246 + $0x1c] sm:$0xf]
      %v278 = vld [vmem:[%s2] sm:$0x1]
      %v280 = vperm.slane %v278, 0
      %v290 = vunpack.c.l.b16 %v262
      %v291 = vunpack.c.l.b16 %v263
      %v292 = vunpack.c.l.b16 %v264
      %v293 = vunpack.c.l.b16 %v265
      %v294 = vunpack.c.l.b16 %v266
      %v295 = vunpack.c.l.b16 %v267
      %v296 = vunpack.c.l.b16 %v268
      %v297 = vunpack.c.l.b16 %v269
      %v298 = vpack.c.b16 %v291, %v290
      %v299 = vpack.c.b16 %v293, %v292
      %v300 = vpack.c.b16 %v295, %v294
      %v301 = vpack.c.b16 %v297, %v296
      %v310 = vunpack.c.l.b16 %v270
      %v311 = vunpack.c.l.b16 %v271
      %v312 = vunpack.c.l.b16 %v272
      %v313 = vunpack.c.l.b16 %v273
      %v314 = vunpack.c.l.b16 %v274
      %v315 = vunpack.c.l.b16 %v275
      %v316 = vunpack.c.l.b16 %v276
      %v317 = vunpack.c.l.b16 %v277
      %v318 = vpack.c.b16 %v311, %v310
      %v319 = vpack.c.b16 %v313, %v312
      %v320 = vpack.c.b16 %v315, %v314
      %v321 = vpack.c.b16 %v317, %v316
      %vm326 = vcmask 523264
      %v328 = vsel %vm326, %v298, 0
      %v331 = vsel %vm326, %v299, 0
      %v334 = vsel %vm326, %v300, 0
      %v337 = vsel %vm326, %v301, 0
      %339 = vmatpush.bf16.msra.mxu0 0
      %340 = vmatpush.bf16.msra.mxu0 0
      %341 = vmatpush.bf16.msra.mxu0 0
      %342 = vmatpush.bf16.msra.mxu0 0
      %343 = vmatpush.bf16.msra.mxu0 %v321
      %344 = vmatpush.bf16.msra.mxu0 %v320
      %345 = vmatpush.bf16.msra.mxu0 %v319
      %346 = vmatpush.bf16.msra.mxu0 %v318
      %347 = vmatmul.bf16.gmra.mxu0 %v328
      %v348 = vpop.f32.mrf.mxu0
      %v349 = vadd.f32 %v280, %v348
      %v350 = vpop.f32.mrf.mxu0
      %v351 = vadd.f32 %v280, %v350
      %352 = vmatmul.bf16.gmra.mxu0 %v331
      %v353 = vpop.f32.mrf.mxu0
      %v354 = vadd.f32 %v280, %v353
      %v355 = vpop.f32.mrf.mxu0
      %v356 = vadd.f32 %v280, %v355
      %357 = vmatmul.bf16.gmra.mxu0 %v334
      %v358 = vpop.f32.mrf.mxu0
      %v359 = vadd.f32 %v280, %v358
      %v360 = vpop.f32.mrf.mxu0
      %v361 = vadd.f32 %v280, %v360
      %362 = vmatmul.bf16.gmra.mxu0 %v337
      %v363 = vpop.f32.mrf.mxu0
      %v364 = vadd.f32 %v280, %v363
      %v365 = vpop.f32.mrf.mxu0
      %v366 = vadd.f32 %v280, %v365
      %367 = vdwg.mxu0
      %v368 = vpack.c.bf16 %v349, %v349
      %v369 = vpack.c.bf16 %v351, %v351
      %v370 = vpack.c.bf16 %v354, %v354
      %v371 = vpack.c.bf16 %v356, %v356
      %v372 = vpack.c.bf16 %v359, %v359
      %v373 = vpack.c.bf16 %v361, %v361
      %v374 = vpack.c.bf16 %v364, %v364
      %v375 = vpack.c.bf16 %v366, %v366
      %376 = vst [vmem:[%s259] sm:$0xf] %v368
      %377 = vst [vmem:[%s259 + $0x4] sm:$0xf] %v369
      %378 = vst [vmem:[%s259 + $0x8] sm:$0xf] %v370
      %379 = vst [vmem:[%s259 + $0xc] sm:$0xf] %v371
      %380 = vst [vmem:[%s259 + $0x10] sm:$0xf] %v372
      %381 = vst [vmem:[%s259 + $0x14] sm:$0xf] %v373
      %382 = vst [vmem:[%s259 + $0x18] sm:$0xf] %v374
      %383 = vst [vmem:[%s259 + $0x1c] sm:$0xf] %v375
      %s384 = smul.u32 8, %s21
      %p385 = scmp.lt.s32.totalorder %s19, 0
      %s386 = scalar_select %p385, %s19, 0
      %p387 = scmp.lt.s32.totalorder %s20, 1
      %s388 = scalar_select %p387, %s20, 1
      %p389 = scmp.lt.s32.totalorder %s384, 7
      %s390 = scalar_select %p389, %s384, 7
      %s391 = smul.addr %s388, 8
      %s392 = sadd.s32 %s390, %s391
      %s393 = smul.addr %s386, 16
      %s394 = sadd.s32 %s392, %s393
      %s395 = smul.addr %s394, 4
      %s396 = scalar_lea.vmem %s3, %s395
      // Predicated region
      $region33: #{_lambda_.9} parent=31 // pred_check
        %p397 = pneg %p132
      $region34: #{_lambda_.9} parent=31 // pred_check_branch
        %399 = sbr.rel (%p397) target = $region36
      $region35: #{_lambda_.9} parent=31 // pred_region
        %s400 = smul.u32 8, %s21
      $region36: #{_lambda_.9} parent=31 // pred_fallthru
        _
    $region32: #{_lambda_.9} parent=5 // pred_fallthru
      _
    %p401 = scmp.le.s32.totalorder 2, %s9
    // Predicated region
    $region37: #{_lambda_.9} parent=5 // pred_check
      %p402 = pneg %p401
    $region38: #{_lambda_.9} parent=5 // pred_check_branch
      %404 = sbr.rel (%p402) target = $region40
    $region39: #{_lambda_.9} parent=5 // pred_region
      %s405 = ssub.s32 %s9, 2
      // Predicated region
      $region41: #{_lambda_.9} parent=39 // pred_check
        %p406 = pneg %p138
      $region42: #{_lambda_.9} parent=39 // pred_check_branch
        %408 = sbr.rel (%p406) target = $region44
      $region43: #{_lambda_.9} parent=39 // pred_region
        %s409 = smul.u32 8, %s24
        %p410 = scmp.lt.s32.totalorder %s22, 0
        %s411 = scalar_select %p410, %s22, 0
        %p412 = scmp.lt.s32.totalorder %s23, 1
        %s413 = scalar_select %p412, %s23, 1
        %p414 = scmp.lt.s32.totalorder %s409, 7
        %s415 = scalar_select %p414, %s409, 7
        %s416 = smul.addr %s413, 8
        %s417 = sadd.s32 %s415, %s416
        %s418 = smul.addr %s411, 16
        %s419 = sadd.s32 %s417, %s418
        %s420 = smul.addr %s419, 4
        %s421 = scalar_lea.vmem %s3, %s420
      $region44: #{_lambda_.9} parent=39 // pred_fallthru
        _
    $region40: #{_lambda_.9} parent=5 // pred_fallthru
      _
  $region6: #{_lambda_.9} parent=0 // loop_footer
    %s13 = sadd.s32 1, %s9
  $region7: #{_lambda_.9} parent=0 // loop_footer_branch
    %8 = sbr.rel target = $region3
  $region8: #{_lambda_.9} parent=0 // loop_exit
    _

// kernel: _lambda_.10
$region0: #{_lambda_.10}
  #allocation0 [shape = 'u32[]', space=smem, size = 0x4, offset = 0x4, fixed_abs, tag = 'smem constant byte address 0x4 - core index']
  #allocation1 [shape = 'u32[72,128]{1,0:T(1,128)}', space=vmem, size = 0x9000, scoped, tag = 'internal scratch']
  %s0 = inlined_call_operand.vmem [shape: bf16[1,2,8,256], index: 0, kind: input, shape index: {}]
  %s1 = inlined_call_operand.vmem [shape: bf16[1,256,128], index: 1, kind: input, shape index: {}]
  %s2 = inlined_call_operand.vmem [shape: f32[1,128], index: 2, kind: input, shape index: {}]
  %s3 = inlined_call_operand.vmem [shape: bf16[1,2,8,128], index: 3, kind: output, shape index: {0}]
  %s4 = inlined_call_operand.vmem [shape: f32[1,2,2,128], index: 4, kind: output, shape index: {1}]
  %5 = xla_tuple %s3, %s4
  %s6 = sld [smem:[#allocation0]]
  $region57: #{_lambda_.10} parent=0
    _
  %s8 = ssub.s32 1, %s6
  %s9 = scalar_select 0, %s8, %s6
  loop: start=0, step=1, limit=4
  $region2: #{_lambda_.10} parent=0 // loop_pre_header
    _
  $region3: #{_lambda_.10} parent=0 // loop_header
    %s11 = sphi 0, %s15
    %p12 = scmp.ge.s32.totalorder %s11, 4
    %s18 = sphi 0, %s37
    %s19 = sphi 0, %s33
    %s20 = sphi 0, %s29
    %s21 = sphi 0, %s18
    %s22 = sphi 0, %s19
    %s23 = sphi 0, %s20
    %s24 = sphi 0, %s21
    %s25 = sphi 0, %s22
    %s26 = sphi 0, %s23
    %s44 = sphi 0, %s46
    %s47 = sphi 0, %s44
    %s48 = sphi 0, %s47
    %s64 = sphi 0, %s48
    %s70 = sphi 0, %s72
    %s73 = sphi 0, %s70
    %s74 = sphi 0, %s73
    %s90 = sphi 0, %s74
    %s94 = sphi 0, %s94
    %s96 = sphi 0, %s94
    %s97 = sphi 0, %s96
    %s111 = sphi 0, %s97
    %s121 = sphi 0, %s123
    %s124 = sphi 0, %s121
    %s125 = sphi 0, %s124
    %s141 = sphi 0, %s125
    %s149 = sphi 0, %s151
    %s152 = sphi 0, %s149
    %s153 = sphi 0, %s152
    %s169 = sphi 0, %s153
  $region4: #{_lambda_.10} parent=0 // loop_header_branch
    %14 = sbr.rel (%p12) target = $region8
  $region5: #{_lambda_.10} parent=0 // loop_body
    %s16 = ssub.s32 %s11, 1
    %s17 = ssub.s32 %s11, 2
    %s27 = sadd.s32 1, %s20
    %p28 = scmp.ge.s32.totalorder %s27, 1
    %s29 = scalar_select %p28, 0, %s27
    %s30 = sadd.s32 1, %s19
    %s31 = scalar_select %p28, %s30, %s19
    %p32 = scmp.ge.s32.totalorder %s31, 2
    %s33 = scalar_select %p32, 0, %s31
    %s34 = sadd.s32 1, %s18
    %s35 = scalar_select %p32, %s34, %s18
    %p36 = scmp.ge.s32.totalorder %s35, 1
    %s37 = scalar_select %p36, 0, %s35
    %s38 = ssub.s32 %s18, %s37
    %s39 = ssub.s32 %s19, %s33
    %s40 = sor.u32 %s38, %s39
    %s41 = ssub.s32 %s20, %s29
    %s42 = sor.u32 %s40, %s41
    %p43 = scmp.eq.s32.totalorder %s42, 0
    %s45 = sadd.s32 %s44, 1
    %s46 = scalar_select %p43, %s44, %s45
    %p49 = pneg %p43
    %p50 = scmp.eq.s32.totalorder %s11, 1
    %p51 = por %p49, %p50
    %p52 = scmp.ne.s32.totalorder %s44, %s47
    %p53 = scmp.eq.s32.totalorder %s11, 0
    %p54 = por %p52, %p53
    %p55 = scmp.ne.s32.totalorder %s44, %s47
    %p56 = scmp.eq.s32.totalorder %s16, 1
    %p57 = por %p55, %p56
    %p58 = scmp.ne.s32.totalorder %s47, %s48
    %p59 = scmp.eq.s32.totalorder %s16, 0
    %p60 = por %p58, %p59
    %p61 = scmp.ne.s32.totalorder %s47, %s48
    %p62 = scmp.eq.s32.totalorder %s17, 1
    %p63 = por %p61, %p62
    %p65 = scmp.ne.s32.totalorder %s48, %s64
    %p66 = scmp.eq.s32.totalorder %s17, 0
    %p67 = por %p65, %p66
    %s68 = ssub.s32 %s18, %s37
    %p69 = scmp.eq.s32.totalorder %s68, 0
    %s71 = sadd.s32 %s70, 1
    %s72 = scalar_select %p69, %s70, %s71
    %p75 = pneg %p69
    %p76 = scmp.eq.s32.totalorder %s11, 1
    %p77 = por %p75, %p76
    %p78 = scmp.ne.s32.totalorder %s70, %s73
    %p79 = scmp.eq.s32.totalorder %s11, 0
    %p80 = por %p78, %p79
    %p81 = scmp.ne.s32.totalorder %s70, %s73
    %p82 = scmp.eq.s32.totalorder %s16, 1
    %p83 = por %p81, %p82
    %p84 = scmp.ne.s32.totalorder %s73, %s74
    %p85 = scmp.eq.s32.totalorder %s16, 0
    %p86 = por %p84, %p85
    %p87 = scmp.ne.s32.totalorder %s73, %s74
    %p88 = scmp.eq.s32.totalorder %s17, 1
    %p89 = por %p87, %p88
    %p91 = scmp.ne.s32.totalorder %s74, %s90
    %p92 = scmp.eq.s32.totalorder %s17, 0
    %p93 = por %p91, %p92
    %s95 = sadd.s32 %s94, 1
    %p98 = scmp.eq.s32.totalorder %s11, 1
    %p99 = scmp.ne.s32.totalorder %s94, %s96
    %p100 = scmp.eq.s32.totalorder %s11, 0
    %p101 = por %p99, %p100
    %p102 = scmp.ne.s32.totalorder %s94, %s96
    %p103 = scmp.eq.s32.totalorder %s16, 1
    %p104 = por %p102, %p103
    %p105 = scmp.ne.s32.totalorder %s96, %s97
    %p106 = scmp.eq.s32.totalorder %s16, 0
    %p107 = por %p105, %p106
    %p108 = scmp.ne.s32.totalorder %s96, %s97
    %p109 = scmp.eq.s32.totalorder %s17, 1
    %p110 = por %p108, %p109
    %p112 = scmp.ne.s32.totalorder %s97, %s111
    %p113 = scmp.eq.s32.totalorder %s17, 0
    %p114 = por %p112, %p113
    %s115 = ssub.s32 %s18, %s37
    %s116 = ssub.s32 %s19, %s33
    %s117 = sor.u32 %s115, %s116
    %s118 = ssub.s32 %s20, %s29
    %s119 = sor.u32 %s117, %s118
    %p120 = scmp.eq.s32.totalorder %s119, 0
    %s122 = sadd.s32 %s121, 1
    %s123 = scalar_select %p120, %s121, %s122
    %p126 = pneg %p120
    %p127 = scmp.eq.s32.totalorder %s11, 1
    %p128 = por %p126, %p127
    %p129 = scmp.ne.s32.totalorder %s121, %s124
    %p130 = scmp.eq.s32.totalorder %s11, 0
    %p131 = por %p129, %p130
    %p132 = scmp.ne.s32.totalorder %s121, %s124
    %p133 = scmp.eq.s32.totalorder %s16, 1
    %p134 = por %p132, %p133
    %p135 = scmp.ne.s32.totalorder %s124, %s125
    %p136 = scmp.eq.s32.totalorder %s16, 0
    %p137 = por %p135, %p136
    %p138 = scmp.ne.s32.totalorder %s124, %s125
    %p139 = scmp.eq.s32.totalorder %s17, 1
    %p140 = por %p138, %p139
    %p142 = scmp.ne.s32.totalorder %s125, %s141
    %p143 = scmp.eq.s32.totalorder %s17, 0
    %p144 = por %p142, %p143
    %s145 = ssub.s32 %s18, %s37
    %s146 = ssub.s32 %s19, %s33
    %s147 = sor.u32 %s145, %s146
    %p148 = scmp.eq.s32.totalorder %s147, 0
    %s150 = sadd.s32 %s149, 1
    %s151 = scalar_select %p148, %s149, %s150
    %p154 = pneg %p148
    %p155 = scmp.eq.s32.totalorder %s11, 1
    %p156 = por %p154, %p155
    %p157 = scmp.ne.s32.totalorder %s149, %s152
    %p158 = scmp.eq.s32.totalorder %s11, 0
    %p159 = por %p157, %p158
    %p160 = scmp.ne.s32.totalorder %s149, %s152
    %p161 = scmp.eq.s32.totalorder %s16, 1
    %p162 = por %p160, %p161
    %p163 = scmp.ne.s32.totalorder %s152, %s153
    %p164 = scmp.eq.s32.totalorder %s16, 0
    %p165 = por %p163, %p164
    %p166 = scmp.ne.s32.totalorder %s152, %s153
    %p167 = scmp.eq.s32.totalorder %s17, 1
    %p168 = por %p166, %p167
    %p170 = scmp.ne.s32.totalorder %s153, %s169
    %p171 = scmp.eq.s32.totalorder %s17, 0
    %p172 = por %p170, %p171
    %p173 = scmp.le.s32.totalorder 1, %s11
    %p174 = scmp.lt.s32.totalorder %s11, 3
    %p175 = pnand %p173, %p174
    %p176 = pneg %p175
    // Predicated region
    $region9: #{_lambda_.10} parent=5 // pred_check
      _
    $region10: #{_lambda_.10} parent=5 // pred_check_branch
      %178 = sbr.rel (%p175) target = $region12
    $region11: #{_lambda_.10} parent=5 // pred_region
      %s179 = ssub.s32 %s11, 1
      // Predicated region
      $region13: #{_lambda_.10} parent=11 // pred_check
        %p180 = pneg %p86
      $region14: #{_lambda_.10} parent=11 // pred_check_branch
        %182 = sbr.rel (%p180) target = $region16
      $region15: #{_lambda_.10} parent=11 // pred_region
        %p183 = scmp.lt.s32.totalorder %s21, 0
        %s184 = scalar_select %p183, %s21, 0
        %s185 = smul.addr %s184, 32
        %s186 = smul.addr %s185, 4
        %s187 = scalar_lea.vmem %s1, %s186
      $region16: #{_lambda_.10} parent=11 // pred_fallthru
        _
      // Predicated region
      $region17: #{_lambda_.10} parent=11 // pred_check
        %p188 = pneg %p107
      $region18: #{_lambda_.10} parent=11 // pred_check_branch
        %190 = sbr.rel (%p188) target = $region20
      $region19: #{_lambda_.10} parent=11 // pred_region
        _
      $region20: #{_lambda_.10} parent=11 // pred_fallthru
        _
    $region12: #{_lambda_.10} parent=5 // pred_fallthru
      _
    %p191 = scmp.lt.s32.totalorder %s11, 2
    // Predicated region
    $region21: #{_lambda_.10} parent=5 // pred_check
      %p192 = pneg %p191
    $region22: #{_lambda_.10} parent=5 // pred_check_branch
      %194 = sbr.rel (%p192) target = $region24
    $region23: #{_lambda_.10} parent=5 // pred_region
      // Predicated region
      $region25: #{_lambda_.10} parent=23 // pred_check
        %p195 = pneg %p54
      $region26: #{_lambda_.10} parent=23 // pred_check_branch
        %197 = sbr.rel (%p195) target = $region28
      $region27: #{_lambda_.10} parent=23 // pred_region
        %p198 = scmp.lt.s32.totalorder %s18, 0
        %s199 = scalar_select %p198, %s18, 0
        %p200 = scmp.lt.s32.totalorder %s19, 1
        %s201 = scalar_select %p200, %s19, 1
        %p202 = scmp.lt.s32.totalorder %s20, 0
        %s203 = scalar_select %p202, %s20, 0
        %s204 = smul.addr %s203, 2
        %s205 = smul.addr %s201, 2
        %s206 = sadd.s32 %s204, %s205
        %s207 = smul.addr %s199, 4
        %s208 = sadd.s32 %s206, %s207
        %s209 = smul.addr %s208, 4
        %s210 = scalar_lea.vmem %s0, %s209
      $region28: #{_lambda_.10} parent=23 // pred_fallthru
        _
    $region24: #{_lambda_.10} parent=5 // pred_fallthru
      _
    %p211 = scmp.le.s32.totalorder 1, %s11
    %p212 = scmp.lt.s32.totalorder %s11, 3
    %p213 = pnand %p211, %p212
    %p214 = pneg %p213
    // Predicated region
    $region29: #{_lambda_.10} parent=5 // pred_check
      _
    $region30: #{_lambda_.10} parent=5 // pred_check_branch
      %216 = sbr.rel (%p213) target = $region32
    $region31: #{_lambda_.10} parent=5 // pred_region
      %s217 = ssub.s32 %s11, 1
      %p218 = scmp.lt.s32.totalorder %s21, 0
      %s219 = scalar_select %p218, %s21, 0
      %p220 = scmp.lt.s32.totalorder %s22, 1
      %s221 = scalar_select %p220, %s22, 1
      %p222 = scmp.lt.s32.totalorder %s23, 0
      %s223 = scalar_select %p222, %s23, 0
      %s224 = smul.addr %s223, 2
      %s225 = smul.addr %s221, 2
      %s226 = sadd.s32 %s224, %s225
      %s227 = smul.addr %s219, 4
      %s228 = sadd.s32 %s226, %s227
      %s229 = smul.addr %s228, 4
      %s230 = scalar_lea.vmem %s0, %s229
      %p231 = pneg %p60
      %p232 = pneg %p57
      %p233 = scmp.lt.s32.totalorder %s21, 0
      %s234 = scalar_select %p233, %s21, 0
      %s235 = smul.addr %s234, 32
      %s236 = smul.addr %s235, 4
      %s237 = scalar_lea.vmem %s1, %s236
      %p238 = pneg %p86
      %p239 = pneg %p83
      %p240 = pneg %p107
      %p241 = pneg %p104
      %p242 = pneg %p137
      %p243 = pneg %p134
      %p244 = scmp.lt.s32.totalorder %s21, 0
      %s245 = scalar_select %p244, %s21, 0
      %p246 = scmp.lt.s32.totalorder %s22, 1
      %s247 = scalar_select %p246, %s22, 1
      %p248 = scmp.lt.s32.totalorder %s23, 0
      %s249 = scalar_select %p248, %s23, 0
      %s250 = sadd.s32 %s249, %s247
      %s251 = smul.addr %s245, 2
      %s252 = sadd.s32 %s250, %s251
      %s253 = smul.addr %s252, 4
      %s254 = scalar_lea.vmem %s3, %s253
      %p255 = pneg %p165
      %p256 = pneg %p162
      %p257 = scmp.lt.s32.totalorder %s21, 0
      %s258 = scalar_select %p257, %s21, 0
      %p259 = scmp.lt.s32.totalorder %s22, 1
      %s260 = scalar_select %p259, %s22, 1
      %s261 = smul.addr %s258, 2
      %s262 = sadd.s32 %s260, %s261
      %s263 = smul.addr %s262, 2
      %s264 = scalar_lea.vmem %s4, %s263
      %p265 = scmp.lt.s32.totalorder %s21, 0
      %s266 = scalar_select %p265, %s21, 0
      %p267 = scmp.lt.s32.totalorder %s22, 1
      %s268 = scalar_select %p267, %s22, 1
      %p269 = scmp.lt.s32.totalorder %s23, 0
      %s270 = scalar_select %p269, %s23, 0
      %s271 = smul.addr %s270, 2
      %s272 = smul.addr %s268, 2
      %s273 = sadd.s32 %s271, %s272
      %s274 = smul.addr %s266, 4
      %s275 = sadd.s32 %s273, %s274
      %s276 = smul.addr %s275, 4
      %s277 = scalar_lea.vmem %s0, %s276
      %p278 = scmp.lt.s32.totalorder %s21, 0
      %s279 = scalar_select %p278, %s21, 0
      %s280 = smul.addr %s279, 32
      %s281 = smul.addr %s280, 4
      %s282 = scalar_lea.vmem %s1, %s281
      %p283 = scmp.lt.s32.totalorder %s21, 0
      %s284 = scalar_select %p283, %s21, 0
      %p285 = scmp.lt.s32.totalorder %s22, 1
      %s286 = scalar_select %p285, %s22, 1
      %p287 = scmp.lt.s32.totalorder %s23, 0
      %s288 = scalar_select %p287, %s23, 0
      %s289 = sadd.s32 %s288, %s286
      %s290 = smul.addr %s284, 2
      %s291 = sadd.s32 %s289, %s290
      %s292 = smul.addr %s291, 4
      %s293 = scalar_lea.vmem %s3, %s292
      %p294 = scmp.lt.s32.totalorder %s21, 0
      %s295 = scalar_select %p294, %s21, 0
      %p296 = scmp.lt.s32.totalorder %s22, 1
      %s297 = scalar_select %p296, %s22, 1
      %s298 = smul.addr %s295, 2
      %s299 = sadd.s32 %s297, %s298
      %s300 = smul.addr %s299, 2
      %s301 = scalar_lea.vmem %s4, %s300
      %v302 = vld [vmem:[%s277] sm:$0xff]
      %v303 = vld [vmem:[%s282] sm:$0xf]
      %v304 = vld [vmem:[%s282 + $0x4] sm:$0xf]
      %v305 = vld [vmem:[%s282 + $0x8] sm:$0xf]
      %v306 = vld [vmem:[%s282 + $0xc] sm:$0xf]
      %v307 = vld [vmem:[%s282 + $0x10] sm:$0xf]
      %v308 = vld [vmem:[%s282 + $0x14] sm:$0xf]
      %v309 = vld [vmem:[%s282 + $0x18] sm:$0xf]
      %v310 = vld [vmem:[%s282 + $0x1c] sm:$0xf]
      %v311 = vld [vmem:[%s282 + $0x20] sm:$0xf]
      %v312 = vld [vmem:[%s282 + $0x24] sm:$0xf]
      %v313 = vld [vmem:[%s282 + $0x28] sm:$0xf]
      %v314 = vld [vmem:[%s282 + $0x2c] sm:$0xf]
      %v315 = vld [vmem:[%s282 + $0x30] sm:$0xf]
      %v316 = vld [vmem:[%s282 + $0x34] sm:$0xf]
      %v317 = vld [vmem:[%s282 + $0x38] sm:$0xf]
      %v318 = vld [vmem:[%s282 + $0x3c] sm:$0xf]
      %v319 = vld [vmem:[%s282 + $0x40] sm:$0xf]
      %v320 = vld [vmem:[%s282 + $0x44] sm:$0xf]
      %v321 = vld [vmem:[%s282 + $0x48] sm:$0xf]
      %v322 = vld [vmem:[%s282 + $0x4c] sm:$0xf]
      %v323 = vld [vmem:[%s282 + $0x50] sm:$0xf]
      %v324 = vld [vmem:[%s282 + $0x54] sm:$0xf]
      %v325 = vld [vmem:[%s282 + $0x58] sm:$0xf]
      %v326 = vld [vmem:[%s282 + $0x5c] sm:$0xf]
      %v327 = vld [vmem:[%s282 + $0x60] sm:$0xf]
      %v328 = vld [vmem:[%s282 + $0x64] sm:$0xf]
      %v329 = vld [vmem:[%s282 + $0x68] sm:$0xf]
      %v330 = vld [vmem:[%s282 + $0x6c] sm:$0xf]
      %v331 = vld [vmem:[%s282 + $0x70] sm:$0xf]
      %v332 = vld [vmem:[%s282 + $0x74] sm:$0xf]
      %v333 = vld [vmem:[%s282 + $0x78] sm:$0xf]
      %v334 = vld [vmem:[%s282 + $0x7c] sm:$0xf]
      %v335 = vld [vmem:[%s2] sm:$0x1]
      %v337 = vperm.slane %v335, 0
      %v340 = vunpack.c.l.b16 %v302
      %v341 = vunpack.c.h.b16 %v302
      %v342 = vpack.c.b16 %v340, %v340
      %v343 = vpack.c.b16 %v341, %v341
      %v378 = vunpack.c.l.b16 %v303
      %v379 = vunpack.c.l.b16 %v304
      %v380 = vunpack.c.l.b16 %v305
      %v381 = vunpack.c.l.b16 %v306
      %v382 = vunpack.c.l.b16 %v307
      %v383 = vunpack.c.l.b16 %v308
      %v384 = vunpack.c.l.b16 %v309
      %v385 = vunpack.c.l.b16 %v310
      %v386 = vunpack.c.l.b16 %v311
      %v387 = vunpack.c.l.b16 %v312
      %v388 = vunpack.c.l.b16 %v313
      %v389 = vunpack.c.l.b16 %v314
      %v390 = vunpack.c.l.b16 %v315
      %v391 = vunpack.c.l.b16 %v316
      %v392 = vunpack.c.l.b16 %v317
      %v393 = vunpack.c.l.b16 %v318
      %v394 = vunpack.c.l.b16 %v319
      %v395 = vunpack.c.l.b16 %v320
      %v396 = vunpack.c.l.b16 %v321
      %v397 = vunpack.c.l.b16 %v322
      %v398 = vunpack.c.l.b16 %v323
      %v399 = vunpack.c.l.b16 %v324
      %v400 = vunpack.c.l.b16 %v325
      %v401 = vunpack.c.l.b16 %v326
      %v402 = vunpack.c.l.b16 %v327
      %v403 = vunpack.c.l.b16 %v328
      %v404 = vunpack.c.l.b16 %v329
      %v405 = vunpack.c.l.b16 %v330
      %v406 = vunpack.c.l.b16 %v331
      %v407 = vunpack.c.l.b16 %v332
      %v408 = vunpack.c.l.b16 %v333
      %v409 = vunpack.c.l.b16 %v334
      %v410 = vpack.c.b16 %v379, %v378
      %v411 = vpack.c.b16 %v381, %v380
      %v412 = vpack.c.b16 %v383, %v382
      %v413 = vpack.c.b16 %v385, %v384
      %v414 = vpack.c.b16 %v387, %v386
      %v415 = vpack.c.b16 %v389, %v388
      %v416 = vpack.c.b16 %v391, %v390
      %v417 = vpack.c.b16 %v393, %v392
      %v418 = vpack.c.b16 %v395, %v394
      %v419 = vpack.c.b16 %v397, %v396
      %v420 = vpack.c.b16 %v399, %v398
      %v421 = vpack.c.b16 %v401, %v400
      %v422 = vpack.c.b16 %v403, %v402
      %v423 = vpack.c.b16 %v405, %v404
      %v424 = vpack.c.b16 %v407, %v406
      %v425 = vpack.c.b16 %v409, %v408
      %442 = vmatpush.bf16.msra.mxu0 %v417
      %443 = vmatpush.bf16.msra.mxu0 %v416
      %444 = vmatpush.bf16.msra.mxu0 %v415
      %445 = vmatpush.bf16.msra.mxu0 %v414
      %446 = vmatpush.bf16.msra.mxu0 %v413
      %447 = vmatpush.bf16.msra.mxu0 %v412
      %448 = vmatpush.bf16.msra.mxu0 %v411
      %449 = vmatpush.bf16.msra.mxu0 %v410
      %450 = vmatmul.bf16.gmra.mxu0 %v342
      %v451 = vpop.f32.mrf.mxu0
      %v452 = vadd.f32 %v337, %v451
      %v453 = vpop.f32.mrf.mxu0
      %454 = vdwg.mxu0
      %455 = vmatpush.bf16.msra.mxu0 %v425
      %456 = vmatpush.bf16.msra.mxu0 %v424
      %457 = vmatpush.bf16.msra.mxu0 %v423
      %458 = vmatpush.bf16.msra.mxu0 %v422
      %459 = vmatpush.bf16.msra.mxu0 %v421
      %460 = vmatpush.bf16.msra.mxu0 %v420
      %461 = vmatpush.bf16.msra.mxu0 %v419
      %462 = vmatpush.bf16.msra.mxu0 %v418
      %463 = vmatmul.bf16.gmra.mxu0 %v343
      %v464 = vpop.f32.mrf.mxu0
      %v465 = vadd.f32 %v452, %v464
      %v466 = vpop.f32.mrf.mxu0
      %467 = vdwg.mxu0
      %v468 = vsub.f32 %v465, %v337
      %p469 = scmp.eq.s32.totalorder %s23, 0
      // Predicated region
      $region33: #{_lambda_.10} parent=31 // pred_check
        %p470 = pneg %p469
      $region34: #{_lambda_.10} parent=31 // pred_check_branch
        %472 = sbr.rel (%p470) target = $region36
      $region35: #{_lambda_.10} parent=31 // pred_region
        %473 = vst [vmem:[%s301] sm:$0x3] 0.0
      $region36: #{_lambda_.10} parent=31 // pred_fallthru
        _
      %v474 = vrot.slane %v468, 4
      %v475 = vadd.f32 %v468, %v474
      %v476 = vrot.slane %v475, 2
      %v477 = vadd.f32 %v475, %v476
      %v478 = vrot.slane %v477, 1
      %v479 = vadd.f32 %v477, %v478
      %v480 = vmul.f32 %v468, %v468
      %v481 = vrot.slane %v480, 4
      %v482 = vadd.f32 %v480, %v481
      %v483 = vrot.slane %v482, 2
      %v484 = vadd.f32 %v482, %v483
      %v485 = vrot.slane %v484, 1
      %v486 = vadd.f32 %v484, %v485
      %v487 = vld [vmem:[%s301] sm:$0x1]
      %v488 = vadd.f32 %v487, %v479
      %489 = vst [vmem:[%s301] sm:$0x1] %v488
      %v490 = vld [vmem:[%s301 + $0x1] sm:$0x1]
      %v491 = vadd.f32 %v490, %v486
      %492 = vst [vmem:[%s301 + $0x1] sm:$0x1] %v491
      %v493 = vpack.c.bf16 %v465, %v465
      %494 = vst [vmem:[%s293] sm:$0xf] %v493
      %p495 = scmp.lt.s32.totalorder %s21, 0
      %s496 = scalar_select %p495, %s21, 0
      %p497 = scmp.lt.s32.totalorder %s22, 1
      %s498 = scalar_select %p497, %s22, 1
      %p499 = scmp.lt.s32.totalorder %s23, 0
      %s500 = scalar_select %p499, %s23, 0
      %s501 = sadd.s32 %s500, %s498
      %s502 = smul.addr %s496, 2
      %s503 = sadd.s32 %s501, %s502
      %s504 = smul.addr %s503, 4
      %s505 = scalar_lea.vmem %s3, %s504
      %p506 = scmp.lt.s32.totalorder %s21, 0
      %s507 = scalar_select %p506, %s21, 0
      %p508 = scmp.lt.s32.totalorder %s22, 1
      %s509 = scalar_select %p508, %s22, 1
      %s510 = smul.addr %s507, 2
      %s511 = sadd.s32 %s509, %s510
      %s512 = smul.addr %s511, 2
      %s513 = scalar_lea.vmem %s4, %s512
      // Predicated region
      $region37: #{_lambda_.10} parent=31 // pred_check
        %p514 = pneg %p134
      $region38: #{_lambda_.10} parent=31 // pred_check_branch
        %516 = sbr.rel (%p514) target = $region40
      $region39: #{_lambda_.10} parent=31 // pred_region
        _
      $region40: #{_lambda_.10} parent=31 // pred_fallthru
        _
      // Predicated region
      $region41: #{_lambda_.10} parent=31 // pred_check
        %p517 = pneg %p162
      $region42: #{_lambda_.10} parent=31 // pred_check_branch
        %519 = sbr.rel (%p517) target = $region44
      $region43: #{_lambda_.10} parent=31 // pred_region
        _
      $region44: #{_lambda_.10} parent=31 // pred_fallthru
        _
    $region32: #{_lambda_.10} parent=5 // pred_fallthru
      _
    %p520 = scmp.le.s32.totalorder 2, %s11
    // Predicated region
    $region45: #{_lambda_.10} parent=5 // pred_check
      %p521 = pneg %p520
    $region46: #{_lambda_.10} parent=5 // pred_check_branch
      %523 = sbr.rel (%p521) target = $region48
    $region47: #{_lambda_.10} parent=5 // pred_region
      %s524 = ssub.s32 %s11, 2
      // Predicated region
      $region49: #{_lambda_.10} parent=47 // pred_check
        %p525 = pneg %p140
      $region50: #{_lambda_.10} parent=47 // pred_check_branch
        %527 = sbr.rel (%p525) target = $region52
      $region51: #{_lambda_.10} parent=47 // pred_region
        %p528 = scmp.lt.s32.totalorder %s24, 0
        %s529 = scalar_select %p528, %s24, 0
        %p530 = scmp.lt.s32.totalorder %s25, 1
        %s531 = scalar_select %p530, %s25, 1
        %p532 = scmp.lt.s32.totalorder %s26, 0
        %s533 = scalar_select %p532, %s26, 0
        %s534 = sadd.s32 %s533, %s531
        %s535 = smul.addr %s529, 2
        %s536 = sadd.s32 %s534, %s535
        %s537 = smul.addr %s536, 4
        %s538 = scalar_lea.vmem %s3, %s537
      $region52: #{_lambda_.10} parent=47 // pred_fallthru
        _
      // Predicated region
      $region53: #{_lambda_.10} parent=47 // pred_check
        %p539 = pneg %p168
      $region54: #{_lambda_.10} parent=47 // pred_check_branch
        %541 = sbr.rel (%p539) target = $region56
      $region55: #{_lambda_.10} parent=47 // pred_region
        %p542 = scmp.lt.s32.totalorder %s24, 0
        %s543 = scalar_select %p542, %s24, 0
        %p544 = scmp.lt.s32.totalorder %s25, 1
        %s545 = scalar_select %p544, %s25, 1
        %s546 = smul.addr %s543, 2
        %s547 = sadd.s32 %s545, %s546
        %s548 = smul.addr %s547, 2
        %s549 = scalar_lea.vmem %s4, %s548
      $region56: #{_lambda_.10} parent=47 // pred_fallthru
        _
    $region48: #{_lambda_.10} parent=5 // pred_fallthru
      _
  $region6: #{_lambda_.10} parent=0 // loop_footer
    %s15 = sadd.s32 1, %s11
  $region7: #{_lambda_.10} parent=0 // loop_footer_branch
    %10 = sbr.rel target = $region3
  $region8: #{_lambda_.10} parent=0 // loop_exit
    _

// kernel: _lambda_.11
$region0: #{_lambda_.11}
  #allocation0 [shape = 'u32[]', space=smem, size = 0x4, offset = 0x4, fixed_abs, tag = 'smem constant byte address 0x4 - core index']
  #allocation1 [shape = 'u32[72,128]{1,0:T(1,128)}', space=vmem, size = 0x9000, scoped, tag = 'internal scratch']
  %s0 = inlined_call_operand.vmem [shape: bf16[1,2,8,128], index: 0, kind: input, shape index: {}]
  %s1 = inlined_call_operand.vmem [shape: f32[2,1,8], index: 1, kind: input, shape index: {}]
  %s2 = inlined_call_operand.vmem [shape: f32[2,1,8], index: 2, kind: input, shape index: {}]
  %s3 = inlined_call_operand.vmem [shape: bf16[1,2,8,8], index: 3, kind: output, shape index: {}]
  %s4 = sld [smem:[#allocation0]]
  $region45: #{_lambda_.11} parent=0
    _
  %s6 = ssub.s32 1, %s4
  %s7 = scalar_select 0, %s6, %s4
  loop: start=0, step=1, limit=4
  $region2: #{_lambda_.11} parent=0 // loop_pre_header
    _
  $region3: #{_lambda_.11} parent=0 // loop_header
    %s9 = sphi 0, %s13
    %p10 = scmp.ge.s32.totalorder %s9, 4
    %s16 = sphi 0, %s35
    %s17 = sphi 0, %s31
    %s18 = sphi 0, %s27
    %s19 = sphi 0, %s16
    %s20 = sphi 0, %s17
    %s21 = sphi 0, %s18
    %s22 = sphi 0, %s19
    %s23 = sphi 0, %s20
    %s24 = sphi 0, %s21
    %s42 = sphi 0, %s44
    %s45 = sphi 0, %s42
    %s46 = sphi 0, %s45
    %s62 = sphi 0, %s46
    %s68 = sphi 0, %s70
    %s71 = sphi 0, %s68
    %s72 = sphi 0, %s71
    %s88 = sphi 0, %s72
    %s94 = sphi 0, %s96
    %s97 = sphi 0, %s94
    %s98 = sphi 0, %s97
    %s114 = sphi 0, %s98
    %s124 = sphi 0, %s126
    %s127 = sphi 0, %s124
    %s128 = sphi 0, %s127
    %s144 = sphi 0, %s128
  $region4: #{_lambda_.11} parent=0 // loop_header_branch
    %12 = sbr.rel (%p10) target = $region8
  $region5: #{_lambda_.11} parent=0 // loop_body
    %s14 = ssub.s32 %s9, 1
    %s15 = ssub.s32 %s9, 2
    %s25 = sadd.s32 1, %s18
    %p26 = scmp.ge.s32.totalorder %s25, 1
    %s27 = scalar_select %p26, 0, %s25
    %s28 = sadd.s32 1, %s17
    %s29 = scalar_select %p26, %s28, %s17
    %p30 = scmp.ge.s32.totalorder %s29, 2
    %s31 = scalar_select %p30, 0, %s29
    %s32 = sadd.s32 1, %s16
    %s33 = scalar_select %p30, %s32, %s16
    %p34 = scmp.ge.s32.totalorder %s33, 1
    %s35 = scalar_select %p34, 0, %s33
    %s36 = ssub.s32 %s16, %s35
    %s37 = ssub.s32 %s17, %s31
    %s38 = sor.u32 %s36, %s37
    %s39 = ssub.s32 %s18, %s27
    %s40 = sor.u32 %s38, %s39
    %p41 = scmp.eq.s32.totalorder %s40, 0
    %s43 = sadd.s32 %s42, 1
    %s44 = scalar_select %p41, %s42, %s43
    %p47 = pneg %p41
    %p48 = scmp.eq.s32.totalorder %s9, 1
    %p49 = por %p47, %p48
    %p50 = scmp.ne.s32.totalorder %s42, %s45
    %p51 = scmp.eq.s32.totalorder %s9, 0
    %p52 = por %p50, %p51
    %p53 = scmp.ne.s32.totalorder %s42, %s45
    %p54 = scmp.eq.s32.totalorder %s14, 1
    %p55 = por %p53, %p54
    %p56 = scmp.ne.s32.totalorder %s45, %s46
    %p57 = scmp.eq.s32.totalorder %s14, 0
    %p58 = por %p56, %p57
    %p59 = scmp.ne.s32.totalorder %s45, %s46
    %p60 = scmp.eq.s32.totalorder %s15, 1
    %p61 = por %p59, %p60
    %p63 = scmp.ne.s32.totalorder %s46, %s62
    %p64 = scmp.eq.s32.totalorder %s15, 0
    %p65 = por %p63, %p64
    %s66 = ssub.s32 %s17, %s31
    %p67 = scmp.eq.s32.totalorder %s66, 0
    %s69 = sadd.s32 %s68, 1
    %s70 = scalar_select %p67, %s68, %s69
    %p73 = pneg %p67
    %p74 = scmp.eq.s32.totalorder %s9, 1
    %p75 = por %p73, %p74
    %p76 = scmp.ne.s32.totalorder %s68, %s71
    %p77 = scmp.eq.s32.totalorder %s9, 0
    %p78 = por %p76, %p77
    %p79 = scmp.ne.s32.totalorder %s68, %s71
    %p80 = scmp.eq.s32.totalorder %s14, 1
    %p81 = por %p79, %p80
    %p82 = scmp.ne.s32.totalorder %s71, %s72
    %p83 = scmp.eq.s32.totalorder %s14, 0
    %p84 = por %p82, %p83
    %p85 = scmp.ne.s32.totalorder %s71, %s72
    %p86 = scmp.eq.s32.totalorder %s15, 1
    %p87 = por %p85, %p86
    %p89 = scmp.ne.s32.totalorder %s72, %s88
    %p90 = scmp.eq.s32.totalorder %s15, 0
    %p91 = por %p89, %p90
    %s92 = ssub.s32 %s17, %s31
    %p93 = scmp.eq.s32.totalorder %s92, 0
    %s95 = sadd.s32 %s94, 1
    %s96 = scalar_select %p93, %s94, %s95
    %p99 = pneg %p93
    %p100 = scmp.eq.s32.totalorder %s9, 1
    %p101 = por %p99, %p100
    %p102 = scmp.ne.s32.totalorder %s94, %s97
    %p103 = scmp.eq.s32.totalorder %s9, 0
    %p104 = por %p102, %p103
    %p105 = scmp.ne.s32.totalorder %s94, %s97
    %p106 = scmp.eq.s32.totalorder %s14, 1
    %p107 = por %p105, %p106
    %p108 = scmp.ne.s32.totalorder %s97, %s98
    %p109 = scmp.eq.s32.totalorder %s14, 0
    %p110 = por %p108, %p109
    %p111 = scmp.ne.s32.totalorder %s97, %s98
    %p112 = scmp.eq.s32.totalorder %s15, 1
    %p113 = por %p111, %p112
    %p115 = scmp.ne.s32.totalorder %s98, %s114
    %p116 = scmp.eq.s32.totalorder %s15, 0
    %p117 = por %p115, %p116
    %s118 = ssub.s32 %s16, %s35
    %s119 = ssub.s32 %s17, %s31
    %s120 = sor.u32 %s118, %s119
    %s121 = ssub.s32 %s18, %s27
    %s122 = sor.u32 %s120, %s121
    %p123 = scmp.eq.s32.totalorder %s122, 0
    %s125 = sadd.s32 %s124, 1
    %s126 = scalar_select %p123, %s124, %s125
    %p129 = pneg %p123
    %p130 = scmp.eq.s32.totalorder %s9, 1
    %p131 = por %p129, %p130
    %p132 = scmp.ne.s32.totalorder %s124, %s127
    %p133 = scmp.eq.s32.totalorder %s9, 0
    %p134 = por %p132, %p133
    %p135 = scmp.ne.s32.totalorder %s124, %s127
    %p136 = scmp.eq.s32.totalorder %s14, 1
    %p137 = por %p135, %p136
    %p138 = scmp.ne.s32.totalorder %s127, %s128
    %p139 = scmp.eq.s32.totalorder %s14, 0
    %p140 = por %p138, %p139
    %p141 = scmp.ne.s32.totalorder %s127, %s128
    %p142 = scmp.eq.s32.totalorder %s15, 1
    %p143 = por %p141, %p142
    %p145 = scmp.ne.s32.totalorder %s128, %s144
    %p146 = scmp.eq.s32.totalorder %s15, 0
    %p147 = por %p145, %p146
    %p148 = scmp.le.s32.totalorder 1, %s9
    %p149 = scmp.lt.s32.totalorder %s9, 3
    %p150 = pnand %p148, %p149
    %p151 = pneg %p150
    // Predicated region
    $region9: #{_lambda_.11} parent=5 // pred_check
      _
    $region10: #{_lambda_.11} parent=5 // pred_check_branch
      %153 = sbr.rel (%p150) target = $region12
    $region11: #{_lambda_.11} parent=5 // pred_region
      %s154 = ssub.s32 %s9, 1
    $region12: #{_lambda_.11} parent=5 // pred_fallthru
      _
    %p155 = scmp.lt.s32.totalorder %s9, 2
    // Predicated region
    $region13: #{_lambda_.11} parent=5 // pred_check
      %p156 = pneg %p155
    $region14: #{_lambda_.11} parent=5 // pred_check_branch
      %158 = sbr.rel (%p156) target = $region16
    $region15: #{_lambda_.11} parent=5 // pred_region
      // Predicated region
      $region17: #{_lambda_.11} parent=15 // pred_check
        %p159 = pneg %p52
      $region18: #{_lambda_.11} parent=15 // pred_check_branch
        %161 = sbr.rel (%p159) target = $region20
      $region19: #{_lambda_.11} parent=15 // pred_region
        %p162 = scmp.lt.s32.totalorder %s16, 0
        %s163 = scalar_select %p162, %s16, 0
        %p164 = scmp.lt.s32.totalorder %s17, 1
        %s165 = scalar_select %p164, %s17, 1
        %p166 = scmp.lt.s32.totalorder %s18, 0
        %s167 = scalar_select %p166, %s18, 0
        %s168 = sadd.s32 %s167, %s165
        %s169 = smul.addr %s163, 2
        %s170 = sadd.s32 %s168, %s169
        %s171 = smul.addr %s170, 4
        %s172 = scalar_lea.vmem %s0, %s171
      $region20: #{_lambda_.11} parent=15 // pred_fallthru
        _
      // Predicated region
      $region21: #{_lambda_.11} parent=15 // pred_check
        %p173 = pneg %p78
      $region22: #{_lambda_.11} parent=15 // pred_check_branch
        %175 = sbr.rel (%p173) target = $region24
      $region23: #{_lambda_.11} parent=15 // pred_region
        %p176 = scmp.lt.s32.totalorder %s17, 1
        %s177 = scalar_select %p176, %s17, 1
        %s178 = scalar_lea.vmem %s1, %s177
      $region24: #{_lambda_.11} parent=15 // pred_fallthru
        _
      // Predicated region
      $region25: #{_lambda_.11} parent=15 // pred_check
        %p179 = pneg %p104
      $region26: #{_lambda_.11} parent=15 // pred_check_branch
        %181 = sbr.rel (%p179) target = $region28
      $region27: #{_lambda_.11} parent=15 // pred_region
        %p182 = scmp.lt.s32.totalorder %s17, 1
        %s183 = scalar_select %p182, %s17, 1
        %s184 = scalar_lea.vmem %s2, %s183
      $region28: #{_lambda_.11} parent=15 // pred_fallthru
        _
    $region16: #{_lambda_.11} parent=5 // pred_fallthru
      _
    %p185 = scmp.le.s32.totalorder 1, %s9
    %p186 = scmp.lt.s32.totalorder %s9, 3
    %p187 = pnand %p185, %p186
    %p188 = pneg %p187
    // Predicated region
    $region29: #{_lambda_.11} parent=5 // pred_check
      _
    $region30: #{_lambda_.11} parent=5 // pred_check_branch
      %190 = sbr.rel (%p187) target = $region32
    $region31: #{_lambda_.11} parent=5 // pred_region
      %s191 = ssub.s32 %s9, 1
      %p192 = scmp.lt.s32.totalorder %s19, 0
      %s193 = scalar_select %p192, %s19, 0
      %p194 = scmp.lt.s32.totalorder %s20, 1
      %s195 = scalar_select %p194, %s20, 1
      %p196 = scmp.lt.s32.totalorder %s21, 0
      %s197 = scalar_select %p196, %s21, 0
      %s198 = sadd.s32 %s197, %s195
      %s199 = smul.addr %s193, 2
      %s200 = sadd.s32 %s198, %s199
      %s201 = smul.addr %s200, 4
      %s202 = scalar_lea.vmem %s0, %s201
      %p203 = pneg %p58
      %p204 = pneg %p55
      %p205 = scmp.lt.s32.totalorder %s20, 1
      %s206 = scalar_select %p205, %s20, 1
      %s207 = scalar_lea.vmem %s1, %s206
      %p208 = pneg %p84
      %p209 = pneg %p81
      %p210 = scmp.lt.s32.totalorder %s20, 1
      %s211 = scalar_select %p210, %s20, 1
      %s212 = scalar_lea.vmem %s2, %s211
      %p213 = pneg %p110
      %p214 = pneg %p107
      %p215 = pneg %p140
      %p216 = pneg %p137
      %p217 = scmp.lt.s32.totalorder %s19, 0
      %s218 = scalar_select %p217, %s19, 0
      %p219 = scmp.lt.s32.totalorder %s20, 1
      %s220 = scalar_select %p219, %s20, 1
      %p221 = scmp.lt.s32.totalorder %s21, 0
      %s222 = scalar_select %p221, %s21, 0
      %s223 = sadd.s32 %s222, %s220
      %s224 = smul.addr %s218, 2
      %s225 = sadd.s32 %s223, %s224
      %s226 = smul.addr %s225, 4
      %s227 = scalar_lea.vmem %s3, %s226
      %p228 = scmp.lt.s32.totalorder %s19, 0
      %s229 = scalar_select %p228, %s19, 0
      %p230 = scmp.lt.s32.totalorder %s20, 1
      %s231 = scalar_select %p230, %s20, 1
      %p232 = scmp.lt.s32.totalorder %s21, 0
      %s233 = scalar_select %p232, %s21, 0
      %s234 = sadd.s32 %s233, %s231
      %s235 = smul.addr %s229, 2
      %s236 = sadd.s32 %s234, %s235
      %s237 = smul.addr %s236, 4
      %s238 = scalar_lea.vmem %s0, %s237
      %p239 = scmp.lt.s32.totalorder %s20, 1
      %s240 = scalar_select %p239, %s20, 1
      %s241 = scalar_lea.vmem %s1, %s240
      %p242 = scmp.lt.s32.totalorder %s20, 1
      %s243 = scalar_select %p242, %s20, 1
      %s244 = scalar_lea.vmem %s2, %s243
      %p245 = scmp.lt.s32.totalorder %s19, 0
      %s246 = scalar_select %p245, %s19, 0
      %p247 = scmp.lt.s32.totalorder %s20, 1
      %s248 = scalar_select %p247, %s20, 1
      %p249 = scmp.lt.s32.totalorder %s21, 0
      %s250 = scalar_select %p249, %s21, 0
      %s251 = sadd.s32 %s250, %s248
      %s252 = smul.addr %s246, 2
      %s253 = sadd.s32 %s251, %s252
      %s254 = smul.addr %s253, 4
      %s255 = scalar_lea.vmem %s3, %s254
      %v256 = vld [vmem:[%s238] sm:$0xf]
      %v257 = vunpack.c.l.bf16 %v256
      %v258 = vld [vmem:[%s241] sm:$0x1]
      %v260 = vperm.slane %v258, 0
      %v262 = vmul.f32 %v257, %v260
      %v263 = vld [vmem:[%s244] sm:$0x1]
      %v265 = vperm.slane %v263, 0
      %v267 = vadd.f32 %v262, %v265
      %v268 = vpack.c.bf16 %v267, %v267
      %vm269 = vcmask 60416
      %270 = vst.msk [vmem:[%s255] sm:$0xf] %vm269, %v268
      %p271 = scmp.lt.s32.totalorder %s19, 0
      %s272 = scalar_select %p271, %s19, 0
      %p273 = scmp.lt.s32.totalorder %s20, 1
      %s274 = scalar_select %p273, %s20, 1
      %p275 = scmp.lt.s32.totalorder %s21, 0
      %s276 = scalar_select %p275, %s21, 0
      %s277 = sadd.s32 %s276, %s274
      %s278 = smul.addr %s272, 2
      %s279 = sadd.s32 %s277, %s278
      %s280 = smul.addr %s279, 4
      %s281 = scalar_lea.vmem %s3, %s280
      // Predicated region
      $region33: #{_lambda_.11} parent=31 // pred_check
        %p282 = pneg %p137
      $region34: #{_lambda_.11} parent=31 // pred_check_branch
        %284 = sbr.rel (%p282) target = $region36
      $region35: #{_lambda_.11} parent=31 // pred_region
        _
      $region36: #{_lambda_.11} parent=31 // pred_fallthru
        _
    $region32: #{_lambda_.11} parent=5 // pred_fallthru
      _
    %p285 = scmp.le.s32.totalorder 2, %s9
    // Predicated region
    $region37: #{_lambda_.11} parent=5 // pred_check
      %p286 = pneg %p285
    $region38: #{_lambda_.11} parent=5 // pred_check_branch
      %288 = sbr.rel (%p286) target = $region40
    $region39: #{_lambda_.11} parent=5 // pred_region
      %s289 = ssub.s32 %s9, 2
      // Predicated region
      $region41: #{_lambda_.11} parent=39 // pred_check
        %p290 = pneg %p143
      $region42: #{_lambda_.11} parent=39 // pred_check_branch
        %292 = sbr.rel (%p290) target = $region44
      $region43: #{_lambda_.11} parent=39 // pred_region
        %p293 = scmp.lt.s32.totalorder %s22, 0
        %s294 = scalar_select %p293, %s22, 0
        %p295 = scmp.lt.s32.totalorder %s23, 1
        %s296 = scalar_select %p295, %s23, 1
        %p297 = scmp.lt.s32.totalorder %s24, 0
        %s298 = scalar_select %p297, %s24, 0
        %s299 = sadd.s32 %s298, %s296
        %s300 = smul.addr %s294, 2
        %s301 = sadd.s32 %s299, %s300
        %s302 = smul.addr %s301, 4
        %s303 = scalar_lea.vmem %s3, %s302
      $region44: #{_lambda_.11} parent=39 // pred_fallthru
        _
    $region40: #{_lambda_.11} parent=5 // pred_fallthru
      _
  $region6: #{_lambda_.11} parent=0 // loop_footer
    %s13 = sadd.s32 1, %s9
  $region7: #{_lambda_.11} parent=0 // loop_footer_branch
    %8 = sbr.rel target = $region3
  $region8: #{_lambda_.11} parent=0 // loop_exit
    _

// kernel: _lambda_.12
$region0: #{_lambda_.12}
  #allocation0 [shape = 'u32[]', space=smem, size = 0x4, offset = 0x4, fixed_abs, tag = 'smem constant byte address 0x4 - core index']
  #allocation1 [shape = 'u32[72,128]{1,0:T(1,128)}', space=vmem, size = 0x9000, scoped, tag = 'internal scratch']
  %s0 = inlined_call_operand.vmem [shape: bf16[1,2,1,512], index: 0, kind: input, shape index: {}]
  %s1 = inlined_call_operand.vmem [shape: bf16[1,512,128], index: 1, kind: input, shape index: {}]
  %s2 = inlined_call_operand.vmem [shape: f32[1,128], index: 2, kind: input, shape index: {}]
  %s3 = inlined_call_operand.vmem [shape: f32[2,1,128], index: 3, kind: input, shape index: {}]
  %s4 = inlined_call_operand.vmem [shape: f32[2,1,128], index: 4, kind: input, shape index: {}]
  %s5 = inlined_call_operand.vmem [shape: bf16[1,2,1,128], index: 5, kind: output, shape index: {}]
  %s6 = sld [smem:[#allocation0]]
  $region53: #{_lambda_.12} parent=0
    _
  %s8 = ssub.s32 1, %s6
  %s9 = scalar_select 0, %s8, %s6
  loop: start=0, step=1, limit=4
  $region2: #{_lambda_.12} parent=0 // loop_pre_header
    _
  $region3: #{_lambda_.12} parent=0 // loop_header
    %s11 = sphi 0, %s15
    %p12 = scmp.ge.s32.totalorder %s11, 4
    %s18 = sphi 0, %s37
    %s19 = sphi 0, %s33
    %s20 = sphi 0, %s29
    %s21 = sphi 0, %s18
    %s22 = sphi 0, %s19
    %s23 = sphi 0, %s20
    %s24 = sphi 0, %s21
    %s25 = sphi 0, %s22
    %s26 = sphi 0, %s23
    %s44 = sphi 0, %s46
    %s47 = sphi 0, %s44
    %s48 = sphi 0, %s47
    %s64 = sphi 0, %s48
    %s70 = sphi 0, %s72
    %s73 = sphi 0, %s70
    %s74 = sphi 0, %s73
    %s90 = sphi 0, %s74
    %s94 = sphi 0, %s94
    %s96 = sphi 0, %s94
    %s97 = sphi 0, %s96
    %s111 = sphi 0, %s97
    %s117 = sphi 0, %s119
    %s120 = sphi 0, %s117
    %s121 = sphi 0, %s120
    %s137 = sphi 0, %s121
    %s143 = sphi 0, %s145
    %s146 = sphi 0, %s143
    %s147 = sphi 0, %s146
    %s163 = sphi 0, %s147
    %s173 = sphi 0, %s175
    %s176 = sphi 0, %s173
    %s177 = sphi 0, %s176
    %s193 = sphi 0, %s177
  $region4: #{_lambda_.12} parent=0 // loop_header_branch
    %14 = sbr.rel (%p12) target = $region8
  $region5: #{_lambda_.12} parent=0 // loop_body
    %s16 = ssub.s32 %s11, 1
    %s17 = ssub.s32 %s11, 2
    %s27 = sadd.s32 1, %s20
    %p28 = scmp.ge.s32.totalorder %s27, 1
    %s29 = scalar_select %p28, 0, %s27
    %s30 = sadd.s32 1, %s19
    %s31 = scalar_select %p28, %s30, %s19
    %p32 = scmp.ge.s32.totalorder %s31, 2
    %s33 = scalar_select %p32, 0, %s31
    %s34 = sadd.s32 1, %s18
    %s35 = scalar_select %p32, %s34, %s18
    %p36 = scmp.ge.s32.totalorder %s35, 1
    %s37 = scalar_select %p36, 0, %s35
    %s38 = ssub.s32 %s18, %s37
    %s39 = ssub.s32 %s19, %s33
    %s40 = sor.u32 %s38, %s39
    %s41 = ssub.s32 %s20, %s29
    %s42 = sor.u32 %s40, %s41
    %p43 = scmp.eq.s32.totalorder %s42, 0
    %s45 = sadd.s32 %s44, 1
    %s46 = scalar_select %p43, %s44, %s45
    %p49 = pneg %p43
    %p50 = scmp.eq.s32.totalorder %s11, 1
    %p51 = por %p49, %p50
    %p52 = scmp.ne.s32.totalorder %s44, %s47
    %p53 = scmp.eq.s32.totalorder %s11, 0
    %p54 = por %p52, %p53
    %p55 = scmp.ne.s32.totalorder %s44, %s47
    %p56 = scmp.eq.s32.totalorder %s16, 1
    %p57 = por %p55, %p56
    %p58 = scmp.ne.s32.totalorder %s47, %s48
    %p59 = scmp.eq.s32.totalorder %s16, 0
    %p60 = por %p58, %p59
    %p61 = scmp.ne.s32.totalorder %s47, %s48
    %p62 = scmp.eq.s32.totalorder %s17, 1
    %p63 = por %p61, %p62
    %p65 = scmp.ne.s32.totalorder %s48, %s64
    %p66 = scmp.eq.s32.totalorder %s17, 0
    %p67 = por %p65, %p66
    %s68 = ssub.s32 %s18, %s37
    %p69 = scmp.eq.s32.totalorder %s68, 0
    %s71 = sadd.s32 %s70, 1
    %s72 = scalar_select %p69, %s70, %s71
    %p75 = pneg %p69
    %p76 = scmp.eq.s32.totalorder %s11, 1
    %p77 = por %p75, %p76
    %p78 = scmp.ne.s32.totalorder %s70, %s73
    %p79 = scmp.eq.s32.totalorder %s11, 0
    %p80 = por %p78, %p79
    %p81 = scmp.ne.s32.totalorder %s70, %s73
    %p82 = scmp.eq.s32.totalorder %s16, 1
    %p83 = por %p81, %p82
    %p84 = scmp.ne.s32.totalorder %s73, %s74
    %p85 = scmp.eq.s32.totalorder %s16, 0
    %p86 = por %p84, %p85
    %p87 = scmp.ne.s32.totalorder %s73, %s74
    %p88 = scmp.eq.s32.totalorder %s17, 1
    %p89 = por %p87, %p88
    %p91 = scmp.ne.s32.totalorder %s74, %s90
    %p92 = scmp.eq.s32.totalorder %s17, 0
    %p93 = por %p91, %p92
    %s95 = sadd.s32 %s94, 1
    %p98 = scmp.eq.s32.totalorder %s11, 1
    %p99 = scmp.ne.s32.totalorder %s94, %s96
    %p100 = scmp.eq.s32.totalorder %s11, 0
    %p101 = por %p99, %p100
    %p102 = scmp.ne.s32.totalorder %s94, %s96
    %p103 = scmp.eq.s32.totalorder %s16, 1
    %p104 = por %p102, %p103
    %p105 = scmp.ne.s32.totalorder %s96, %s97
    %p106 = scmp.eq.s32.totalorder %s16, 0
    %p107 = por %p105, %p106
    %p108 = scmp.ne.s32.totalorder %s96, %s97
    %p109 = scmp.eq.s32.totalorder %s17, 1
    %p110 = por %p108, %p109
    %p112 = scmp.ne.s32.totalorder %s97, %s111
    %p113 = scmp.eq.s32.totalorder %s17, 0
    %p114 = por %p112, %p113
    %s115 = ssub.s32 %s19, %s33
    %p116 = scmp.eq.s32.totalorder %s115, 0
    %s118 = sadd.s32 %s117, 1
    %s119 = scalar_select %p116, %s117, %s118
    %p122 = pneg %p116
    %p123 = scmp.eq.s32.totalorder %s11, 1
    %p124 = por %p122, %p123
    %p125 = scmp.ne.s32.totalorder %s117, %s120
    %p126 = scmp.eq.s32.totalorder %s11, 0
    %p127 = por %p125, %p126
    %p128 = scmp.ne.s32.totalorder %s117, %s120
    %p129 = scmp.eq.s32.totalorder %s16, 1
    %p130 = por %p128, %p129
    %p131 = scmp.ne.s32.totalorder %s120, %s121
    %p132 = scmp.eq.s32.totalorder %s16, 0
    %p133 = por %p131, %p132
    %p134 = scmp.ne.s32.totalorder %s120, %s121
    %p135 = scmp.eq.s32.totalorder %s17, 1
    %p136 = por %p134, %p135
    %p138 = scmp.ne.s32.totalorder %s121, %s137
    %p139 = scmp.eq.s32.totalorder %s17, 0
    %p140 = por %p138, %p139
    %s141 = ssub.s32 %s19, %s33
    %p142 = scmp.eq.s32.totalorder %s141, 0
    %s144 = sadd.s32 %s143, 1
    %s145 = scalar_select %p142, %s143, %s144
    %p148 = pneg %p142
    %p149 = scmp.eq.s32.totalorder %s11, 1
    %p150 = por %p148, %p149
    %p151 = scmp.ne.s32.totalorder %s143, %s146
    %p152 = scmp.eq.s32.totalorder %s11, 0
    %p153 = por %p151, %p152
    %p154 = scmp.ne.s32.totalorder %s143, %s146
    %p155 = scmp.eq.s32.totalorder %s16, 1
    %p156 = por %p154, %p155
    %p157 = scmp.ne.s32.totalorder %s146, %s147
    %p158 = scmp.eq.s32.totalorder %s16, 0
    %p159 = por %p157, %p158
    %p160 = scmp.ne.s32.totalorder %s146, %s147
    %p161 = scmp.eq.s32.totalorder %s17, 1
    %p162 = por %p160, %p161
    %p164 = scmp.ne.s32.totalorder %s147, %s163
    %p165 = scmp.eq.s32.totalorder %s17, 0
    %p166 = por %p164, %p165
    %s167 = ssub.s32 %s18, %s37
    %s168 = ssub.s32 %s19, %s33
    %s169 = sor.u32 %s167, %s168
    %s170 = ssub.s32 %s20, %s29
    %s171 = sor.u32 %s169, %s170
    %p172 = scmp.eq.s32.totalorder %s171, 0
    %s174 = sadd.s32 %s173, 1
    %s175 = scalar_select %p172, %s173, %s174
    %p178 = pneg %p172
    %p179 = scmp.eq.s32.totalorder %s11, 1
    %p180 = por %p178, %p179
    %p181 = scmp.ne.s32.totalorder %s173, %s176
    %p182 = scmp.eq.s32.totalorder %s11, 0
    %p183 = por %p181, %p182
    %p184 = scmp.ne.s32.totalorder %s173, %s176
    %p185 = scmp.eq.s32.totalorder %s16, 1
    %p186 = por %p184, %p185
    %p187 = scmp.ne.s32.totalorder %s176, %s177
    %p188 = scmp.eq.s32.totalorder %s16, 0
    %p189 = por %p187, %p188
    %p190 = scmp.ne.s32.totalorder %s176, %s177
    %p191 = scmp.eq.s32.totalorder %s17, 1
    %p192 = por %p190, %p191
    %p194 = scmp.ne.s32.totalorder %s177, %s193
    %p195 = scmp.eq.s32.totalorder %s17, 0
    %p196 = por %p194, %p195
    %p197 = scmp.le.s32.totalorder 1, %s11
    %p198 = scmp.lt.s32.totalorder %s11, 3
    %p199 = pnand %p197, %p198
    %p200 = pneg %p199
    // Predicated region
    $region9: #{_lambda_.12} parent=5 // pred_check
      _
    $region10: #{_lambda_.12} parent=5 // pred_check_branch
      %202 = sbr.rel (%p199) target = $region12
    $region11: #{_lambda_.12} parent=5 // pred_region
      %s203 = ssub.s32 %s11, 1
      // Predicated region
      $region13: #{_lambda_.12} parent=11 // pred_check
        %p204 = pneg %p86
      $region14: #{_lambda_.12} parent=11 // pred_check_branch
        %206 = sbr.rel (%p204) target = $region16
      $region15: #{_lambda_.12} parent=11 // pred_region
        %p207 = scmp.lt.s32.totalorder %s21, 0
        %s208 = scalar_select %p207, %s21, 0
        %s209 = smul.addr %s208, 64
        %s210 = smul.addr %s209, 4
        %s211 = scalar_lea.vmem %s1, %s210
      $region16: #{_lambda_.12} parent=11 // pred_fallthru
        _
      // Predicated region
      $region17: #{_lambda_.12} parent=11 // pred_check
        %p212 = pneg %p107
      $region18: #{_lambda_.12} parent=11 // pred_check_branch
        %214 = sbr.rel (%p212) target = $region20
      $region19: #{_lambda_.12} parent=11 // pred_region
        _
      $region20: #{_lambda_.12} parent=11 // pred_fallthru
        _
    $region12: #{_lambda_.12} parent=5 // pred_fallthru
      _
    %p215 = scmp.lt.s32.totalorder %s11, 2
    // Predicated region
    $region21: #{_lambda_.12} parent=5 // pred_check
      %p216 = pneg %p215
    $region22: #{_lambda_.12} parent=5 // pred_check_branch
      %218 = sbr.rel (%p216) target = $region24
    $region23: #{_lambda_.12} parent=5 // pred_region
      // Predicated region
      $region25: #{_lambda_.12} parent=23 // pred_check
        %p219 = pneg %p54
      $region26: #{_lambda_.12} parent=23 // pred_check_branch
        %221 = sbr.rel (%p219) target = $region28
      $region27: #{_lambda_.12} parent=23 // pred_region
        %p222 = scmp.lt.s32.totalorder %s18, 0
        %s223 = scalar_select %p222, %s18, 0
        %p224 = scmp.lt.s32.totalorder %s19, 1
        %s225 = scalar_select %p224, %s19, 1
        %p226 = scmp.lt.s32.totalorder %s20, 0
        %s227 = scalar_select %p226, %s20, 0
        %s228 = smul.addr %s227, 4
        %s229 = smul.addr %s225, 4
        %s230 = sadd.s32 %s228, %s229
        %s231 = smul.addr %s223, 8
        %s232 = sadd.s32 %s230, %s231
        %s233 = scalar_lea.vmem %s0, %s232
      $region28: #{_lambda_.12} parent=23 // pred_fallthru
        _
      // Predicated region
      $region29: #{_lambda_.12} parent=23 // pred_check
        %p234 = pneg %p127
      $region30: #{_lambda_.12} parent=23 // pred_check_branch
        %236 = sbr.rel (%p234) target = $region32
      $region31: #{_lambda_.12} parent=23 // pred_region
        %p237 = scmp.lt.s32.totalorder %s19, 1
        %s238 = scalar_select %p237, %s19, 1
        %s239 = scalar_lea.vmem %s3, %s238
      $region32: #{_lambda_.12} parent=23 // pred_fallthru
        _
      // Predicated region
      $region33: #{_lambda_.12} parent=23 // pred_check
        %p240 = pneg %p153
      $region34: #{_lambda_.12} parent=23 // pred_check_branch
        %242 = sbr.rel (%p240) target = $region36
      $region35: #{_lambda_.12} parent=23 // pred_region
        %p243 = scmp.lt.s32.totalorder %s19, 1
        %s244 = scalar_select %p243, %s19, 1
        %s245 = scalar_lea.vmem %s4, %s244
      $region36: #{_lambda_.12} parent=23 // pred_fallthru
        _
    $region24: #{_lambda_.12} parent=5 // pred_fallthru
      _
    %p246 = scmp.le.s32.totalorder 1, %s11
    %p247 = scmp.lt.s32.totalorder %s11, 3
    %p248 = pnand %p246, %p247
    %p249 = pneg %p248
    // Predicated region
    $region37: #{_lambda_.12} parent=5 // pred_check
      _
    $region38: #{_lambda_.12} parent=5 // pred_check_branch
      %251 = sbr.rel (%p248) target = $region40
    $region39: #{_lambda_.12} parent=5 // pred_region
      %s252 = ssub.s32 %s11, 1
      %p253 = scmp.lt.s32.totalorder %s21, 0
      %s254 = scalar_select %p253, %s21, 0
      %p255 = scmp.lt.s32.totalorder %s22, 1
      %s256 = scalar_select %p255, %s22, 1
      %p257 = scmp.lt.s32.totalorder %s23, 0
      %s258 = scalar_select %p257, %s23, 0
      %s259 = smul.addr %s258, 4
      %s260 = smul.addr %s256, 4
      %s261 = sadd.s32 %s259, %s260
      %s262 = smul.addr %s254, 8
      %s263 = sadd.s32 %s261, %s262
      %s264 = scalar_lea.vmem %s0, %s263
      %p265 = pneg %p60
      %p266 = pneg %p57
      %p267 = scmp.lt.s32.totalorder %s21, 0
      %s268 = scalar_select %p267, %s21, 0
      %s269 = smul.addr %s268, 64
      %s270 = smul.addr %s269, 4
      %s271 = scalar_lea.vmem %s1, %s270
      %p272 = pneg %p86
      %p273 = pneg %p83
      %p274 = pneg %p107
      %p275 = pneg %p104
      %p276 = scmp.lt.s32.totalorder %s22, 1
      %s277 = scalar_select %p276, %s22, 1
      %s278 = scalar_lea.vmem %s3, %s277
      %p279 = pneg %p133
      %p280 = pneg %p130
      %p281 = scmp.lt.s32.totalorder %s22, 1
      %s282 = scalar_select %p281, %s22, 1
      %s283 = scalar_lea.vmem %s4, %s282
      %p284 = pneg %p159
      %p285 = pneg %p156
      %p286 = pneg %p189
      %p287 = pneg %p186
      %p288 = scmp.lt.s32.totalorder %s21, 0
      %s289 = scalar_select %p288, %s21, 0
      %p290 = scmp.lt.s32.totalorder %s22, 1
      %s291 = scalar_select %p290, %s22, 1
      %p292 = scmp.lt.s32.totalorder %s23, 0
      %s293 = scalar_select %p292, %s23, 0
      %s294 = sadd.s32 %s293, %s291
      %s295 = smul.addr %s289, 2
      %s296 = sadd.s32 %s294, %s295
      %s297 = scalar_lea.vmem %s5, %s296
      %p298 = scmp.lt.s32.totalorder %s21, 0
      %s299 = scalar_select %p298, %s21, 0
      %p300 = scmp.lt.s32.totalorder %s22, 1
      %s301 = scalar_select %p300, %s22, 1
      %p302 = scmp.lt.s32.totalorder %s23, 0
      %s303 = scalar_select %p302, %s23, 0
      %s304 = smul.addr %s303, 4
      %s305 = smul.addr %s301, 4
      %s306 = sadd.s32 %s304, %s305
      %s307 = smul.addr %s299, 8
      %s308 = sadd.s32 %s306, %s307
      %s309 = scalar_lea.vmem %s0, %s308
      %p310 = scmp.lt.s32.totalorder %s21, 0
      %s311 = scalar_select %p310, %s21, 0
      %s312 = smul.addr %s311, 64
      %s313 = smul.addr %s312, 4
      %s314 = scalar_lea.vmem %s1, %s313
      %p315 = scmp.lt.s32.totalorder %s22, 1
      %s316 = scalar_select %p315, %s22, 1
      %s317 = scalar_lea.vmem %s3, %s316
      %p318 = scmp.lt.s32.totalorder %s22, 1
      %s319 = scalar_select %p318, %s22, 1
      %s320 = scalar_lea.vmem %s4, %s319
      %p321 = scmp.lt.s32.totalorder %s21, 0
      %s322 = scalar_select %p321, %s21, 0
      %p323 = scmp.lt.s32.totalorder %s22, 1
      %s324 = scalar_select %p323, %s22, 1
      %p325 = scmp.lt.s32.totalorder %s23, 0
      %s326 = scalar_select %p325, %s23, 0
      %s327 = sadd.s32 %s326, %s324
      %s328 = smul.addr %s322, 2
      %s329 = sadd.s32 %s327, %s328
      %s330 = scalar_lea.vmem %s5, %s329
      %v331 = vld [vmem:[%s309] sm:$0xf]
      %v332 = vld [vmem:[%s314] sm:$0xf]
      %v333 = vld [vmem:[%s314 + $0x4] sm:$0xf]
      %v334 = vld [vmem:[%s314 + $0x8] sm:$0xf]
      %v335 = vld [vmem:[%s314 + $0xc] sm:$0xf]
      %v336 = vld [vmem:[%s314 + $0x10] sm:$0xf]
      %v337 = vld [vmem:[%s314 + $0x14] sm:$0xf]
      %v338 = vld [vmem:[%s314 + $0x18] sm:$0xf]
      %v339 = vld [vmem:[%s314 + $0x1c] sm:$0xf]
      %v340 = vld [vmem:[%s314 + $0x20] sm:$0xf]
      %v341 = vld [vmem:[%s314 + $0x24] sm:$0xf]
      %v342 = vld [vmem:[%s314 + $0x28] sm:$0xf]
      %v343 = vld [vmem:[%s314 + $0x2c] sm:$0xf]
      %v344 = vld [vmem:[%s314 + $0x30] sm:$0xf]
      %v345 = vld [vmem:[%s314 + $0x34] sm:$0xf]
      %v346 = vld [vmem:[%s314 + $0x38] sm:$0xf]
      %v347 = vld [vmem:[%s314 + $0x3c] sm:$0xf]
      %v348 = vld [vmem:[%s314 + $0x40] sm:$0xf]
      %v349 = vld [vmem:[%s314 + $0x44] sm:$0xf]
      %v350 = vld [vmem:[%s314 + $0x48] sm:$0xf]
      %v351 = vld [vmem:[%s314 + $0x4c] sm:$0xf]
      %v352 = vld [vmem:[%s314 + $0x50] sm:$0xf]
      %v353 = vld [vmem:[%s314 + $0x54] sm:$0xf]
      %v354 = vld [vmem:[%s314 + $0x58] sm:$0xf]
      %v355 = vld [vmem:[%s314 + $0x5c] sm:$0xf]
      %v356 = vld [vmem:[%s314 + $0x60] sm:$0xf]
      %v357 = vld [vmem:[%s314 + $0x64] sm:$0xf]
      %v358 = vld [vmem:[%s314 + $0x68] sm:$0xf]
      %v359 = vld [vmem:[%s314 + $0x6c] sm:$0xf]
      %v360 = vld [vmem:[%s314 + $0x70] sm:$0xf]
      %v361 = vld [vmem:[%s314 + $0x74] sm:$0xf]
      %v362 = vld [vmem:[%s314 + $0x78] sm:$0xf]
      %v363 = vld [vmem:[%s314 + $0x7c] sm:$0xf]
      %v364 = vld [vmem:[%s314 + $0x80] sm:$0xf]
      %v365 = vld [vmem:[%s314 + $0x84] sm:$0xf]
      %v366 = vld [vmem:[%s314 + $0x88] sm:$0xf]
      %v367 = vld [vmem:[%s314 + $0x8c] sm:$0xf]
      %v368 = vld [vmem:[%s314 + $0x90] sm:$0xf]
      %v369 = vld [vmem:[%s314 + $0x94] sm:$0xf]
      %v370 = vld [vmem:[%s314 + $0x98] sm:$0xf]
      %v371 = vld [vmem:[%s314 + $0x9c] sm:$0xf]
      %v372 = vld [vmem:[%s314 + $0xa0] sm:$0xf]
      %v373 = vld [vmem:[%s314 + $0xa4] sm:$0xf]
      %v374 = vld [vmem:[%s314 + $0xa8] sm:$0xf]
      %v375 = vld [vmem:[%s314 + $0xac] sm:$0xf]
      %v376 = vld [vmem:[%s314 + $0xb0] sm:$0xf]
      %v377 = vld [vmem:[%s314 + $0xb4] sm:$0xf]
      %v378 = vld [vmem:[%s314 + $0xb8] sm:$0xf]
      %v379 = vld [vmem:[%s314 + $0xbc] sm:$0xf]
      %v380 = vld [vmem:[%s314 + $0xc0] sm:$0xf]
      %v381 = vld [vmem:[%s314 + $0xc4] sm:$0xf]
      %v382 = vld [vmem:[%s314 + $0xc8] sm:$0xf]
      %v383 = vld [vmem:[%s314 + $0xcc] sm:$0xf]
      %v384 = vld [vmem:[%s314 + $0xd0] sm:$0xf]
      %v385 = vld [vmem:[%s314 + $0xd4] sm:$0xf]
      %v386 = vld [vmem:[%s314 + $0xd8] sm:$0xf]
      %v387 = vld [vmem:[%s314 + $0xdc] sm:$0xf]
      %v388 = vld [vmem:[%s314 + $0xe0] sm:$0xf]
      %v389 = vld [vmem:[%s314 + $0xe4] sm:$0xf]
      %v390 = vld [vmem:[%s314 + $0xe8] sm:$0xf]
      %v391 = vld [vmem:[%s314 + $0xec] sm:$0xf]
      %v392 = vld [vmem:[%s314 + $0xf0] sm:$0xf]
      %v393 = vld [vmem:[%s314 + $0xf4] sm:$0xf]
      %v394 = vld [vmem:[%s314 + $0xf8] sm:$0xf]
      %v395 = vld [vmem:[%s314 + $0xfc] sm:$0xf]
      %v396 = vld [vmem:[%s2] sm:$0x1]
      %398 = vst [vmem:[#allocation1] ss:$9 sm:$0xff] %v331
      %v399 = vld [vmem:[#allocation1] sm:$0xff]
      %v400 = vld [vmem:[#allocation1 + $0x9] sm:$0xff]
      %v401 = vld [vmem:[#allocation1 + $0x12] sm:$0xff]
      %v402 = vld [vmem:[#allocation1 + $0x1b] sm:$0xff]
      %v471 = vunpack.c.l.b16 %v332
      %v472 = vunpack.c.l.b16 %v333
      %v473 = vunpack.c.l.b16 %v334
      %v474 = vunpack.c.l.b16 %v335
      %v475 = vunpack.c.l.b16 %v336
      %v476 = vunpack.c.l.b16 %v337
      %v477 = vunpack.c.l.b16 %v338
      %v478 = vunpack.c.l.b16 %v339
      %v479 = vunpack.c.l.b16 %v340
      %v480 = vunpack.c.l.b16 %v341
      %v481 = vunpack.c.l.b16 %v342
      %v482 = vunpack.c.l.b16 %v343
      %v483 = vunpack.c.l.b16 %v344
      %v484 = vunpack.c.l.b16 %v345
      %v485 = vunpack.c.l.b16 %v346
      %v486 = vunpack.c.l.b16 %v347
      %v487 = vunpack.c.l.b16 %v348
      %v488 = vunpack.c.l.b16 %v349
      %v489 = vunpack.c.l.b16 %v350
      %v490 = vunpack.c.l.b16 %v351
      %v491 = vunpack.c.l.b16 %v352
      %v492 = vunpack.c.l.b16 %v353
      %v493 = vunpack.c.l.b16 %v354
      %v494 = vunpack.c.l.b16 %v355
      %v495 = vunpack.c.l.b16 %v356
      %v496 = vunpack.c.l.b16 %v357
      %v497 = vunpack.c.l.b16 %v358
      %v498 = vunpack.c.l.b16 %v359
      %v499 = vunpack.c.l.b16 %v360
      %v500 = vunpack.c.l.b16 %v361
      %v501 = vunpack.c.l.b16 %v362
      %v502 = vunpack.c.l.b16 %v363
      %v503 = vunpack.c.l.b16 %v364
      %v504 = vunpack.c.l.b16 %v365
      %v505 = vunpack.c.l.b16 %v366
      %v506 = vunpack.c.l.b16 %v367
      %v507 = vunpack.c.l.b16 %v368
      %v508 = vunpack.c.l.b16 %v369
      %v509 = vunpack.c.l.b16 %v370
      %v510 = vunpack.c.l.b16 %v371
      %v511 = vunpack.c.l.b16 %v372
      %v512 = vunpack.c.l.b16 %v373
      %v513 = vunpack.c.l.b16 %v374
      %v514 = vunpack.c.l.b16 %v375
      %v515 = vunpack.c.l.b16 %v376
      %v516 = vunpack.c.l.b16 %v377
      %v517 = vunpack.c.l.b16 %v378
      %v518 = vunpack.c.l.b16 %v379
      %v519 = vunpack.c.l.b16 %v380
      %v520 = vunpack.c.l.b16 %v381
      %v521 = vunpack.c.l.b16 %v382
      %v522 = vunpack.c.l.b16 %v383
      %v523 = vunpack.c.l.b16 %v384
      %v524 = vunpack.c.l.b16 %v385
      %v525 = vunpack.c.l.b16 %v386
      %v526 = vunpack.c.l.b16 %v387
      %v527 = vunpack.c.l.b16 %v388
      %v528 = vunpack.c.l.b16 %v389
      %v529 = vunpack.c.l.b16 %v390
      %v530 = vunpack.c.l.b16 %v391
      %v531 = vunpack.c.l.b16 %v392
      %v532 = vunpack.c.l.b16 %v393
      %v533 = vunpack.c.l.b16 %v394
      %v534 = vunpack.c.l.b16 %v395
      %v535 = vpack.c.b16 %v472, %v471
      %v536 = vpack.c.b16 %v474, %v473
      %v537 = vpack.c.b16 %v476, %v475
      %v538 = vpack.c.b16 %v478, %v477
      %v539 = vpack.c.b16 %v480, %v479
      %v540 = vpack.c.b16 %v482, %v481
      %v541 = vpack.c.b16 %v484, %v483
      %v542 = vpack.c.b16 %v486, %v485
      %v543 = vpack.c.b16 %v488, %v487
      %v544 = vpack.c.b16 %v490, %v489
      %v545 = vpack.c.b16 %v492, %v491
      %v546 = vpack.c.b16 %v494, %v493
      %v547 = vpack.c.b16 %v496, %v495
      %v548 = vpack.c.b16 %v498, %v497
      %v549 = vpack.c.b16 %v500, %v499
      %v550 = vpack.c.b16 %v502, %v501
      %v551 = vpack.c.b16 %v504, %v503
      %v552 = vpack.c.b16 %v506, %v505
      %v553 = vpack.c.b16 %v508, %v507
      %v554 = vpack.c.b16 %v510, %v509
      %v555 = vpack.c.b16 %v512, %v511
      %v556 = vpack.c.b16 %v514, %v513
      %v557 = vpack.c.b16 %v516, %v515
      %v558 = vpack.c.b16 %v518, %v517
      %v559 = vpack.c.b16 %v520, %v519
      %v560 = vpack.c.b16 %v522, %v521
      %v561 = vpack.c.b16 %v524, %v523
      %v562 = vpack.c.b16 %v526, %v525
      %v563 = vpack.c.b16 %v528, %v527
      %v564 = vpack.c.b16 %v530, %v529
      %v565 = vpack.c.b16 %v532, %v531
      %v566 = vpack.c.b16 %v534, %v533
      %599 = vmatpush.bf16.msra.mxu0 %v542
      %600 = vmatpush.bf16.msra.mxu0 %v541
      %601 = vmatpush.bf16.msra.mxu0 %v540
      %602 = vmatpush.bf16.msra.mxu0 %v539
      %603 = vmatpush.bf16.msra.mxu0 %v538
      %604 = vmatpush.bf16.msra.mxu0 %v537
      %605 = vmatpush.bf16.msra.mxu0 %v536
      %606 = vmatpush.bf16.msra.mxu0 %v535
      %607 = vmatmul.bf16.gmra.mxu0 %v399
      %v608 = vpop.f32.mrf.mxu0
      %v609 = vadd.f32 %v396, %v608
      %v610 = vpop.f32.mrf.mxu0
      %611 = vdwg.mxu0
      %612 = vmatpush.bf16.msra.mxu0 %v550
      %613 = vmatpush.bf16.msra.mxu0 %v549
      %614 = vmatpush.bf16.msra.mxu0 %v548
      %615 = vmatpush.bf16.msra.mxu0 %v547
      %616 = vmatpush.bf16.msra.mxu0 %v546
      %617 = vmatpush.bf16.msra.mxu0 %v545
      %618 = vmatpush.bf16.msra.mxu0 %v544
      %619 = vmatpush.bf16.msra.mxu0 %v543
      %620 = vmatmul.bf16.gmra.mxu0 %v400
      %v621 = vpop.f32.mrf.mxu0
      %v622 = vadd.f32 %v609, %v621
      %v623 = vpop.f32.mrf.mxu0
      %624 = vdwg.mxu0
      %625 = vmatpush.bf16.msra.mxu0 %v558
      %626 = vmatpush.bf16.msra.mxu0 %v557
      %627 = vmatpush.bf16.msra.mxu0 %v556
      %628 = vmatpush.bf16.msra.mxu0 %v555
      %629 = vmatpush.bf16.msra.mxu0 %v554
      %630 = vmatpush.bf16.msra.mxu0 %v553
      %631 = vmatpush.bf16.msra.mxu0 %v552
      %632 = vmatpush.bf16.msra.mxu0 %v551
      %633 = vmatmul.bf16.gmra.mxu0 %v401
      %v634 = vpop.f32.mrf.mxu0
      %v635 = vadd.f32 %v622, %v634
      %v636 = vpop.f32.mrf.mxu0
      %637 = vdwg.mxu0
      %638 = vmatpush.bf16.msra.mxu0 %v566
      %639 = vmatpush.bf16.msra.mxu0 %v565
      %640 = vmatpush.bf16.msra.mxu0 %v564
      %641 = vmatpush.bf16.msra.mxu0 %v563
      %642 = vmatpush.bf16.msra.mxu0 %v562
      %643 = vmatpush.bf16.msra.mxu0 %v561
      %644 = vmatpush.bf16.msra.mxu0 %v560
      %645 = vmatpush.bf16.msra.mxu0 %v559
      %646 = vmatmul.bf16.gmra.mxu0 %v402
      %v647 = vpop.f32.mrf.mxu0
      %v648 = vadd.f32 %v635, %v647
      %v649 = vpop.f32.mrf.mxu0
      %650 = vdwg.mxu0
      %v651 = vld [vmem:[%s317] sm:$0x1]
      %v652 = vmul.f32 %v648, %v651
      %v653 = vld [vmem:[%s320] sm:$0x1]
      %v654 = vadd.f32 %v652, %v653
      %v655 = vpack.c.bf16 %v654, %v654
      %vm656 = vcmask 1040384
      %vm657 = vsmask.f32 256
      %vm658 = vmand %vm656, %vm657
      %v659 = vld [vmem:[%s330] sm:$0x1]
      %v660 = vsel %vm658, %v655, %v659
      %661 = vst [vmem:[%s330] sm:$0x1] %v660
      %p662 = scmp.lt.s32.totalorder %s21, 0
      %s663 = scalar_select %p662, %s21, 0
      %p664 = scmp.lt.s32.totalorder %s22, 1
      %s665 = scalar_select %p664, %s22, 1
      %p666 = scmp.lt.s32.totalorder %s23, 0
      %s667 = scalar_select %p666, %s23, 0
      %s668 = sadd.s32 %s667, %s665
      %s669 = smul.addr %s663, 2
      %s670 = sadd.s32 %s668, %s669
      %s671 = scalar_lea.vmem %s5, %s670
      // Predicated region
      $region41: #{_lambda_.12} parent=39 // pred_check
        %p672 = pneg %p186
      $region42: #{_lambda_.12} parent=39 // pred_check_branch
        %674 = sbr.rel (%p672) target = $region44
      $region43: #{_lambda_.12} parent=39 // pred_region
        _
      $region44: #{_lambda_.12} parent=39 // pred_fallthru
        _
    $region40: #{_lambda_.12} parent=5 // pred_fallthru
      _
    %p675 = scmp.le.s32.totalorder 2, %s11
    // Predicated region
    $region45: #{_lambda_.12} parent=5 // pred_check
      %p676 = pneg %p675
    $region46: #{_lambda_.12} parent=5 // pred_check_branch
      %678 = sbr.rel (%p676) target = $region48
    $region47: #{_lambda_.12} parent=5 // pred_region
      %s679 = ssub.s32 %s11, 2
      // Predicated region
      $region49: #{_lambda_.12} parent=47 // pred_check
        %p680 = pneg %p192
      $region50: #{_lambda_.12} parent=47 // pred_check_branch
        %682 = sbr.rel (%p680) target = $region52
      $region51: #{_lambda_.12} parent=47 // pred_region
        %p683 = scmp.lt.s32.totalorder %s24, 0
        %s684 = scalar_select %p683, %s24, 0
        %p685 = scmp.lt.s32.totalorder %s25, 1
        %s686 = scalar_select %p685, %s25, 1
        %p687 = scmp.lt.s32.totalorder %s26, 0
        %s688 = scalar_select %p687, %s26, 0
        %s689 = sadd.s32 %s688, %s686
        %s690 = smul.addr %s684, 2
        %s691 = sadd.s32 %s689, %s690
        %s692 = scalar_lea.vmem %s5, %s691
      $region52: #{_lambda_.12} parent=47 // pred_fallthru
        _
    $region48: #{_lambda_.12} parent=5 // pred_fallthru
      _
  $region6: #{_lambda_.12} parent=0 // loop_footer
    %s15 = sadd.s32 1, %s11
  $region7: #{_lambda_.12} parent=0 // loop_footer_branch
    %10 = sbr.rel target = $region3
  $region8: #{_lambda_.12} parent=0 // loop_exit
    _

// kernel: _lambda_.14
$region0: #{_lambda_.14}
  #allocation0 [shape = 'u32[]', space=smem, size = 0x4, offset = 0x4, fixed_abs, tag = 'smem constant byte address 0x4 - core index']
  #allocation1 [shape = 'u32[72,128]{1,0:T(1,128)}', space=vmem, size = 0x9000, scoped, tag = 'internal scratch']
  %s0 = inlined_call_operand.vmem [shape: bf16[8,2,1,128], index: 0, kind: input, shape index: {}]
  %s1 = inlined_call_operand.vmem [shape: f32[2,1,8], index: 1, kind: input, shape index: {}]
  %s2 = inlined_call_operand.vmem [shape: f32[2,1,8], index: 2, kind: input, shape index: {}]
  %s3 = inlined_call_operand.vmem [shape: bf16[8,2,1,8], index: 3, kind: output, shape index: {}]
  %s4 = sld [smem:[#allocation0]]
  $region45: #{_lambda_.14} parent=0
    _
  %s6 = ssub.s32 1, %s4
  %s7 = scalar_select 0, %s6, %s4
  loop: start=0, step=1, limit=18
  $region2: #{_lambda_.14} parent=0 // loop_pre_header
    _
  $region3: #{_lambda_.14} parent=0 // loop_header
    %s9 = sphi 0, %s13
    %p10 = scmp.ge.s32.totalorder %s9, 18
    %s16 = sphi 0, %s35
    %s17 = sphi 0, %s31
    %s18 = sphi 0, %s27
    %s19 = sphi 0, %s16
    %s20 = sphi 0, %s17
    %s21 = sphi 0, %s18
    %s22 = sphi 0, %s19
    %s23 = sphi 0, %s20
    %s24 = sphi 0, %s21
    %s42 = sphi 0, %s44
    %s45 = sphi 0, %s42
    %s46 = sphi 0, %s45
    %s62 = sphi 0, %s46
    %s68 = sphi 0, %s70
    %s71 = sphi 0, %s68
    %s72 = sphi 0, %s71
    %s88 = sphi 0, %s72
    %s94 = sphi 0, %s96
    %s97 = sphi 0, %s94
    %s98 = sphi 0, %s97
    %s114 = sphi 0, %s98
    %s124 = sphi 0, %s126
    %s127 = sphi 0, %s124
    %s128 = sphi 0, %s127
    %s144 = sphi 0, %s128
  $region4: #{_lambda_.14} parent=0 // loop_header_branch
    %12 = sbr.rel (%p10) target = $region8
  $region5: #{_lambda_.14} parent=0 // loop_body
    %s14 = ssub.s32 %s9, 1
    %s15 = ssub.s32 %s9, 2
    %s25 = sadd.s32 1, %s18
    %p26 = scmp.ge.s32.totalorder %s25, 1
    %s27 = scalar_select %p26, 0, %s25
    %s28 = sadd.s32 1, %s17
    %s29 = scalar_select %p26, %s28, %s17
    %p30 = scmp.ge.s32.totalorder %s29, 2
    %s31 = scalar_select %p30, 0, %s29
    %s32 = sadd.s32 1, %s16
    %s33 = scalar_select %p30, %s32, %s16
    %p34 = scmp.ge.s32.totalorder %s33, 8
    %s35 = scalar_select %p34, 0, %s33
    %s36 = ssub.s32 %s16, %s35
    %s37 = ssub.s32 %s17, %s31
    %s38 = sor.u32 %s36, %s37
    %s39 = ssub.s32 %s18, %s27
    %s40 = sor.u32 %s38, %s39
    %p41 = scmp.eq.s32.totalorder %s40, 0
    %s43 = sadd.s32 %s42, 1
    %s44 = scalar_select %p41, %s42, %s43
    %p47 = pneg %p41
    %p48 = scmp.eq.s32.totalorder %s9, 15
    %p49 = por %p47, %p48
    %p50 = scmp.ne.s32.totalorder %s42, %s45
    %p51 = scmp.eq.s32.totalorder %s9, 0
    %p52 = por %p50, %p51
    %p53 = scmp.ne.s32.totalorder %s42, %s45
    %p54 = scmp.eq.s32.totalorder %s14, 15
    %p55 = por %p53, %p54
    %p56 = scmp.ne.s32.totalorder %s45, %s46
    %p57 = scmp.eq.s32.totalorder %s14, 0
    %p58 = por %p56, %p57
    %p59 = scmp.ne.s32.totalorder %s45, %s46
    %p60 = scmp.eq.s32.totalorder %s15, 15
    %p61 = por %p59, %p60
    %p63 = scmp.ne.s32.totalorder %s46, %s62
    %p64 = scmp.eq.s32.totalorder %s15, 0
    %p65 = por %p63, %p64
    %s66 = ssub.s32 %s17, %s31
    %p67 = scmp.eq.s32.totalorder %s66, 0
    %s69 = sadd.s32 %s68, 1
    %s70 = scalar_select %p67, %s68, %s69
    %p73 = pneg %p67
    %p74 = scmp.eq.s32.totalorder %s9, 15
    %p75 = por %p73, %p74
    %p76 = scmp.ne.s32.totalorder %s68, %s71
    %p77 = scmp.eq.s32.totalorder %s9, 0
    %p78 = por %p76, %p77
    %p79 = scmp.ne.s32.totalorder %s68, %s71
    %p80 = scmp.eq.s32.totalorder %s14, 15
    %p81 = por %p79, %p80
    %p82 = scmp.ne.s32.totalorder %s71, %s72
    %p83 = scmp.eq.s32.totalorder %s14, 0
    %p84 = por %p82, %p83
    %p85 = scmp.ne.s32.totalorder %s71, %s72
    %p86 = scmp.eq.s32.totalorder %s15, 15
    %p87 = por %p85, %p86
    %p89 = scmp.ne.s32.totalorder %s72, %s88
    %p90 = scmp.eq.s32.totalorder %s15, 0
    %p91 = por %p89, %p90
    %s92 = ssub.s32 %s17, %s31
    %p93 = scmp.eq.s32.totalorder %s92, 0
    %s95 = sadd.s32 %s94, 1
    %s96 = scalar_select %p93, %s94, %s95
    %p99 = pneg %p93
    %p100 = scmp.eq.s32.totalorder %s9, 15
    %p101 = por %p99, %p100
    %p102 = scmp.ne.s32.totalorder %s94, %s97
    %p103 = scmp.eq.s32.totalorder %s9, 0
    %p104 = por %p102, %p103
    %p105 = scmp.ne.s32.totalorder %s94, %s97
    %p106 = scmp.eq.s32.totalorder %s14, 15
    %p107 = por %p105, %p106
    %p108 = scmp.ne.s32.totalorder %s97, %s98
    %p109 = scmp.eq.s32.totalorder %s14, 0
    %p110 = por %p108, %p109
    %p111 = scmp.ne.s32.totalorder %s97, %s98
    %p112 = scmp.eq.s32.totalorder %s15, 15
    %p113 = por %p111, %p112
    %p115 = scmp.ne.s32.totalorder %s98, %s114
    %p116 = scmp.eq.s32.totalorder %s15, 0
    %p117 = por %p115, %p116
    %s118 = ssub.s32 %s16, %s35
    %s119 = ssub.s32 %s17, %s31
    %s120 = sor.u32 %s118, %s119
    %s121 = ssub.s32 %s18, %s27
    %s122 = sor.u32 %s120, %s121
    %p123 = scmp.eq.s32.totalorder %s122, 0
    %s125 = sadd.s32 %s124, 1
    %s126 = scalar_select %p123, %s124, %s125
    %p129 = pneg %p123
    %p130 = scmp.eq.s32.totalorder %s9, 15
    %p131 = por %p129, %p130
    %p132 = scmp.ne.s32.totalorder %s124, %s127
    %p133 = scmp.eq.s32.totalorder %s9, 0
    %p134 = por %p132, %p133
    %p135 = scmp.ne.s32.totalorder %s124, %s127
    %p136 = scmp.eq.s32.totalorder %s14, 15
    %p137 = por %p135, %p136
    %p138 = scmp.ne.s32.totalorder %s127, %s128
    %p139 = scmp.eq.s32.totalorder %s14, 0
    %p140 = por %p138, %p139
    %p141 = scmp.ne.s32.totalorder %s127, %s128
    %p142 = scmp.eq.s32.totalorder %s15, 15
    %p143 = por %p141, %p142
    %p145 = scmp.ne.s32.totalorder %s128, %s144
    %p146 = scmp.eq.s32.totalorder %s15, 0
    %p147 = por %p145, %p146
    %p148 = scmp.le.s32.totalorder 1, %s9
    %p149 = scmp.lt.s32.totalorder %s9, 17
    %p150 = pnand %p148, %p149
    %p151 = pneg %p150
    // Predicated region
    $region9: #{_lambda_.14} parent=5 // pred_check
      _
    $region10: #{_lambda_.14} parent=5 // pred_check_branch
      %153 = sbr.rel (%p150) target = $region12
    $region11: #{_lambda_.14} parent=5 // pred_region
      %s154 = ssub.s32 %s9, 1
    $region12: #{_lambda_.14} parent=5 // pred_fallthru
      _
    %p155 = scmp.lt.s32.totalorder %s9, 16
    // Predicated region
    $region13: #{_lambda_.14} parent=5 // pred_check
      %p156 = pneg %p155
    $region14: #{_lambda_.14} parent=5 // pred_check_branch
      %158 = sbr.rel (%p156) target = $region16
    $region15: #{_lambda_.14} parent=5 // pred_region
      // Predicated region
      $region17: #{_lambda_.14} parent=15 // pred_check
        %p159 = pneg %p52
      $region18: #{_lambda_.14} parent=15 // pred_check_branch
        %161 = sbr.rel (%p159) target = $region20
      $region19: #{_lambda_.14} parent=15 // pred_region
        %p162 = scmp.lt.s32.totalorder %s16, 7
        %s163 = scalar_select %p162, %s16, 7
        %p164 = scmp.lt.s32.totalorder %s17, 1
        %s165 = scalar_select %p164, %s17, 1
        %p166 = scmp.lt.s32.totalorder %s18, 0
        %s167 = scalar_select %p166, %s18, 0
        %s168 = sadd.s32 %s167, %s165
        %s169 = smul.addr %s163, 2
        %s170 = sadd.s32 %s168, %s169
        %s171 = scalar_lea.vmem %s0, %s170
      $region20: #{_lambda_.14} parent=15 // pred_fallthru
        _
      // Predicated region
      $region21: #{_lambda_.14} parent=15 // pred_check
        %p172 = pneg %p78
      $region22: #{_lambda_.14} parent=15 // pred_check_branch
        %174 = sbr.rel (%p172) target = $region24
      $region23: #{_lambda_.14} parent=15 // pred_region
        %p175 = scmp.lt.s32.totalorder %s17, 1
        %s176 = scalar_select %p175, %s17, 1
        %s177 = scalar_lea.vmem %s1, %s176
      $region24: #{_lambda_.14} parent=15 // pred_fallthru
        _
      // Predicated region
      $region25: #{_lambda_.14} parent=15 // pred_check
        %p178 = pneg %p104
      $region26: #{_lambda_.14} parent=15 // pred_check_branch
        %180 = sbr.rel (%p178) target = $region28
      $region27: #{_lambda_.14} parent=15 // pred_region
        %p181 = scmp.lt.s32.totalorder %s17, 1
        %s182 = scalar_select %p181, %s17, 1
        %s183 = scalar_lea.vmem %s2, %s182
      $region28: #{_lambda_.14} parent=15 // pred_fallthru
        _
    $region16: #{_lambda_.14} parent=5 // pred_fallthru
      _
    %p184 = scmp.le.s32.totalorder 1, %s9
    %p185 = scmp.lt.s32.totalorder %s9, 17
    %p186 = pnand %p184, %p185
    %p187 = pneg %p186
    // Predicated region
    $region29: #{_lambda_.14} parent=5 // pred_check
      _
    $region30: #{_lambda_.14} parent=5 // pred_check_branch
      %189 = sbr.rel (%p186) target = $region32
    $region31: #{_lambda_.14} parent=5 // pred_region
      %s190 = ssub.s32 %s9, 1
      %p191 = scmp.lt.s32.totalorder %s19, 7
      %s192 = scalar_select %p191, %s19, 7
      %p193 = scmp.lt.s32.totalorder %s20, 1
      %s194 = scalar_select %p193, %s20, 1
      %p195 = scmp.lt.s32.totalorder %s21, 0
      %s196 = scalar_select %p195, %s21, 0
      %s197 = sadd.s32 %s196, %s194
      %s198 = smul.addr %s192, 2
      %s199 = sadd.s32 %s197, %s198
      %s200 = scalar_lea.vmem %s0, %s199
      %p201 = pneg %p58
      %p202 = pneg %p55
      %p203 = scmp.lt.s32.totalorder %s20, 1
      %s204 = scalar_select %p203, %s20, 1
      %s205 = scalar_lea.vmem %s1, %s204
      %p206 = pneg %p84
      %p207 = pneg %p81
      %p208 = scmp.lt.s32.totalorder %s20, 1
      %s209 = scalar_select %p208, %s20, 1
      %s210 = scalar_lea.vmem %s2, %s209
      %p211 = pneg %p110
      %p212 = pneg %p107
      %p213 = pneg %p140
      %p214 = pneg %p137
      %p215 = scmp.lt.s32.totalorder %s19, 7
      %s216 = scalar_select %p215, %s19, 7
      %p217 = scmp.lt.s32.totalorder %s20, 1
      %s218 = scalar_select %p217, %s20, 1
      %p219 = scmp.lt.s32.totalorder %s21, 0
      %s220 = scalar_select %p219, %s21, 0
      %s221 = sadd.s32 %s220, %s218
      %s222 = smul.addr %s216, 2
      %s223 = sadd.s32 %s221, %s222
      %s224 = scalar_lea.vmem %s3, %s223
      %p225 = scmp.lt.s32.totalorder %s19, 7
      %s226 = scalar_select %p225, %s19, 7
      %p227 = scmp.lt.s32.totalorder %s20, 1
      %s228 = scalar_select %p227, %s20, 1
      %p229 = scmp.lt.s32.totalorder %s21, 0
      %s230 = scalar_select %p229, %s21, 0
      %s231 = sadd.s32 %s230, %s228
      %s232 = smul.addr %s226, 2
      %s233 = sadd.s32 %s231, %s232
      %s234 = scalar_lea.vmem %s0, %s233
      %p235 = scmp.lt.s32.totalorder %s20, 1
      %s236 = scalar_select %p235, %s20, 1
      %s237 = scalar_lea.vmem %s1, %s236
      %p238 = scmp.lt.s32.totalorder %s20, 1
      %s239 = scalar_select %p238, %s20, 1
      %s240 = scalar_lea.vmem %s2, %s239
      %p241 = scmp.lt.s32.totalorder %s19, 7
      %s242 = scalar_select %p241, %s19, 7
      %p243 = scmp.lt.s32.totalorder %s20, 1
      %s244 = scalar_select %p243, %s20, 1
      %p245 = scmp.lt.s32.totalorder %s21, 0
      %s246 = scalar_select %p245, %s21, 0
      %s247 = sadd.s32 %s246, %s244
      %s248 = smul.addr %s242, 2
      %s249 = sadd.s32 %s247, %s248
      %s250 = scalar_lea.vmem %s3, %s249
      %v251 = vld [vmem:[%s234] sm:$0x1]
      %v252 = vunpack.c.l.bf16 %v251
      %v253 = vld [vmem:[%s237] sm:$0x1]
      %v254 = vmul.f32 %v252, %v253
      %v255 = vld [vmem:[%s240] sm:$0x1]
      %v256 = vadd.f32 %v254, %v255
      %v257 = vsub.f32 0.0, %v256
      %v258 = vmul.f32 %v257, 1.442695
      %v259 = vpow.pop %v258
      %v260 = vadd.f32 %v259, 1.0
      %v261 = vrcp.pop %v260
      %v262 = vmul.f32 %v260, %v261
      %v263 = vsub.f32 1.0, %v262
      %v264 = vmul.f32 %v261, %v263
      %v265 = vadd.f32 %v261, %v264
      %vm266 = vweird.f32 %v260
      %vm267 = vweird.f32 %v261
      %vm268 = vmor %vm266, %vm267
      %v269 = vsel %vm268, %v261, %v265
      %v270 = vand.u32 2147483647, %v260
      %vm271 = vcmp.eq.f32.partialorder %v270, 8.507059e+37
      %v272 = vand.u32 %v260, 2147483648
      %v273 = vor.u32 1.1754944e-38, %v272
      %v274 = vsel %vm271, %v273, %v269
      %v275 = vmul.f32 1.0, %v274
      %v276 = vpack.c.bf16 %v275, %v275
      %vm277 = vcmask 57344
      %vm278 = vsmask.f32 256
      %vm279 = vmand %vm277, %vm278
      %v280 = vld [vmem:[%s250] sm:$0x1]
      %v281 = vsel %vm279, %v276, %v280
      %282 = vst [vmem:[%s250] sm:$0x1] %v281
      %p283 = scmp.lt.s32.totalorder %s19, 7
      %s284 = scalar_select %p283, %s19, 7
      %p285 = scmp.lt.s32.totalorder %s20, 1
      %s286 = scalar_select %p285, %s20, 1
      %p287 = scmp.lt.s32.totalorder %s21, 0
      %s288 = scalar_select %p287, %s21, 0
      %s289 = sadd.s32 %s288, %s286
      %s290 = smul.addr %s284, 2
      %s291 = sadd.s32 %s289, %s290
      %s292 = scalar_lea.vmem %s3, %s291
      // Predicated region
      $region33: #{_lambda_.14} parent=31 // pred_check
        %p293 = pneg %p137
      $region34: #{_lambda_.14} parent=31 // pred_check_branch
        %295 = sbr.rel (%p293) target = $region36
      $region35: #{_lambda_.14} parent=31 // pred_region
        _
      $region36: #{_lambda_.14} parent=31 // pred_fallthru
        _
    $region32: #{_lambda_.14} parent=5 // pred_fallthru
      _
    %p296 = scmp.le.s32.totalorder 2, %s9
    // Predicated region
    $region37: #{_lambda_.14} parent=5 // pred_check
      %p297 = pneg %p296
    $region38: #{_lambda_.14} parent=5 // pred_check_branch
      %299 = sbr.rel (%p297) target = $region40
    $region39: #{_lambda_.14} parent=5 // pred_region
      %s300 = ssub.s32 %s9, 2
      // Predicated region
      $region41: #{_lambda_.14} parent=39 // pred_check
        %p301 = pneg %p143
      $region42: #{_lambda_.14} parent=39 // pred_check_branch
        %303 = sbr.rel (%p301) target = $region44
      $region43: #{_lambda_.14} parent=39 // pred_region
        %p304 = scmp.lt.s32.totalorder %s22, 7
        %s305 = scalar_select %p304, %s22, 7
        %p306 = scmp.lt.s32.totalorder %s23, 1
        %s307 = scalar_select %p306, %s23, 1
        %p308 = scmp.lt.s32.totalorder %s24, 0
        %s309 = scalar_select %p308, %s24, 0
        %s310 = sadd.s32 %s309, %s307
        %s311 = smul.addr %s305, 2
        %s312 = sadd.s32 %s310, %s311
        %s313 = scalar_lea.vmem %s3, %s312
      $region44: #{_lambda_.14} parent=39 // pred_fallthru
        _
    $region40: #{_lambda_.14} parent=5 // pred_fallthru
      _
  $region6: #{_lambda_.14} parent=0 // loop_footer
    %s13 = sadd.s32 1, %s9
  $region7: #{_lambda_.14} parent=0 // loop_footer_branch
    %8 = sbr.rel target = $region3
  $region8: #{_lambda_.14} parent=0 // loop_exit
    _

// kernel: _lambda_.13
$region0: #{_lambda_.13}
  #allocation0 [shape = 'u32[]', space=smem, size = 0x4, offset = 0x4, fixed_abs, tag = 'smem constant byte address 0x4 - core index']
  #allocation1 [shape = 'u32[72,128]{1,0:T(1,128)}', space=vmem, size = 0x9000, scoped, tag = 'internal scratch']
  %s0 = inlined_call_operand.vmem [shape: bf16[8,2,1,64], index: 0, kind: input, shape index: {}]
  %s1 = inlined_call_operand.vmem [shape: bf16[8,64,128], index: 1, kind: input, shape index: {}]
  %s2 = inlined_call_operand.vmem [shape: f32[1,128], index: 2, kind: input, shape index: {}]
  %s3 = inlined_call_operand.vmem [shape: bf16[8,2,1,128], index: 3, kind: output, shape index: {0}]
  %s4 = inlined_call_operand.vmem [shape: f32[8,2,2,128], index: 4, kind: output, shape index: {1}]
  %5 = xla_tuple %s3, %s4
  %s6 = sld [smem:[#allocation0]]
  $region57: #{_lambda_.13} parent=0
    _
  %s8 = ssub.s32 1, %s6
  %s9 = scalar_select 0, %s8, %s6
  loop: start=0, step=1, limit=18
  $region2: #{_lambda_.13} parent=0 // loop_pre_header
    _
  $region3: #{_lambda_.13} parent=0 // loop_header
    %s11 = sphi 0, %s15
    %p12 = scmp.ge.s32.totalorder %s11, 18
    %s18 = sphi 0, %s37
    %s19 = sphi 0, %s33
    %s20 = sphi 0, %s29
    %s21 = sphi 0, %s18
    %s22 = sphi 0, %s19
    %s23 = sphi 0, %s20
    %s24 = sphi 0, %s21
    %s25 = sphi 0, %s22
    %s26 = sphi 0, %s23
    %s44 = sphi 0, %s46
    %s47 = sphi 0, %s44
    %s48 = sphi 0, %s47
    %s64 = sphi 0, %s48
    %s70 = sphi 0, %s72
    %s73 = sphi 0, %s70
    %s74 = sphi 0, %s73
    %s90 = sphi 0, %s74
    %s94 = sphi 0, %s94
    %s96 = sphi 0, %s94
    %s97 = sphi 0, %s96
    %s111 = sphi 0, %s97
    %s121 = sphi 0, %s123
    %s124 = sphi 0, %s121
    %s125 = sphi 0, %s124
    %s141 = sphi 0, %s125
    %s149 = sphi 0, %s151
    %s152 = sphi 0, %s149
    %s153 = sphi 0, %s152
    %s169 = sphi 0, %s153
  $region4: #{_lambda_.13} parent=0 // loop_header_branch
    %14 = sbr.rel (%p12) target = $region8
  $region5: #{_lambda_.13} parent=0 // loop_body
    %s16 = ssub.s32 %s11, 1
    %s17 = ssub.s32 %s11, 2
    %s27 = sadd.s32 1, %s20
    %p28 = scmp.ge.s32.totalorder %s27, 1
    %s29 = scalar_select %p28, 0, %s27
    %s30 = sadd.s32 1, %s19
    %s31 = scalar_select %p28, %s30, %s19
    %p32 = scmp.ge.s32.totalorder %s31, 2
    %s33 = scalar_select %p32, 0, %s31
    %s34 = sadd.s32 1, %s18
    %s35 = scalar_select %p32, %s34, %s18
    %p36 = scmp.ge.s32.totalorder %s35, 8
    %s37 = scalar_select %p36, 0, %s35
    %s38 = ssub.s32 %s18, %s37
    %s39 = ssub.s32 %s19, %s33
    %s40 = sor.u32 %s38, %s39
    %s41 = ssub.s32 %s20, %s29
    %s42 = sor.u32 %s40, %s41
    %p43 = scmp.eq.s32.totalorder %s42, 0
    %s45 = sadd.s32 %s44, 1
    %s46 = scalar_select %p43, %s44, %s45
    %p49 = pneg %p43
    %p50 = scmp.eq.s32.totalorder %s11, 15
    %p51 = por %p49, %p50
    %p52 = scmp.ne.s32.totalorder %s44, %s47
    %p53 = scmp.eq.s32.totalorder %s11, 0
    %p54 = por %p52, %p53
    %p55 = scmp.ne.s32.totalorder %s44, %s47
    %p56 = scmp.eq.s32.totalorder %s16, 15
    %p57 = por %p55, %p56
    %p58 = scmp.ne.s32.totalorder %s47, %s48
    %p59 = scmp.eq.s32.totalorder %s16, 0
    %p60 = por %p58, %p59
    %p61 = scmp.ne.s32.totalorder %s47, %s48
    %p62 = scmp.eq.s32.totalorder %s17, 15
    %p63 = por %p61, %p62
    %p65 = scmp.ne.s32.totalorder %s48, %s64
    %p66 = scmp.eq.s32.totalorder %s17, 0
    %p67 = por %p65, %p66
    %s68 = ssub.s32 %s18, %s37
    %p69 = scmp.eq.s32.totalorder %s68, 0
    %s71 = sadd.s32 %s70, 1
    %s72 = scalar_select %p69, %s70, %s71
    %p75 = pneg %p69
    %p76 = scmp.eq.s32.totalorder %s11, 15
    %p77 = por %p75, %p76
    %p78 = scmp.ne.s32.totalorder %s70, %s73
    %p79 = scmp.eq.s32.totalorder %s11, 0
    %p80 = por %p78, %p79
    %p81 = scmp.ne.s32.totalorder %s70, %s73
    %p82 = scmp.eq.s32.totalorder %s16, 15
    %p83 = por %p81, %p82
    %p84 = scmp.ne.s32.totalorder %s73, %s74
    %p85 = scmp.eq.s32.totalorder %s16, 0
    %p86 = por %p84, %p85
    %p87 = scmp.ne.s32.totalorder %s73, %s74
    %p88 = scmp.eq.s32.totalorder %s17, 15
    %p89 = por %p87, %p88
    %p91 = scmp.ne.s32.totalorder %s74, %s90
    %p92 = scmp.eq.s32.totalorder %s17, 0
    %p93 = por %p91, %p92
    %s95 = sadd.s32 %s94, 1
    %p98 = scmp.eq.s32.totalorder %s11, 15
    %p99 = scmp.ne.s32.totalorder %s94, %s96
    %p100 = scmp.eq.s32.totalorder %s11, 0
    %p101 = por %p99, %p100
    %p102 = scmp.ne.s32.totalorder %s94, %s96
    %p103 = scmp.eq.s32.totalorder %s16, 15
    %p104 = por %p102, %p103
    %p105 = scmp.ne.s32.totalorder %s96, %s97
    %p106 = scmp.eq.s32.totalorder %s16, 0
    %p107 = por %p105, %p106
    %p108 = scmp.ne.s32.totalorder %s96, %s97
    %p109 = scmp.eq.s32.totalorder %s17, 15
    %p110 = por %p108, %p109
    %p112 = scmp.ne.s32.totalorder %s97, %s111
    %p113 = scmp.eq.s32.totalorder %s17, 0
    %p114 = por %p112, %p113
    %s115 = ssub.s32 %s18, %s37
    %s116 = ssub.s32 %s19, %s33
    %s117 = sor.u32 %s115, %s116
    %s118 = ssub.s32 %s20, %s29
    %s119 = sor.u32 %s117, %s118
    %p120 = scmp.eq.s32.totalorder %s119, 0
    %s122 = sadd.s32 %s121, 1
    %s123 = scalar_select %p120, %s121, %s122
    %p126 = pneg %p120
    %p127 = scmp.eq.s32.totalorder %s11, 15
    %p128 = por %p126, %p127
    %p129 = scmp.ne.s32.totalorder %s121, %s124
    %p130 = scmp.eq.s32.totalorder %s11, 0
    %p131 = por %p129, %p130
    %p132 = scmp.ne.s32.totalorder %s121, %s124
    %p133 = scmp.eq.s32.totalorder %s16, 15
    %p134 = por %p132, %p133
    %p135 = scmp.ne.s32.totalorder %s124, %s125
    %p136 = scmp.eq.s32.totalorder %s16, 0
    %p137 = por %p135, %p136
    %p138 = scmp.ne.s32.totalorder %s124, %s125
    %p139 = scmp.eq.s32.totalorder %s17, 15
    %p140 = por %p138, %p139
    %p142 = scmp.ne.s32.totalorder %s125, %s141
    %p143 = scmp.eq.s32.totalorder %s17, 0
    %p144 = por %p142, %p143
    %s145 = ssub.s32 %s18, %s37
    %s146 = ssub.s32 %s19, %s33
    %s147 = sor.u32 %s145, %s146
    %p148 = scmp.eq.s32.totalorder %s147, 0
    %s150 = sadd.s32 %s149, 1
    %s151 = scalar_select %p148, %s149, %s150
    %p154 = pneg %p148
    %p155 = scmp.eq.s32.totalorder %s11, 15
    %p156 = por %p154, %p155
    %p157 = scmp.ne.s32.totalorder %s149, %s152
    %p158 = scmp.eq.s32.totalorder %s11, 0
    %p159 = por %p157, %p158
    %p160 = scmp.ne.s32.totalorder %s149, %s152
    %p161 = scmp.eq.s32.totalorder %s16, 15
    %p162 = por %p160, %p161
    %p163 = scmp.ne.s32.totalorder %s152, %s153
    %p164 = scmp.eq.s32.totalorder %s16, 0
    %p165 = por %p163, %p164
    %p166 = scmp.ne.s32.totalorder %s152, %s153
    %p167 = scmp.eq.s32.totalorder %s17, 15
    %p168 = por %p166, %p167
    %p170 = scmp.ne.s32.totalorder %s153, %s169
    %p171 = scmp.eq.s32.totalorder %s17, 0
    %p172 = por %p170, %p171
    %p173 = scmp.le.s32.totalorder 1, %s11
    %p174 = scmp.lt.s32.totalorder %s11, 17
    %p175 = pnand %p173, %p174
    %p176 = pneg %p175
    // Predicated region
    $region9: #{_lambda_.13} parent=5 // pred_check
      _
    $region10: #{_lambda_.13} parent=5 // pred_check_branch
      %178 = sbr.rel (%p175) target = $region12
    $region11: #{_lambda_.13} parent=5 // pred_region
      %s179 = ssub.s32 %s11, 1
      // Predicated region
      $region13: #{_lambda_.13} parent=11 // pred_check
        %p180 = pneg %p107
      $region14: #{_lambda_.13} parent=11 // pred_check_branch
        %182 = sbr.rel (%p180) target = $region16
      $region15: #{_lambda_.13} parent=11 // pred_region
        _
      $region16: #{_lambda_.13} parent=11 // pred_fallthru
        _
    $region12: #{_lambda_.13} parent=5 // pred_fallthru
      _
    %p183 = scmp.lt.s32.totalorder %s11, 16
    // Predicated region
    $region17: #{_lambda_.13} parent=5 // pred_check
      %p184 = pneg %p183
    $region18: #{_lambda_.13} parent=5 // pred_check_branch
      %186 = sbr.rel (%p184) target = $region20
    $region19: #{_lambda_.13} parent=5 // pred_region
      // Predicated region
      $region21: #{_lambda_.13} parent=19 // pred_check
        %p187 = pneg %p54
      $region22: #{_lambda_.13} parent=19 // pred_check_branch
        %189 = sbr.rel (%p187) target = $region24
      $region23: #{_lambda_.13} parent=19 // pred_region
        %p190 = scmp.lt.s32.totalorder %s18, 7
        %s191 = scalar_select %p190, %s18, 7
        %p192 = scmp.lt.s32.totalorder %s19, 1
        %s193 = scalar_select %p192, %s19, 1
        %p194 = scmp.lt.s32.totalorder %s20, 0
        %s195 = scalar_select %p194, %s20, 0
        %s196 = sadd.s32 %s195, %s193
        %s197 = smul.addr %s191, 2
        %s198 = sadd.s32 %s196, %s197
        %s199 = scalar_lea.vmem %s0, %s198
      $region24: #{_lambda_.13} parent=19 // pred_fallthru
        _
      // Predicated region
      $region25: #{_lambda_.13} parent=19 // pred_check
        %p200 = pneg %p80
      $region26: #{_lambda_.13} parent=19 // pred_check_branch
        %202 = sbr.rel (%p200) target = $region28
      $region27: #{_lambda_.13} parent=19 // pred_region
        %p203 = scmp.lt.s32.totalorder %s18, 7
        %s204 = scalar_select %p203, %s18, 7
        %s205 = smul.addr %s204, 8
        %s206 = smul.addr %s205, 4
        %s207 = scalar_lea.vmem %s1, %s206
      $region28: #{_lambda_.13} parent=19 // pred_fallthru
        _
    $region20: #{_lambda_.13} parent=5 // pred_fallthru
      _
    %p208 = scmp.le.s32.totalorder 1, %s11
    %p209 = scmp.lt.s32.totalorder %s11, 17
    %p210 = pnand %p208, %p209
    %p211 = pneg %p210
    // Predicated region
    $region29: #{_lambda_.13} parent=5 // pred_check
      _
    $region30: #{_lambda_.13} parent=5 // pred_check_branch
      %213 = sbr.rel (%p210) target = $region32
    $region31: #{_lambda_.13} parent=5 // pred_region
      %s214 = ssub.s32 %s11, 1
      %p215 = scmp.lt.s32.totalorder %s21, 7
      %s216 = scalar_select %p215, %s21, 7
      %p217 = scmp.lt.s32.totalorder %s22, 1
      %s218 = scalar_select %p217, %s22, 1
      %p219 = scmp.lt.s32.totalorder %s23, 0
      %s220 = scalar_select %p219, %s23, 0
      %s221 = sadd.s32 %s220, %s218
      %s222 = smul.addr %s216, 2
      %s223 = sadd.s32 %s221, %s222
      %s224 = scalar_lea.vmem %s0, %s223
      %p225 = pneg %p60
      %p226 = pneg %p57
      %p227 = scmp.lt.s32.totalorder %s21, 7
      %s228 = scalar_select %p227, %s21, 7
      %s229 = smul.addr %s228, 8
      %s230 = smul.addr %s229, 4
      %s231 = scalar_lea.vmem %s1, %s230
      %p232 = pneg %p86
      %p233 = pneg %p83
      %p234 = pneg %p107
      %p235 = pneg %p104
      %p236 = pneg %p137
      %p237 = pneg %p134
      %p238 = scmp.lt.s32.totalorder %s21, 7
      %s239 = scalar_select %p238, %s21, 7
      %p240 = scmp.lt.s32.totalorder %s22, 1
      %s241 = scalar_select %p240, %s22, 1
      %p242 = scmp.lt.s32.totalorder %s23, 0
      %s243 = scalar_select %p242, %s23, 0
      %s244 = sadd.s32 %s243, %s241
      %s245 = smul.addr %s239, 2
      %s246 = sadd.s32 %s244, %s245
      %s247 = scalar_lea.vmem %s3, %s246
      %p248 = pneg %p165
      %p249 = pneg %p162
      %p250 = scmp.lt.s32.totalorder %s21, 7
      %s251 = scalar_select %p250, %s21, 7
      %p252 = scmp.lt.s32.totalorder %s22, 1
      %s253 = scalar_select %p252, %s22, 1
      %s254 = smul.addr %s251, 2
      %s255 = sadd.s32 %s253, %s254
      %s256 = smul.addr %s255, 2
      %s257 = scalar_lea.vmem %s4, %s256
      %p258 = scmp.lt.s32.totalorder %s21, 7
      %s259 = scalar_select %p258, %s21, 7
      %p260 = scmp.lt.s32.totalorder %s22, 1
      %s261 = scalar_select %p260, %s22, 1
      %p262 = scmp.lt.s32.totalorder %s23, 0
      %s263 = scalar_select %p262, %s23, 0
      %s264 = sadd.s32 %s263, %s261
      %s265 = smul.addr %s259, 2
      %s266 = sadd.s32 %s264, %s265
      %s267 = scalar_lea.vmem %s0, %s266
      %p268 = scmp.lt.s32.totalorder %s21, 7
      %s269 = scalar_select %p268, %s21, 7
      %s270 = smul.addr %s269, 8
      %s271 = smul.addr %s270, 4
      %s272 = scalar_lea.vmem %s1, %s271
      %p273 = scmp.lt.s32.totalorder %s21, 7
      %s274 = scalar_select %p273, %s21, 7
      %p275 = scmp.lt.s32.totalorder %s22, 1
      %s276 = scalar_select %p275, %s22, 1
      %p277 = scmp.lt.s32.totalorder %s23, 0
      %s278 = scalar_select %p277, %s23, 0
      %s279 = sadd.s32 %s278, %s276
      %s280 = smul.addr %s274, 2
      %s281 = sadd.s32 %s279, %s280
      %s282 = scalar_lea.vmem %s3, %s281
      %p283 = scmp.lt.s32.totalorder %s21, 7
      %s284 = scalar_select %p283, %s21, 7
      %p285 = scmp.lt.s32.totalorder %s22, 1
      %s286 = scalar_select %p285, %s22, 1
      %s287 = smul.addr %s284, 2
      %s288 = sadd.s32 %s286, %s287
      %s289 = smul.addr %s288, 2
      %s290 = scalar_lea.vmem %s4, %s289
      %v292 = vld [vmem:[%s267] sm:$0x1]
      %v293 = vld [vmem:[%s272] sm:$0xf]
      %v294 = vld [vmem:[%s272 + $0x4] sm:$0xf]
      %v295 = vld [vmem:[%s272 + $0x8] sm:$0xf]
      %v296 = vld [vmem:[%s272 + $0xc] sm:$0xf]
      %v297 = vld [vmem:[%s272 + $0x10] sm:$0xf]
      %v298 = vld [vmem:[%s272 + $0x14] sm:$0xf]
      %v299 = vld [vmem:[%s272 + $0x18] sm:$0xf]
      %v300 = vld [vmem:[%s272 + $0x1c] sm:$0xf]
      %v301 = vld [vmem:[%s2] sm:$0x1]
      %v310 = vunpack.c.l.b16 %v293
      %v311 = vunpack.c.l.b16 %v294
      %v312 = vunpack.c.l.b16 %v295
      %v313 = vunpack.c.l.b16 %v296
      %v314 = vunpack.c.l.b16 %v297
      %v315 = vunpack.c.l.b16 %v298
      %v316 = vunpack.c.l.b16 %v299
      %v317 = vunpack.c.l.b16 %v300
      %v318 = vpack.c.b16 %v311, %v310
      %v319 = vpack.c.b16 %v313, %v312
      %v320 = vpack.c.b16 %v315, %v314
      %v321 = vpack.c.b16 %v317, %v316
      %vm326 = vcmask 523264
      %v328 = vsel %vm326, %v292, 0
      %330 = vmatpush.bf16.msra.mxu0 0
      %331 = vmatpush.bf16.msra.mxu0 0
      %332 = vmatpush.bf16.msra.mxu0 0
      %333 = vmatpush.bf16.msra.mxu0 0
      %334 = vmatpush.bf16.msra.mxu0 %v321
      %335 = vmatpush.bf16.msra.mxu0 %v320
      %336 = vmatpush.bf16.msra.mxu0 %v319
      %337 = vmatpush.bf16.msra.mxu0 %v318
      %338 = vmatmul.bf16.gmra.mxu0 %v328
      %v339 = vpop.f32.mrf.mxu0
      %v340 = vadd.f32 %v301, %v339
      %v341 = vpop.f32.mrf.mxu0
      %342 = vdwg.mxu0
      %v343 = vsub.f32 %v340, %v301
      %p344 = scmp.eq.s32.totalorder %s23, 0
      // Predicated region
      $region33: #{_lambda_.13} parent=31 // pred_check
        %p345 = pneg %p344
      $region34: #{_lambda_.13} parent=31 // pred_check_branch
        %347 = sbr.rel (%p345) target = $region36
      $region35: #{_lambda_.13} parent=31 // pred_region
        %348 = vst [vmem:[%s290] sm:$0x3] 0.0
      $region36: #{_lambda_.13} parent=31 // pred_fallthru
        _
      %v349 = vadd.f32 %v343, 0.0
      %v350 = vmul.f32 %v343, %v343
      %v351 = vadd.f32 %v350, 0.0
      %v352 = vld [vmem:[%s290] sm:$0x1]
      %v353 = vadd.f32 %v352, %v349
      %354 = vst [vmem:[%s290] sm:$0x1] %v353
      %v355 = vld [vmem:[%s290 + $0x1] sm:$0x1]
      %v356 = vadd.f32 %v355, %v351
      %357 = vst [vmem:[%s290 + $0x1] sm:$0x1] %v356
      %v358 = vpack.c.bf16 %v340, %v340
      %vm359 = vcmask 1040384
      %vm360 = vsmask.f32 256
      %vm361 = vmand %vm359, %vm360
      %v362 = vld [vmem:[%s282] sm:$0x1]
      %v363 = vsel %vm361, %v358, %v362
      %364 = vst [vmem:[%s282] sm:$0x1] %v363
      %p365 = scmp.lt.s32.totalorder %s21, 7
      %s366 = scalar_select %p365, %s21, 7
      %p367 = scmp.lt.s32.totalorder %s22, 1
      %s368 = scalar_select %p367, %s22, 1
      %p369 = scmp.lt.s32.totalorder %s23, 0
      %s370 = scalar_select %p369, %s23, 0
      %s371 = sadd.s32 %s370, %s368
      %s372 = smul.addr %s366, 2
      %s373 = sadd.s32 %s371, %s372
      %s374 = scalar_lea.vmem %s3, %s373
      %p375 = scmp.lt.s32.totalorder %s21, 7
      %s376 = scalar_select %p375, %s21, 7
      %p377 = scmp.lt.s32.totalorder %s22, 1
      %s378 = scalar_select %p377, %s22, 1
      %s379 = smul.addr %s376, 2
      %s380 = sadd.s32 %s378, %s379
      %s381 = smul.addr %s380, 2
      %s382 = scalar_lea.vmem %s4, %s381
      // Predicated region
      $region37: #{_lambda_.13} parent=31 // pred_check
        %p383 = pneg %p134
      $region38: #{_lambda_.13} parent=31 // pred_check_branch
        %385 = sbr.rel (%p383) target = $region40
      $region39: #{_lambda_.13} parent=31 // pred_region
        _
      $region40: #{_lambda_.13} parent=31 // pred_fallthru
        _
      // Predicated region
      $region41: #{_lambda_.13} parent=31 // pred_check
        %p386 = pneg %p162
      $region42: #{_lambda_.13} parent=31 // pred_check_branch
        %388 = sbr.rel (%p386) target = $region44
      $region43: #{_lambda_.13} parent=31 // pred_region
        _
      $region44: #{_lambda_.13} parent=31 // pred_fallthru
        _
    $region32: #{_lambda_.13} parent=5 // pred_fallthru
      _
    %p389 = scmp.le.s32.totalorder 2, %s11
    // Predicated region
    $region45: #{_lambda_.13} parent=5 // pred_check
      %p390 = pneg %p389
    $region46: #{_lambda_.13} parent=5 // pred_check_branch
      %392 = sbr.rel (%p390) target = $region48
    $region47: #{_lambda_.13} parent=5 // pred_region
      %s393 = ssub.s32 %s11, 2
      // Predicated region
      $region49: #{_lambda_.13} parent=47 // pred_check
        %p394 = pneg %p140
      $region50: #{_lambda_.13} parent=47 // pred_check_branch
        %396 = sbr.rel (%p394) target = $region52
      $region51: #{_lambda_.13} parent=47 // pred_region
        %p397 = scmp.lt.s32.totalorder %s24, 7
        %s398 = scalar_select %p397, %s24, 7
        %p399 = scmp.lt.s32.totalorder %s25, 1
        %s400 = scalar_select %p399, %s25, 1
        %p401 = scmp.lt.s32.totalorder %s26, 0
        %s402 = scalar_select %p401, %s26, 0
        %s403 = sadd.s32 %s402, %s400
        %s404 = smul.addr %s398, 2
        %s405 = sadd.s32 %s403, %s404
        %s406 = scalar_lea.vmem %s3, %s405
      $region52: #{_lambda_.13} parent=47 // pred_fallthru
        _
      // Predicated region
      $region53: #{_lambda_.13} parent=47 // pred_check
        %p407 = pneg %p168
      $region54: #{_lambda_.13} parent=47 // pred_check_branch
        %409 = sbr.rel (%p407) target = $region56
      $region55: #{_lambda_.13} parent=47 // pred_region
        %p410 = scmp.lt.s32.totalorder %s24, 7
        %s411 = scalar_select %p410, %s24, 7
        %p412 = scmp.lt.s32.totalorder %s25, 1
        %s413 = scalar_select %p412, %s25, 1
        %s414 = smul.addr %s411, 2
        %s415 = sadd.s32 %s413, %s414
        %s416 = smul.addr %s415, 2
        %s417 = scalar_lea.vmem %s4, %s416
      $region56: #{_lambda_.13} parent=47 // pred_fallthru
        _
    $region48: #{_lambda_.13} parent=5 // pred_fallthru
      _
  $region6: #{_lambda_.13} parent=0 // loop_footer
    %s15 = sadd.s32 1, %s11
  $region7: #{_lambda_.13} parent=0 // loop_footer_branch
    %10 = sbr.rel target = $region3
  $region8: #{_lambda_.13} parent=0 // loop_exit
    _

// kernel: _lambda_.16
$region0: #{_lambda_.16}
  #allocation0 [shape = 'u32[]', space=smem, size = 0x4, offset = 0x4, fixed_abs, tag = 'smem constant byte address 0x4 - core index']
  #allocation1 [shape = 'u32[72,128]{1,0:T(1,128)}', space=vmem, size = 0x9000, scoped, tag = 'internal scratch']
  %s0 = inlined_call_operand.vmem [shape: bf16[8,2,8,128], index: 0, kind: input, shape index: {}]
  %s1 = inlined_call_operand.vmem [shape: f32[2,1,4], index: 1, kind: input, shape index: {}]
  %s2 = inlined_call_operand.vmem [shape: f32[2,1,4], index: 2, kind: input, shape index: {}]
  %s3 = inlined_call_operand.vmem [shape: bf16[8,2,8,4], index: 3, kind: output, shape index: {}]
  %s4 = sld [smem:[#allocation0]]
  $region45: #{_lambda_.16} parent=0
    _
  %s6 = ssub.s32 1, %s4
  %s7 = scalar_select 0, %s6, %s4
  loop: start=0, step=1, limit=18
  $region2: #{_lambda_.16} parent=0 // loop_pre_header
    _
  $region3: #{_lambda_.16} parent=0 // loop_header
    %s9 = sphi 0, %s13
    %p10 = scmp.ge.s32.totalorder %s9, 18
    %s16 = sphi 0, %s35
    %s17 = sphi 0, %s31
    %s18 = sphi 0, %s27
    %s19 = sphi 0, %s16
    %s20 = sphi 0, %s17
    %s21 = sphi 0, %s18
    %s22 = sphi 0, %s19
    %s23 = sphi 0, %s20
    %s24 = sphi 0, %s21
    %s42 = sphi 0, %s44
    %s45 = sphi 0, %s42
    %s46 = sphi 0, %s45
    %s62 = sphi 0, %s46
    %s68 = sphi 0, %s70
    %s71 = sphi 0, %s68
    %s72 = sphi 0, %s71
    %s88 = sphi 0, %s72
    %s94 = sphi 0, %s96
    %s97 = sphi 0, %s94
    %s98 = sphi 0, %s97
    %s114 = sphi 0, %s98
    %s124 = sphi 0, %s126
    %s127 = sphi 0, %s124
    %s128 = sphi 0, %s127
    %s144 = sphi 0, %s128
  $region4: #{_lambda_.16} parent=0 // loop_header_branch
    %12 = sbr.rel (%p10) target = $region8
  $region5: #{_lambda_.16} parent=0 // loop_body
    %s14 = ssub.s32 %s9, 1
    %s15 = ssub.s32 %s9, 2
    %s25 = sadd.s32 1, %s18
    %p26 = scmp.ge.s32.totalorder %s25, 1
    %s27 = scalar_select %p26, 0, %s25
    %s28 = sadd.s32 1, %s17
    %s29 = scalar_select %p26, %s28, %s17
    %p30 = scmp.ge.s32.totalorder %s29, 2
    %s31 = scalar_select %p30, 0, %s29
    %s32 = sadd.s32 1, %s16
    %s33 = scalar_select %p30, %s32, %s16
    %p34 = scmp.ge.s32.totalorder %s33, 8
    %s35 = scalar_select %p34, 0, %s33
    %s36 = ssub.s32 %s16, %s35
    %s37 = ssub.s32 %s17, %s31
    %s38 = sor.u32 %s36, %s37
    %s39 = ssub.s32 %s18, %s27
    %s40 = sor.u32 %s38, %s39
    %p41 = scmp.eq.s32.totalorder %s40, 0
    %s43 = sadd.s32 %s42, 1
    %s44 = scalar_select %p41, %s42, %s43
    %p47 = pneg %p41
    %p48 = scmp.eq.s32.totalorder %s9, 15
    %p49 = por %p47, %p48
    %p50 = scmp.ne.s32.totalorder %s42, %s45
    %p51 = scmp.eq.s32.totalorder %s9, 0
    %p52 = por %p50, %p51
    %p53 = scmp.ne.s32.totalorder %s42, %s45
    %p54 = scmp.eq.s32.totalorder %s14, 15
    %p55 = por %p53, %p54
    %p56 = scmp.ne.s32.totalorder %s45, %s46
    %p57 = scmp.eq.s32.totalorder %s14, 0
    %p58 = por %p56, %p57
    %p59 = scmp.ne.s32.totalorder %s45, %s46
    %p60 = scmp.eq.s32.totalorder %s15, 15
    %p61 = por %p59, %p60
    %p63 = scmp.ne.s32.totalorder %s46, %s62
    %p64 = scmp.eq.s32.totalorder %s15, 0
    %p65 = por %p63, %p64
    %s66 = ssub.s32 %s17, %s31
    %p67 = scmp.eq.s32.totalorder %s66, 0
    %s69 = sadd.s32 %s68, 1
    %s70 = scalar_select %p67, %s68, %s69
    %p73 = pneg %p67
    %p74 = scmp.eq.s32.totalorder %s9, 15
    %p75 = por %p73, %p74
    %p76 = scmp.ne.s32.totalorder %s68, %s71
    %p77 = scmp.eq.s32.totalorder %s9, 0
    %p78 = por %p76, %p77
    %p79 = scmp.ne.s32.totalorder %s68, %s71
    %p80 = scmp.eq.s32.totalorder %s14, 15
    %p81 = por %p79, %p80
    %p82 = scmp.ne.s32.totalorder %s71, %s72
    %p83 = scmp.eq.s32.totalorder %s14, 0
    %p84 = por %p82, %p83
    %p85 = scmp.ne.s32.totalorder %s71, %s72
    %p86 = scmp.eq.s32.totalorder %s15, 15
    %p87 = por %p85, %p86
    %p89 = scmp.ne.s32.totalorder %s72, %s88
    %p90 = scmp.eq.s32.totalorder %s15, 0
    %p91 = por %p89, %p90
    %s92 = ssub.s32 %s17, %s31
    %p93 = scmp.eq.s32.totalorder %s92, 0
    %s95 = sadd.s32 %s94, 1
    %s96 = scalar_select %p93, %s94, %s95
    %p99 = pneg %p93
    %p100 = scmp.eq.s32.totalorder %s9, 15
    %p101 = por %p99, %p100
    %p102 = scmp.ne.s32.totalorder %s94, %s97
    %p103 = scmp.eq.s32.totalorder %s9, 0
    %p104 = por %p102, %p103
    %p105 = scmp.ne.s32.totalorder %s94, %s97
    %p106 = scmp.eq.s32.totalorder %s14, 15
    %p107 = por %p105, %p106
    %p108 = scmp.ne.s32.totalorder %s97, %s98
    %p109 = scmp.eq.s32.totalorder %s14, 0
    %p110 = por %p108, %p109
    %p111 = scmp.ne.s32.totalorder %s97, %s98
    %p112 = scmp.eq.s32.totalorder %s15, 15
    %p113 = por %p111, %p112
    %p115 = scmp.ne.s32.totalorder %s98, %s114
    %p116 = scmp.eq.s32.totalorder %s15, 0
    %p117 = por %p115, %p116
    %s118 = ssub.s32 %s16, %s35
    %s119 = ssub.s32 %s17, %s31
    %s120 = sor.u32 %s118, %s119
    %s121 = ssub.s32 %s18, %s27
    %s122 = sor.u32 %s120, %s121
    %p123 = scmp.eq.s32.totalorder %s122, 0
    %s125 = sadd.s32 %s124, 1
    %s126 = scalar_select %p123, %s124, %s125
    %p129 = pneg %p123
    %p130 = scmp.eq.s32.totalorder %s9, 15
    %p131 = por %p129, %p130
    %p132 = scmp.ne.s32.totalorder %s124, %s127
    %p133 = scmp.eq.s32.totalorder %s9, 0
    %p134 = por %p132, %p133
    %p135 = scmp.ne.s32.totalorder %s124, %s127
    %p136 = scmp.eq.s32.totalorder %s14, 15
    %p137 = por %p135, %p136
    %p138 = scmp.ne.s32.totalorder %s127, %s128
    %p139 = scmp.eq.s32.totalorder %s14, 0
    %p140 = por %p138, %p139
    %p141 = scmp.ne.s32.totalorder %s127, %s128
    %p142 = scmp.eq.s32.totalorder %s15, 15
    %p143 = por %p141, %p142
    %p145 = scmp.ne.s32.totalorder %s128, %s144
    %p146 = scmp.eq.s32.totalorder %s15, 0
    %p147 = por %p145, %p146
    %p148 = scmp.le.s32.totalorder 1, %s9
    %p149 = scmp.lt.s32.totalorder %s9, 17
    %p150 = pnand %p148, %p149
    %p151 = pneg %p150
    // Predicated region
    $region9: #{_lambda_.16} parent=5 // pred_check
      _
    $region10: #{_lambda_.16} parent=5 // pred_check_branch
      %153 = sbr.rel (%p150) target = $region12
    $region11: #{_lambda_.16} parent=5 // pred_region
      %s154 = ssub.s32 %s9, 1
    $region12: #{_lambda_.16} parent=5 // pred_fallthru
      _
    %p155 = scmp.lt.s32.totalorder %s9, 16
    // Predicated region
    $region13: #{_lambda_.16} parent=5 // pred_check
      %p156 = pneg %p155
    $region14: #{_lambda_.16} parent=5 // pred_check_branch
      %158 = sbr.rel (%p156) target = $region16
    $region15: #{_lambda_.16} parent=5 // pred_region
      // Predicated region
      $region17: #{_lambda_.16} parent=15 // pred_check
        %p159 = pneg %p52
      $region18: #{_lambda_.16} parent=15 // pred_check_branch
        %161 = sbr.rel (%p159) target = $region20
      $region19: #{_lambda_.16} parent=15 // pred_region
        %p162 = scmp.lt.s32.totalorder %s16, 7
        %s163 = scalar_select %p162, %s16, 7
        %p164 = scmp.lt.s32.totalorder %s17, 1
        %s165 = scalar_select %p164, %s17, 1
        %p166 = scmp.lt.s32.totalorder %s18, 0
        %s167 = scalar_select %p166, %s18, 0
        %s168 = sadd.s32 %s167, %s165
        %s169 = smul.addr %s163, 2
        %s170 = sadd.s32 %s168, %s169
        %s171 = smul.addr %s170, 4
        %s172 = scalar_lea.vmem %s0, %s171
      $region20: #{_lambda_.16} parent=15 // pred_fallthru
        _
      // Predicated region
      $region21: #{_lambda_.16} parent=15 // pred_check
        %p173 = pneg %p78
      $region22: #{_lambda_.16} parent=15 // pred_check_branch
        %175 = sbr.rel (%p173) target = $region24
      $region23: #{_lambda_.16} parent=15 // pred_region
        %p176 = scmp.lt.s32.totalorder %s17, 1
        %s177 = scalar_select %p176, %s17, 1
        %s178 = scalar_lea.vmem %s1, %s177
      $region24: #{_lambda_.16} parent=15 // pred_fallthru
        _
      // Predicated region
      $region25: #{_lambda_.16} parent=15 // pred_check
        %p179 = pneg %p104
      $region26: #{_lambda_.16} parent=15 // pred_check_branch
        %181 = sbr.rel (%p179) target = $region28
      $region27: #{_lambda_.16} parent=15 // pred_region
        %p182 = scmp.lt.s32.totalorder %s17, 1
        %s183 = scalar_select %p182, %s17, 1
        %s184 = scalar_lea.vmem %s2, %s183
      $region28: #{_lambda_.16} parent=15 // pred_fallthru
        _
    $region16: #{_lambda_.16} parent=5 // pred_fallthru
      _
    %p185 = scmp.le.s32.totalorder 1, %s9
    %p186 = scmp.lt.s32.totalorder %s9, 17
    %p187 = pnand %p185, %p186
    %p188 = pneg %p187
    // Predicated region
    $region29: #{_lambda_.16} parent=5 // pred_check
      _
    $region30: #{_lambda_.16} parent=5 // pred_check_branch
      %190 = sbr.rel (%p187) target = $region32
    $region31: #{_lambda_.16} parent=5 // pred_region
      %s191 = ssub.s32 %s9, 1
      %p192 = scmp.lt.s32.totalorder %s19, 7
      %s193 = scalar_select %p192, %s19, 7
      %p194 = scmp.lt.s32.totalorder %s20, 1
      %s195 = scalar_select %p194, %s20, 1
      %p196 = scmp.lt.s32.totalorder %s21, 0
      %s197 = scalar_select %p196, %s21, 0
      %s198 = sadd.s32 %s197, %s195
      %s199 = smul.addr %s193, 2
      %s200 = sadd.s32 %s198, %s199
      %s201 = smul.addr %s200, 4
      %s202 = scalar_lea.vmem %s0, %s201
      %p203 = pneg %p58
      %p204 = pneg %p55
      %p205 = scmp.lt.s32.totalorder %s20, 1
      %s206 = scalar_select %p205, %s20, 1
      %s207 = scalar_lea.vmem %s1, %s206
      %p208 = pneg %p84
      %p209 = pneg %p81
      %p210 = scmp.lt.s32.totalorder %s20, 1
      %s211 = scalar_select %p210, %s20, 1
      %s212 = scalar_lea.vmem %s2, %s211
      %p213 = pneg %p110
      %p214 = pneg %p107
      %p215 = pneg %p140
      %p216 = pneg %p137
      %p217 = scmp.lt.s32.totalorder %s19, 7
      %s218 = scalar_select %p217, %s19, 7
      %p219 = scmp.lt.s32.totalorder %s20, 1
      %s220 = scalar_select %p219, %s20, 1
      %p221 = scmp.lt.s32.totalorder %s21, 0
      %s222 = scalar_select %p221, %s21, 0
      %s223 = sadd.s32 %s222, %s220
      %s224 = smul.addr %s218, 2
      %s225 = sadd.s32 %s223, %s224
      %s226 = smul.addr %s225, 4
      %s227 = scalar_lea.vmem %s3, %s226
      %p228 = scmp.lt.s32.totalorder %s19, 7
      %s229 = scalar_select %p228, %s19, 7
      %p230 = scmp.lt.s32.totalorder %s20, 1
      %s231 = scalar_select %p230, %s20, 1
      %p232 = scmp.lt.s32.totalorder %s21, 0
      %s233 = scalar_select %p232, %s21, 0
      %s234 = sadd.s32 %s233, %s231
      %s235 = smul.addr %s229, 2
      %s236 = sadd.s32 %s234, %s235
      %s237 = smul.addr %s236, 4
      %s238 = scalar_lea.vmem %s0, %s237
      %p239 = scmp.lt.s32.totalorder %s20, 1
      %s240 = scalar_select %p239, %s20, 1
      %s241 = scalar_lea.vmem %s1, %s240
      %p242 = scmp.lt.s32.totalorder %s20, 1
      %s243 = scalar_select %p242, %s20, 1
      %s244 = scalar_lea.vmem %s2, %s243
      %p245 = scmp.lt.s32.totalorder %s19, 7
      %s246 = scalar_select %p245, %s19, 7
      %p247 = scmp.lt.s32.totalorder %s20, 1
      %s248 = scalar_select %p247, %s20, 1
      %p249 = scmp.lt.s32.totalorder %s21, 0
      %s250 = scalar_select %p249, %s21, 0
      %s251 = sadd.s32 %s250, %s248
      %s252 = smul.addr %s246, 2
      %s253 = sadd.s32 %s251, %s252
      %s254 = smul.addr %s253, 4
      %s255 = scalar_lea.vmem %s3, %s254
      %v256 = vld [vmem:[%s238] sm:$0xf]
      %v257 = vunpack.c.l.bf16 %v256
      %v258 = vld [vmem:[%s241] sm:$0x1]
      %v260 = vperm.slane %v258, 0
      %v262 = vmul.f32 %v257, %v260
      %v263 = vld [vmem:[%s244] sm:$0x1]
      %v265 = vperm.slane %v263, 0
      %v267 = vadd.f32 %v262, %v265
      %v268 = vsub.f32 0.0, %v267
      %v269 = vmul.f32 %v268, 1.442695
      %v270 = vpow.pop %v269
      %v271 = vadd.f32 %v270, 1.0
      %v272 = vrcp.pop %v271
      %v273 = vmul.f32 %v271, %v272
      %v274 = vsub.f32 1.0, %v273
      %v275 = vmul.f32 %v272, %v274
      %v276 = vadd.f32 %v272, %v275
      %vm277 = vweird.f32 %v271
      %vm278 = vweird.f32 %v272
      %vm279 = vmor %vm277, %vm278
      %v280 = vsel %vm279, %v272, %v276
      %v281 = vand.u32 2147483647, %v271
      %vm282 = vcmp.eq.f32.partialorder %v281, 8.507059e+37
      %v283 = vand.u32 %v271, 2147483648
      %v284 = vor.u32 1.1754944e-38, %v283
      %v285 = vsel %vm282, %v284, %v280
      %v286 = vmul.f32 1.0, %v285
      %v287 = vpack.c.bf16 %v286, %v286
      %vm288 = vcmask 27648
      %289 = vst.msk [vmem:[%s255] sm:$0xf] %vm288, %v287
      %p290 = scmp.lt.s32.totalorder %s19, 7
      %s291 = scalar_select %p290, %s19, 7
      %p292 = scmp.lt.s32.totalorder %s20, 1
      %s293 = scalar_select %p292, %s20, 1
      %p294 = scmp.lt.s32.totalorder %s21, 0
      %s295 = scalar_select %p294, %s21, 0
      %s296 = sadd.s32 %s295, %s293
      %s297 = smul.addr %s291, 2
      %s298 = sadd.s32 %s296, %s297
      %s299 = smul.addr %s298, 4
      %s300 = scalar_lea.vmem %s3, %s299
      // Predicated region
      $region33: #{_lambda_.16} parent=31 // pred_check
        %p301 = pneg %p137
      $region34: #{_lambda_.16} parent=31 // pred_check_branch
        %303 = sbr.rel (%p301) target = $region36
      $region35: #{_lambda_.16} parent=31 // pred_region
        _
      $region36: #{_lambda_.16} parent=31 // pred_fallthru
        _
    $region32: #{_lambda_.16} parent=5 // pred_fallthru
      _
    %p304 = scmp.le.s32.totalorder 2, %s9
    // Predicated region
    $region37: #{_lambda_.16} parent=5 // pred_check
      %p305 = pneg %p304
    $region38: #{_lambda_.16} parent=5 // pred_check_branch
      %307 = sbr.rel (%p305) target = $region40
    $region39: #{_lambda_.16} parent=5 // pred_region
      %s308 = ssub.s32 %s9, 2
      // Predicated region
      $region41: #{_lambda_.16} parent=39 // pred_check
        %p309 = pneg %p143
      $region42: #{_lambda_.16} parent=39 // pred_check_branch
        %311 = sbr.rel (%p309) target = $region44
      $region43: #{_lambda_.16} parent=39 // pred_region
        %p312 = scmp.lt.s32.totalorder %s22, 7
        %s313 = scalar_select %p312, %s22, 7
        %p314 = scmp.lt.s32.totalorder %s23, 1
        %s315 = scalar_select %p314, %s23, 1
        %p316 = scmp.lt.s32.totalorder %s24, 0
        %s317 = scalar_select %p316, %s24, 0
        %s318 = sadd.s32 %s317, %s315
        %s319 = smul.addr %s313, 2
        %s320 = sadd.s32 %s318, %s319
        %s321 = smul.addr %s320, 4
        %s322 = scalar_lea.vmem %s3, %s321
      $region44: #{_lambda_.16} parent=39 // pred_fallthru
        _
    $region40: #{_lambda_.16} parent=5 // pred_fallthru
      _
  $region6: #{_lambda_.16} parent=0 // loop_footer
    %s13 = sadd.s32 1, %s9
  $region7: #{_lambda_.16} parent=0 // loop_footer_branch
    %8 = sbr.rel target = $region3
  $region8: #{_lambda_.16} parent=0 // loop_exit
    _

// kernel: _lambda_.15
$region0: #{_lambda_.15}
  #allocation0 [shape = 'u32[]', space=smem, size = 0x4, offset = 0x4, fixed_abs, tag = 'smem constant byte address 0x4 - core index']
  #allocation1 [shape = 'u32[72,128]{1,0:T(1,128)}', space=vmem, size = 0x9000, scoped, tag = 'internal scratch']
  %s0 = inlined_call_operand.vmem [shape: bf16[8,2,8,128], index: 0, kind: input, shape index: {}]
  %s1 = inlined_call_operand.vmem [shape: bf16[8,128,128], index: 1, kind: input, shape index: {}]
  %s2 = inlined_call_operand.vmem [shape: f32[1,128], index: 2, kind: input, shape index: {}]
  %s3 = inlined_call_operand.vmem [shape: bf16[8,2,8,128], index: 3, kind: output, shape index: {0}]
  %s4 = inlined_call_operand.vmem [shape: f32[8,2,2,128], index: 4, kind: output, shape index: {1}]
  %5 = xla_tuple %s3, %s4
  %s6 = sld [smem:[#allocation0]]
  $region57: #{_lambda_.15} parent=0
    _
  %s8 = ssub.s32 1, %s6
  %s9 = scalar_select 0, %s8, %s6
  loop: start=0, step=1, limit=18
  $region2: #{_lambda_.15} parent=0 // loop_pre_header
    _
  $region3: #{_lambda_.15} parent=0 // loop_header
    %s11 = sphi 0, %s15
    %p12 = scmp.ge.s32.totalorder %s11, 18
    %s18 = sphi 0, %s37
    %s19 = sphi 0, %s33
    %s20 = sphi 0, %s29
    %s21 = sphi 0, %s18
    %s22 = sphi 0, %s19
    %s23 = sphi 0, %s20
    %s24 = sphi 0, %s21
    %s25 = sphi 0, %s22
    %s26 = sphi 0, %s23
    %s44 = sphi 0, %s46
    %s47 = sphi 0, %s44
    %s48 = sphi 0, %s47
    %s64 = sphi 0, %s48
    %s70 = sphi 0, %s72
    %s73 = sphi 0, %s70
    %s74 = sphi 0, %s73
    %s90 = sphi 0, %s74
    %s94 = sphi 0, %s94
    %s96 = sphi 0, %s94
    %s97 = sphi 0, %s96
    %s111 = sphi 0, %s97
    %s121 = sphi 0, %s123
    %s124 = sphi 0, %s121
    %s125 = sphi 0, %s124
    %s141 = sphi 0, %s125
    %s149 = sphi 0, %s151
    %s152 = sphi 0, %s149
    %s153 = sphi 0, %s152
    %s169 = sphi 0, %s153
  $region4: #{_lambda_.15} parent=0 // loop_header_branch
    %14 = sbr.rel (%p12) target = $region8
  $region5: #{_lambda_.15} parent=0 // loop_body
    %s16 = ssub.s32 %s11, 1
    %s17 = ssub.s32 %s11, 2
    %s27 = sadd.s32 1, %s20
    %p28 = scmp.ge.s32.totalorder %s27, 1
    %s29 = scalar_select %p28, 0, %s27
    %s30 = sadd.s32 1, %s19
    %s31 = scalar_select %p28, %s30, %s19
    %p32 = scmp.ge.s32.totalorder %s31, 2
    %s33 = scalar_select %p32, 0, %s31
    %s34 = sadd.s32 1, %s18
    %s35 = scalar_select %p32, %s34, %s18
    %p36 = scmp.ge.s32.totalorder %s35, 8
    %s37 = scalar_select %p36, 0, %s35
    %s38 = ssub.s32 %s18, %s37
    %s39 = ssub.s32 %s19, %s33
    %s40 = sor.u32 %s38, %s39
    %s41 = ssub.s32 %s20, %s29
    %s42 = sor.u32 %s40, %s41
    %p43 = scmp.eq.s32.totalorder %s42, 0
    %s45 = sadd.s32 %s44, 1
    %s46 = scalar_select %p43, %s44, %s45
    %p49 = pneg %p43
    %p50 = scmp.eq.s32.totalorder %s11, 15
    %p51 = por %p49, %p50
    %p52 = scmp.ne.s32.totalorder %s44, %s47
    %p53 = scmp.eq.s32.totalorder %s11, 0
    %p54 = por %p52, %p53
    %p55 = scmp.ne.s32.totalorder %s44, %s47
    %p56 = scmp.eq.s32.totalorder %s16, 15
    %p57 = por %p55, %p56
    %p58 = scmp.ne.s32.totalorder %s47, %s48
    %p59 = scmp.eq.s32.totalorder %s16, 0
    %p60 = por %p58, %p59
    %p61 = scmp.ne.s32.totalorder %s47, %s48
    %p62 = scmp.eq.s32.totalorder %s17, 15
    %p63 = por %p61, %p62
    %p65 = scmp.ne.s32.totalorder %s48, %s64
    %p66 = scmp.eq.s32.totalorder %s17, 0
    %p67 = por %p65, %p66
    %s68 = ssub.s32 %s18, %s37
    %p69 = scmp.eq.s32.totalorder %s68, 0
    %s71 = sadd.s32 %s70, 1
    %s72 = scalar_select %p69, %s70, %s71
    %p75 = pneg %p69
    %p76 = scmp.eq.s32.totalorder %s11, 15
    %p77 = por %p75, %p76
    %p78 = scmp.ne.s32.totalorder %s70, %s73
    %p79 = scmp.eq.s32.totalorder %s11, 0
    %p80 = por %p78, %p79
    %p81 = scmp.ne.s32.totalorder %s70, %s73
    %p82 = scmp.eq.s32.totalorder %s16, 15
    %p83 = por %p81, %p82
    %p84 = scmp.ne.s32.totalorder %s73, %s74
    %p85 = scmp.eq.s32.totalorder %s16, 0
    %p86 = por %p84, %p85
    %p87 = scmp.ne.s32.totalorder %s73, %s74
    %p88 = scmp.eq.s32.totalorder %s17, 15
    %p89 = por %p87, %p88
    %p91 = scmp.ne.s32.totalorder %s74, %s90
    %p92 = scmp.eq.s32.totalorder %s17, 0
    %p93 = por %p91, %p92
    %s95 = sadd.s32 %s94, 1
    %p98 = scmp.eq.s32.totalorder %s11, 15
    %p99 = scmp.ne.s32.totalorder %s94, %s96
    %p100 = scmp.eq.s32.totalorder %s11, 0
    %p101 = por %p99, %p100
    %p102 = scmp.ne.s32.totalorder %s94, %s96
    %p103 = scmp.eq.s32.totalorder %s16, 15
    %p104 = por %p102, %p103
    %p105 = scmp.ne.s32.totalorder %s96, %s97
    %p106 = scmp.eq.s32.totalorder %s16, 0
    %p107 = por %p105, %p106
    %p108 = scmp.ne.s32.totalorder %s96, %s97
    %p109 = scmp.eq.s32.totalorder %s17, 15
    %p110 = por %p108, %p109
    %p112 = scmp.ne.s32.totalorder %s97, %s111
    %p113 = scmp.eq.s32.totalorder %s17, 0
    %p114 = por %p112, %p113
    %s115 = ssub.s32 %s18, %s37
    %s116 = ssub.s32 %s19, %s33
    %s117 = sor.u32 %s115, %s116
    %s118 = ssub.s32 %s20, %s29
    %s119 = sor.u32 %s117, %s118
    %p120 = scmp.eq.s32.totalorder %s119, 0
    %s122 = sadd.s32 %s121, 1
    %s123 = scalar_select %p120, %s121, %s122
    %p126 = pneg %p120
    %p127 = scmp.eq.s32.totalorder %s11, 15
    %p128 = por %p126, %p127
    %p129 = scmp.ne.s32.totalorder %s121, %s124
    %p130 = scmp.eq.s32.totalorder %s11, 0
    %p131 = por %p129, %p130
    %p132 = scmp.ne.s32.totalorder %s121, %s124
    %p133 = scmp.eq.s32.totalorder %s16, 15
    %p134 = por %p132, %p133
    %p135 = scmp.ne.s32.totalorder %s124, %s125
    %p136 = scmp.eq.s32.totalorder %s16, 0
    %p137 = por %p135, %p136
    %p138 = scmp.ne.s32.totalorder %s124, %s125
    %p139 = scmp.eq.s32.totalorder %s17, 15
    %p140 = por %p138, %p139
    %p142 = scmp.ne.s32.totalorder %s125, %s141
    %p143 = scmp.eq.s32.totalorder %s17, 0
    %p144 = por %p142, %p143
    %s145 = ssub.s32 %s18, %s37
    %s146 = ssub.s32 %s19, %s33
    %s147 = sor.u32 %s145, %s146
    %p148 = scmp.eq.s32.totalorder %s147, 0
    %s150 = sadd.s32 %s149, 1
    %s151 = scalar_select %p148, %s149, %s150
    %p154 = pneg %p148
    %p155 = scmp.eq.s32.totalorder %s11, 15
    %p156 = por %p154, %p155
    %p157 = scmp.ne.s32.totalorder %s149, %s152
    %p158 = scmp.eq.s32.totalorder %s11, 0
    %p159 = por %p157, %p158
    %p160 = scmp.ne.s32.totalorder %s149, %s152
    %p161 = scmp.eq.s32.totalorder %s16, 15
    %p162 = por %p160, %p161
    %p163 = scmp.ne.s32.totalorder %s152, %s153
    %p164 = scmp.eq.s32.totalorder %s16, 0
    %p165 = por %p163, %p164
    %p166 = scmp.ne.s32.totalorder %s152, %s153
    %p167 = scmp.eq.s32.totalorder %s17, 15
    %p168 = por %p166, %p167
    %p170 = scmp.ne.s32.totalorder %s153, %s169
    %p171 = scmp.eq.s32.totalorder %s17, 0
    %p172 = por %p170, %p171
    %p173 = scmp.le.s32.totalorder 1, %s11
    %p174 = scmp.lt.s32.totalorder %s11, 17
    %p175 = pnand %p173, %p174
    %p176 = pneg %p175
    // Predicated region
    $region9: #{_lambda_.15} parent=5 // pred_check
      _
    $region10: #{_lambda_.15} parent=5 // pred_check_branch
      %178 = sbr.rel (%p175) target = $region12
    $region11: #{_lambda_.15} parent=5 // pred_region
      %s179 = ssub.s32 %s11, 1
      // Predicated region
      $region13: #{_lambda_.15} parent=11 // pred_check
        %p180 = pneg %p107
      $region14: #{_lambda_.15} parent=11 // pred_check_branch
        %182 = sbr.rel (%p180) target = $region16
      $region15: #{_lambda_.15} parent=11 // pred_region
        _
      $region16: #{_lambda_.15} parent=11 // pred_fallthru
        _
    $region12: #{_lambda_.15} parent=5 // pred_fallthru
      _
    %p183 = scmp.lt.s32.totalorder %s11, 16
    // Predicated region
    $region17: #{_lambda_.15} parent=5 // pred_check
      %p184 = pneg %p183
    $region18: #{_lambda_.15} parent=5 // pred_check_branch
      %186 = sbr.rel (%p184) target = $region20
    $region19: #{_lambda_.15} parent=5 // pred_region
      // Predicated region
      $region21: #{_lambda_.15} parent=19 // pred_check
        %p187 = pneg %p54
      $region22: #{_lambda_.15} parent=19 // pred_check_branch
        %189 = sbr.rel (%p187) target = $region24
      $region23: #{_lambda_.15} parent=19 // pred_region
        %p190 = scmp.lt.s32.totalorder %s18, 7
        %s191 = scalar_select %p190, %s18, 7
        %p192 = scmp.lt.s32.totalorder %s19, 1
        %s193 = scalar_select %p192, %s19, 1
        %p194 = scmp.lt.s32.totalorder %s20, 0
        %s195 = scalar_select %p194, %s20, 0
        %s196 = sadd.s32 %s195, %s193
        %s197 = smul.addr %s191, 2
        %s198 = sadd.s32 %s196, %s197
        %s199 = smul.addr %s198, 4
        %s200 = scalar_lea.vmem %s0, %s199
      $region24: #{_lambda_.15} parent=19 // pred_fallthru
        _
      // Predicated region
      $region25: #{_lambda_.15} parent=19 // pred_check
        %p201 = pneg %p80
      $region26: #{_lambda_.15} parent=19 // pred_check_branch
        %203 = sbr.rel (%p201) target = $region28
      $region27: #{_lambda_.15} parent=19 // pred_region
        %p204 = scmp.lt.s32.totalorder %s18, 7
        %s205 = scalar_select %p204, %s18, 7
        %s206 = smul.addr %s205, 16
        %s207 = smul.addr %s206, 4
        %s208 = scalar_lea.vmem %s1, %s207
      $region28: #{_lambda_.15} parent=19 // pred_fallthru
        _
    $region20: #{_lambda_.15} parent=5 // pred_fallthru
      _
    %p209 = scmp.le.s32.totalorder 1, %s11
    %p210 = scmp.lt.s32.totalorder %s11, 17
    %p211 = pnand %p209, %p210
    %p212 = pneg %p211
    // Predicated region
    $region29: #{_lambda_.15} parent=5 // pred_check
      _
    $region30: #{_lambda_.15} parent=5 // pred_check_branch
      %214 = sbr.rel (%p211) target = $region32
    $region31: #{_lambda_.15} parent=5 // pred_region
      %s215 = ssub.s32 %s11, 1
      %p216 = scmp.lt.s32.totalorder %s21, 7
      %s217 = scalar_select %p216, %s21, 7
      %p218 = scmp.lt.s32.totalorder %s22, 1
      %s219 = scalar_select %p218, %s22, 1
      %p220 = scmp.lt.s32.totalorder %s23, 0
      %s221 = scalar_select %p220, %s23, 0
      %s222 = sadd.s32 %s221, %s219
      %s223 = smul.addr %s217, 2
      %s224 = sadd.s32 %s222, %s223
      %s225 = smul.addr %s224, 4
      %s226 = scalar_lea.vmem %s0, %s225
      %p227 = pneg %p60
      %p228 = pneg %p57
      %p229 = scmp.lt.s32.totalorder %s21, 7
      %s230 = scalar_select %p229, %s21, 7
      %s231 = smul.addr %s230, 16
      %s232 = smul.addr %s231, 4
      %s233 = scalar_lea.vmem %s1, %s232
      %p234 = pneg %p86
      %p235 = pneg %p83
      %p236 = pneg %p107
      %p237 = pneg %p104
      %p238 = pneg %p137
      %p239 = pneg %p134
      %p240 = scmp.lt.s32.totalorder %s21, 7
      %s241 = scalar_select %p240, %s21, 7
      %p242 = scmp.lt.s32.totalorder %s22, 1
      %s243 = scalar_select %p242, %s22, 1
      %p244 = scmp.lt.s32.totalorder %s23, 0
      %s245 = scalar_select %p244, %s23, 0
      %s246 = sadd.s32 %s245, %s243
      %s247 = smul.addr %s241, 2
      %s248 = sadd.s32 %s246, %s247
      %s249 = smul.addr %s248, 4
      %s250 = scalar_lea.vmem %s3, %s249
      %p251 = pneg %p165
      %p252 = pneg %p162
      %p253 = scmp.lt.s32.totalorder %s21, 7
      %s254 = scalar_select %p253, %s21, 7
      %p255 = scmp.lt.s32.totalorder %s22, 1
      %s256 = scalar_select %p255, %s22, 1
      %s257 = smul.addr %s254, 2
      %s258 = sadd.s32 %s256, %s257
      %s259 = smul.addr %s258, 2
      %s260 = scalar_lea.vmem %s4, %s259
      %p261 = scmp.lt.s32.totalorder %s21, 7
      %s262 = scalar_select %p261, %s21, 7
      %p263 = scmp.lt.s32.totalorder %s22, 1
      %s264 = scalar_select %p263, %s22, 1
      %p265 = scmp.lt.s32.totalorder %s23, 0
      %s266 = scalar_select %p265, %s23, 0
      %s267 = sadd.s32 %s266, %s264
      %s268 = smul.addr %s262, 2
      %s269 = sadd.s32 %s267, %s268
      %s270 = smul.addr %s269, 4
      %s271 = scalar_lea.vmem %s0, %s270
      %p272 = scmp.lt.s32.totalorder %s21, 7
      %s273 = scalar_select %p272, %s21, 7
      %s274 = smul.addr %s273, 16
      %s275 = smul.addr %s274, 4
      %s276 = scalar_lea.vmem %s1, %s275
      %p277 = scmp.lt.s32.totalorder %s21, 7
      %s278 = scalar_select %p277, %s21, 7
      %p279 = scmp.lt.s32.totalorder %s22, 1
      %s280 = scalar_select %p279, %s22, 1
      %p281 = scmp.lt.s32.totalorder %s23, 0
      %s282 = scalar_select %p281, %s23, 0
      %s283 = sadd.s32 %s282, %s280
      %s284 = smul.addr %s278, 2
      %s285 = sadd.s32 %s283, %s284
      %s286 = smul.addr %s285, 4
      %s287 = scalar_lea.vmem %s3, %s286
      %p288 = scmp.lt.s32.totalorder %s21, 7
      %s289 = scalar_select %p288, %s21, 7
      %p290 = scmp.lt.s32.totalorder %s22, 1
      %s291 = scalar_select %p290, %s22, 1
      %s292 = smul.addr %s289, 2
      %s293 = sadd.s32 %s291, %s292
      %s294 = smul.addr %s293, 2
      %s295 = scalar_lea.vmem %s4, %s294
      %v296 = vld [vmem:[%s271] sm:$0xf]
      %v297 = vld [vmem:[%s276] sm:$0xf]
      %v298 = vld [vmem:[%s276 + $0x4] sm:$0xf]
      %v299 = vld [vmem:[%s276 + $0x8] sm:$0xf]
      %v300 = vld [vmem:[%s276 + $0xc] sm:$0xf]
      %v301 = vld [vmem:[%s276 + $0x10] sm:$0xf]
      %v302 = vld [vmem:[%s276 + $0x14] sm:$0xf]
      %v303 = vld [vmem:[%s276 + $0x18] sm:$0xf]
      %v304 = vld [vmem:[%s276 + $0x1c] sm:$0xf]
      %v305 = vld [vmem:[%s276 + $0x20] sm:$0xf]
      %v306 = vld [vmem:[%s276 + $0x24] sm:$0xf]
      %v307 = vld [vmem:[%s276 + $0x28] sm:$0xf]
      %v308 = vld [vmem:[%s276 + $0x2c] sm:$0xf]
      %v309 = vld [vmem:[%s276 + $0x30] sm:$0xf]
      %v310 = vld [vmem:[%s276 + $0x34] sm:$0xf]
      %v311 = vld [vmem:[%s276 + $0x38] sm:$0xf]
      %v312 = vld [vmem:[%s276 + $0x3c] sm:$0xf]
      %v313 = vld [vmem:[%s2] sm:$0x1]
      %v315 = vperm.slane %v313, 0
      %v333 = vunpack.c.l.b16 %v297
      %v334 = vunpack.c.l.b16 %v298
      %v335 = vunpack.c.l.b16 %v299
      %v336 = vunpack.c.l.b16 %v300
      %v337 = vunpack.c.l.b16 %v301
      %v338 = vunpack.c.l.b16 %v302
      %v339 = vunpack.c.l.b16 %v303
      %v340 = vunpack.c.l.b16 %v304
      %v341 = vunpack.c.l.b16 %v305
      %v342 = vunpack.c.l.b16 %v306
      %v343 = vunpack.c.l.b16 %v307
      %v344 = vunpack.c.l.b16 %v308
      %v345 = vunpack.c.l.b16 %v309
      %v346 = vunpack.c.l.b16 %v310
      %v347 = vunpack.c.l.b16 %v311
      %v348 = vunpack.c.l.b16 %v312
      %v349 = vpack.c.b16 %v334, %v333
      %v350 = vpack.c.b16 %v336, %v335
      %v351 = vpack.c.b16 %v338, %v337
      %v352 = vpack.c.b16 %v340, %v339
      %v353 = vpack.c.b16 %v342, %v341
      %v354 = vpack.c.b16 %v344, %v343
      %v355 = vpack.c.b16 %v346, %v345
      %v356 = vpack.c.b16 %v348, %v347
      %365 = vmatpush.bf16.msra.mxu0 %v356
      %366 = vmatpush.bf16.msra.mxu0 %v355
      %367 = vmatpush.bf16.msra.mxu0 %v354
      %368 = vmatpush.bf16.msra.mxu0 %v353
      %369 = vmatpush.bf16.msra.mxu0 %v352
      %370 = vmatpush.bf16.msra.mxu0 %v351
      %371 = vmatpush.bf16.msra.mxu0 %v350
      %372 = vmatpush.bf16.msra.mxu0 %v349
      %373 = vmatmul.bf16.gmra.mxu0 %v296
      %v374 = vpop.f32.mrf.mxu0
      %v375 = vadd.f32 %v315, %v374
      %v376 = vpop.f32.mrf.mxu0
      %377 = vdwg.mxu0
      %v378 = vsub.f32 %v375, %v315
      %p379 = scmp.eq.s32.totalorder %s23, 0
      // Predicated region
      $region33: #{_lambda_.15} parent=31 // pred_check
        %p380 = pneg %p379
      $region34: #{_lambda_.15} parent=31 // pred_check_branch
        %382 = sbr.rel (%p380) target = $region36
      $region35: #{_lambda_.15} parent=31 // pred_region
        %383 = vst [vmem:[%s295] sm:$0x3] 0.0
      $region36: #{_lambda_.15} parent=31 // pred_fallthru
        _
      %v384 = vrot.slane %v378, 4
      %v385 = vadd.f32 %v378, %v384
      %v386 = vrot.slane %v385, 2
      %v387 = vadd.f32 %v385, %v386
      %v388 = vrot.slane %v387, 1
      %v389 = vadd.f32 %v387, %v388
      %v390 = vmul.f32 %v378, %v378
      %v391 = vrot.slane %v390, 4
      %v392 = vadd.f32 %v390, %v391
      %v393 = vrot.slane %v392, 2
      %v394 = vadd.f32 %v392, %v393
      %v395 = vrot.slane %v394, 1
      %v396 = vadd.f32 %v394, %v395
      %v397 = vld [vmem:[%s295] sm:$0x1]
      %v398 = vadd.f32 %v397, %v389
      %399 = vst [vmem:[%s295] sm:$0x1] %v398
      %v400 = vld [vmem:[%s295 + $0x1] sm:$0x1]
      %v401 = vadd.f32 %v400, %v396
      %402 = vst [vmem:[%s295 + $0x1] sm:$0x1] %v401
      %v403 = vpack.c.bf16 %v375, %v375
      %404 = vst [vmem:[%s287] sm:$0xf] %v403
      %p405 = scmp.lt.s32.totalorder %s21, 7
      %s406 = scalar_select %p405, %s21, 7
      %p407 = scmp.lt.s32.totalorder %s22, 1
      %s408 = scalar_select %p407, %s22, 1
      %p409 = scmp.lt.s32.totalorder %s23, 0
      %s410 = scalar_select %p409, %s23, 0
      %s411 = sadd.s32 %s410, %s408
      %s412 = smul.addr %s406, 2
      %s413 = sadd.s32 %s411, %s412
      %s414 = smul.addr %s413, 4
      %s415 = scalar_lea.vmem %s3, %s414
      %p416 = scmp.lt.s32.totalorder %s21, 7
      %s417 = scalar_select %p416, %s21, 7
      %p418 = scmp.lt.s32.totalorder %s22, 1
      %s419 = scalar_select %p418, %s22, 1
      %s420 = smul.addr %s417, 2
      %s421 = sadd.s32 %s419, %s420
      %s422 = smul.addr %s421, 2
      %s423 = scalar_lea.vmem %s4, %s422
      // Predicated region
      $region37: #{_lambda_.15} parent=31 // pred_check
        %p424 = pneg %p134
      $region38: #{_lambda_.15} parent=31 // pred_check_branch
        %426 = sbr.rel (%p424) target = $region40
      $region39: #{_lambda_.15} parent=31 // pred_region
        _
      $region40: #{_lambda_.15} parent=31 // pred_fallthru
        _
      // Predicated region
      $region41: #{_lambda_.15} parent=31 // pred_check
        %p427 = pneg %p162
      $region42: #{_lambda_.15} parent=31 // pred_check_branch
        %429 = sbr.rel (%p427) target = $region44
      $region43: #{_lambda_.15} parent=31 // pred_region
        _
      $region44: #{_lambda_.15} parent=31 // pred_fallthru
        _
    $region32: #{_lambda_.15} parent=5 // pred_fallthru
      _
    %p430 = scmp.le.s32.totalorder 2, %s11
    // Predicated region
    $region45: #{_lambda_.15} parent=5 // pred_check
      %p431 = pneg %p430
    $region46: #{_lambda_.15} parent=5 // pred_check_branch
      %433 = sbr.rel (%p431) target = $region48
    $region47: #{_lambda_.15} parent=5 // pred_region
      %s434 = ssub.s32 %s11, 2
      // Predicated region
      $region49: #{_lambda_.15} parent=47 // pred_check
        %p435 = pneg %p140
      $region50: #{_lambda_.15} parent=47 // pred_check_branch
        %437 = sbr.rel (%p435) target = $region52
      $region51: #{_lambda_.15} parent=47 // pred_region
        %p438 = scmp.lt.s32.totalorder %s24, 7
        %s439 = scalar_select %p438, %s24, 7
        %p440 = scmp.lt.s32.totalorder %s25, 1
        %s441 = scalar_select %p440, %s25, 1
        %p442 = scmp.lt.s32.totalorder %s26, 0
        %s443 = scalar_select %p442, %s26, 0
        %s444 = sadd.s32 %s443, %s441
        %s445 = smul.addr %s439, 2
        %s446 = sadd.s32 %s444, %s445
        %s447 = smul.addr %s446, 4
        %s448 = scalar_lea.vmem %s3, %s447
      $region52: #{_lambda_.15} parent=47 // pred_fallthru
        _
      // Predicated region
      $region53: #{_lambda_.15} parent=47 // pred_check
        %p449 = pneg %p168
      $region54: #{_lambda_.15} parent=47 // pred_check_branch
        %451 = sbr.rel (%p449) target = $region56
      $region55: #{_lambda_.15} parent=47 // pred_region
        %p452 = scmp.lt.s32.totalorder %s24, 7
        %s453 = scalar_select %p452, %s24, 7
        %p454 = scmp.lt.s32.totalorder %s25, 1
        %s455 = scalar_select %p454, %s25, 1
        %s456 = smul.addr %s453, 2
        %s457 = sadd.s32 %s455, %s456
        %s458 = smul.addr %s457, 2
        %s459 = scalar_lea.vmem %s4, %s458
      $region56: #{_lambda_.15} parent=47 // pred_fallthru
        _
    $region48: #{_lambda_.15} parent=5 // pred_fallthru
      _
  $region6: #{_lambda_.15} parent=0 // loop_footer
    %s15 = sadd.s32 1, %s11
  $region7: #{_lambda_.15} parent=0 // loop_footer_branch
    %10 = sbr.rel target = $region3
  $region8: #{_lambda_.15} parent=0 // loop_exit
    _

// kernel: _lambda_.17
$region0: #{_lambda_.17}
  #allocation0 [shape = 'u32[]', space=smem, size = 0x4, offset = 0x4, fixed_abs, tag = 'smem constant byte address 0x4 - core index']
  #allocation1 [shape = 'u32[72,128]{1,0:T(1,128)}', space=vmem, size = 0x9000, scoped, tag = 'internal scratch']
  %s0 = inlined_call_operand.vmem [shape: bf16[8,2,64,64], index: 0, kind: input, shape index: {}]
  %s1 = inlined_call_operand.vmem [shape: bf16[8,64,128], index: 1, kind: input, shape index: {}]
  %s2 = inlined_call_operand.vmem [shape: f32[1,128], index: 2, kind: input, shape index: {}]
  %s3 = inlined_call_operand.vmem [shape: bf16[8,2,64,128], index: 3, kind: output, shape index: {}]
  %s4 = sld [smem:[#allocation0]]
  $region45: #{_lambda_.17} parent=0
    _
  %s6 = ssub.s32 1, %s4
  %s7 = scalar_select 0, %s6, %s4
  loop: start=0, step=1, limit=18
  $region2: #{_lambda_.17} parent=0 // loop_pre_header
    _
  $region3: #{_lambda_.17} parent=0 // loop_header
    %s9 = sphi 0, %s13
    %p10 = scmp.ge.s32.totalorder %s9, 18
    %s16 = sphi 0, %s35
    %s17 = sphi 0, %s31
    %s18 = sphi 0, %s27
    %s19 = sphi 0, %s16
    %s20 = sphi 0, %s17
    %s21 = sphi 0, %s18
    %s22 = sphi 0, %s19
    %s23 = sphi 0, %s20
    %s24 = sphi 0, %s21
    %s42 = sphi 0, %s44
    %s45 = sphi 0, %s42
    %s46 = sphi 0, %s45
    %s62 = sphi 0, %s46
    %s68 = sphi 0, %s70
    %s71 = sphi 0, %s68
    %s72 = sphi 0, %s71
    %s88 = sphi 0, %s72
    %s92 = sphi 0, %s92
    %s94 = sphi 0, %s92
    %s95 = sphi 0, %s94
    %s109 = sphi 0, %s95
    %s119 = sphi 0, %s121
    %s122 = sphi 0, %s119
    %s123 = sphi 0, %s122
    %s139 = sphi 0, %s123
  $region4: #{_lambda_.17} parent=0 // loop_header_branch
    %12 = sbr.rel (%p10) target = $region8
  $region5: #{_lambda_.17} parent=0 // loop_body
    %s14 = ssub.s32 %s9, 1
    %s15 = ssub.s32 %s9, 2
    %s25 = sadd.s32 1, %s18
    %p26 = scmp.ge.s32.totalorder %s25, 1
    %s27 = scalar_select %p26, 0, %s25
    %s28 = sadd.s32 1, %s17
    %s29 = scalar_select %p26, %s28, %s17
    %p30 = scmp.ge.s32.totalorder %s29, 2
    %s31 = scalar_select %p30, 0, %s29
    %s32 = sadd.s32 1, %s16
    %s33 = scalar_select %p30, %s32, %s16
    %p34 = scmp.ge.s32.totalorder %s33, 8
    %s35 = scalar_select %p34, 0, %s33
    %s36 = ssub.s32 %s16, %s35
    %s37 = ssub.s32 %s17, %s31
    %s38 = sor.u32 %s36, %s37
    %s39 = ssub.s32 %s18, %s27
    %s40 = sor.u32 %s38, %s39
    %p41 = scmp.eq.s32.totalorder %s40, 0
    %s43 = sadd.s32 %s42, 1
    %s44 = scalar_select %p41, %s42, %s43
    %p47 = pneg %p41
    %p48 = scmp.eq.s32.totalorder %s9, 15
    %p49 = por %p47, %p48
    %p50 = scmp.ne.s32.totalorder %s42, %s45
    %p51 = scmp.eq.s32.totalorder %s9, 0
    %p52 = por %p50, %p51
    %p53 = scmp.ne.s32.totalorder %s42, %s45
    %p54 = scmp.eq.s32.totalorder %s14, 15
    %p55 = por %p53, %p54
    %p56 = scmp.ne.s32.totalorder %s45, %s46
    %p57 = scmp.eq.s32.totalorder %s14, 0
    %p58 = por %p56, %p57
    %p59 = scmp.ne.s32.totalorder %s45, %s46
    %p60 = scmp.eq.s32.totalorder %s15, 15
    %p61 = por %p59, %p60
    %p63 = scmp.ne.s32.totalorder %s46, %s62
    %p64 = scmp.eq.s32.totalorder %s15, 0
    %p65 = por %p63, %p64
    %s66 = ssub.s32 %s16, %s35
    %p67 = scmp.eq.s32.totalorder %s66, 0
    %s69 = sadd.s32 %s68, 1
    %s70 = scalar_select %p67, %s68, %s69
    %p73 = pneg %p67
    %p74 = scmp.eq.s32.totalorder %s9, 15
    %p75 = por %p73, %p74
    %p76 = scmp.ne.s32.totalorder %s68, %s71
    %p77 = scmp.eq.s32.totalorder %s9, 0
    %p78 = por %p76, %p77
    %p79 = scmp.ne.s32.totalorder %s68, %s71
    %p80 = scmp.eq.s32.totalorder %s14, 15
    %p81 = por %p79, %p80
    %p82 = scmp.ne.s32.totalorder %s71, %s72
    %p83 = scmp.eq.s32.totalorder %s14, 0
    %p84 = por %p82, %p83
    %p85 = scmp.ne.s32.totalorder %s71, %s72
    %p86 = scmp.eq.s32.totalorder %s15, 15
    %p87 = por %p85, %p86
    %p89 = scmp.ne.s32.totalorder %s72, %s88
    %p90 = scmp.eq.s32.totalorder %s15, 0
    %p91 = por %p89, %p90
    %s93 = sadd.s32 %s92, 1
    %p96 = scmp.eq.s32.totalorder %s9, 15
    %p97 = scmp.ne.s32.totalorder %s92, %s94
    %p98 = scmp.eq.s32.totalorder %s9, 0
    %p99 = por %p97, %p98
    %p100 = scmp.ne.s32.totalorder %s92, %s94
    %p101 = scmp.eq.s32.totalorder %s14, 15
    %p102 = por %p100, %p101
    %p103 = scmp.ne.s32.totalorder %s94, %s95
    %p104 = scmp.eq.s32.totalorder %s14, 0
    %p105 = por %p103, %p104
    %p106 = scmp.ne.s32.totalorder %s94, %s95
    %p107 = scmp.eq.s32.totalorder %s15, 15
    %p108 = por %p106, %p107
    %p110 = scmp.ne.s32.totalorder %s95, %s109
    %p111 = scmp.eq.s32.totalorder %s15, 0
    %p112 = por %p110, %p111
    %s113 = ssub.s32 %s16, %s35
    %s114 = ssub.s32 %s17, %s31
    %s115 = sor.u32 %s113, %s114
    %s116 = ssub.s32 %s18, %s27
    %s117 = sor.u32 %s115, %s116
    %p118 = scmp.eq.s32.totalorder %s117, 0
    %s120 = sadd.s32 %s119, 1
    %s121 = scalar_select %p118, %s119, %s120
    %p124 = pneg %p118
    %p125 = scmp.eq.s32.totalorder %s9, 15
    %p126 = por %p124, %p125
    %p127 = scmp.ne.s32.totalorder %s119, %s122
    %p128 = scmp.eq.s32.totalorder %s9, 0
    %p129 = por %p127, %p128
    %p130 = scmp.ne.s32.totalorder %s119, %s122
    %p131 = scmp.eq.s32.totalorder %s14, 15
    %p132 = por %p130, %p131
    %p133 = scmp.ne.s32.totalorder %s122, %s123
    %p134 = scmp.eq.s32.totalorder %s14, 0
    %p135 = por %p133, %p134
    %p136 = scmp.ne.s32.totalorder %s122, %s123
    %p137 = scmp.eq.s32.totalorder %s15, 15
    %p138 = por %p136, %p137
    %p140 = scmp.ne.s32.totalorder %s123, %s139
    %p141 = scmp.eq.s32.totalorder %s15, 0
    %p142 = por %p140, %p141
    %p143 = scmp.le.s32.totalorder 1, %s9
    %p144 = scmp.lt.s32.totalorder %s9, 17
    %p145 = pnand %p143, %p144
    %p146 = pneg %p145
    // Predicated region
    $region9: #{_lambda_.17} parent=5 // pred_check
      _
    $region10: #{_lambda_.17} parent=5 // pred_check_branch
      %148 = sbr.rel (%p145) target = $region12
    $region11: #{_lambda_.17} parent=5 // pred_region
      %s149 = ssub.s32 %s9, 1
      // Predicated region
      $region13: #{_lambda_.17} parent=11 // pred_check
        %p150 = pneg %p105
      $region14: #{_lambda_.17} parent=11 // pred_check_branch
        %152 = sbr.rel (%p150) target = $region16
      $region15: #{_lambda_.17} parent=11 // pred_region
        _
      $region16: #{_lambda_.17} parent=11 // pred_fallthru
        _
    $region12: #{_lambda_.17} parent=5 // pred_fallthru
      _
    %p153 = scmp.lt.s32.totalorder %s9, 16
    // Predicated region
    $region17: #{_lambda_.17} parent=5 // pred_check
      %p154 = pneg %p153
    $region18: #{_lambda_.17} parent=5 // pred_check_branch
      %156 = sbr.rel (%p154) target = $region20
    $region19: #{_lambda_.17} parent=5 // pred_region
      // Predicated region
      $region21: #{_lambda_.17} parent=19 // pred_check
        %p157 = pneg %p52
      $region22: #{_lambda_.17} parent=19 // pred_check_branch
        %159 = sbr.rel (%p157) target = $region24
      $region23: #{_lambda_.17} parent=19 // pred_region
        %s160 = smul.u32 8, %s18
        %p161 = scmp.lt.s32.totalorder %s16, 7
        %s162 = scalar_select %p161, %s16, 7
        %p163 = scmp.lt.s32.totalorder %s17, 1
        %s164 = scalar_select %p163, %s17, 1
        %p165 = scmp.lt.s32.totalorder %s160, 7
        %s166 = scalar_select %p165, %s160, 7
        %s167 = smul.addr %s164, 8
        %s168 = sadd.s32 %s166, %s167
        %s169 = smul.addr %s162, 16
        %s170 = sadd.s32 %s168, %s169
        %s171 = smul.addr %s170, 4
        %s172 = scalar_lea.vmem %s0, %s171
        %s173 = smul.u32 8, %s18
      $region24: #{_lambda_.17} parent=19 // pred_fallthru
        _
      // Predicated region
      $region25: #{_lambda_.17} parent=19 // pred_check
        %p174 = pneg %p78
      $region26: #{_lambda_.17} parent=19 // pred_check_branch
        %176 = sbr.rel (%p174) target = $region28
      $region27: #{_lambda_.17} parent=19 // pred_region
        %p177 = scmp.lt.s32.totalorder %s16, 7
        %s178 = scalar_select %p177, %s16, 7
        %s179 = smul.addr %s178, 8
        %s180 = smul.addr %s179, 4
        %s181 = scalar_lea.vmem %s1, %s180
      $region28: #{_lambda_.17} parent=19 // pred_fallthru
        _
    $region20: #{_lambda_.17} parent=5 // pred_fallthru
      _
    %p182 = scmp.le.s32.totalorder 1, %s9
    %p183 = scmp.lt.s32.totalorder %s9, 17
    %p184 = pnand %p182, %p183
    %p185 = pneg %p184
    // Predicated region
    $region29: #{_lambda_.17} parent=5 // pred_check
      _
    $region30: #{_lambda_.17} parent=5 // pred_check_branch
      %187 = sbr.rel (%p184) target = $region32
    $region31: #{_lambda_.17} parent=5 // pred_region
      %s188 = ssub.s32 %s9, 1
      %s189 = smul.u32 8, %s21
      %p190 = scmp.lt.s32.totalorder %s19, 7
      %s191 = scalar_select %p190, %s19, 7
      %p192 = scmp.lt.s32.totalorder %s20, 1
      %s193 = scalar_select %p192, %s20, 1
      %p194 = scmp.lt.s32.totalorder %s189, 7
      %s195 = scalar_select %p194, %s189, 7
      %s196 = smul.addr %s193, 8
      %s197 = sadd.s32 %s195, %s196
      %s198 = smul.addr %s191, 16
      %s199 = sadd.s32 %s197, %s198
      %s200 = smul.addr %s199, 4
      %s201 = scalar_lea.vmem %s0, %s200
      %p202 = pneg %p58
      %p203 = pneg %p55
      %p204 = scmp.lt.s32.totalorder %s19, 7
      %s205 = scalar_select %p204, %s19, 7
      %s206 = smul.addr %s205, 8
      %s207 = smul.addr %s206, 4
      %s208 = scalar_lea.vmem %s1, %s207
      %p209 = pneg %p84
      %p210 = pneg %p81
      %p211 = pneg %p105
      %p212 = pneg %p102
      %p213 = pneg %p135
      %p214 = pneg %p132
      %s215 = smul.u32 8, %s21
      %p216 = scmp.lt.s32.totalorder %s19, 7
      %s217 = scalar_select %p216, %s19, 7
      %p218 = scmp.lt.s32.totalorder %s20, 1
      %s219 = scalar_select %p218, %s20, 1
      %p220 = scmp.lt.s32.totalorder %s215, 7
      %s221 = scalar_select %p220, %s215, 7
      %s222 = smul.addr %s219, 8
      %s223 = sadd.s32 %s221, %s222
      %s224 = smul.addr %s217, 16
      %s225 = sadd.s32 %s223, %s224
      %s226 = smul.addr %s225, 4
      %s227 = scalar_lea.vmem %s3, %s226
      %s228 = smul.u32 8, %s21
      %p229 = scmp.lt.s32.totalorder %s19, 7
      %s230 = scalar_select %p229, %s19, 7
      %p231 = scmp.lt.s32.totalorder %s20, 1
      %s232 = scalar_select %p231, %s20, 1
      %p233 = scmp.lt.s32.totalorder %s228, 7
      %s234 = scalar_select %p233, %s228, 7
      %s235 = smul.addr %s232, 8
      %s236 = sadd.s32 %s234, %s235
      %s237 = smul.addr %s230, 16
      %s238 = sadd.s32 %s236, %s237
      %s239 = smul.addr %s238, 4
      %s240 = scalar_lea.vmem %s0, %s239
      %s241 = smul.u32 8, %s21
      %p242 = scmp.lt.s32.totalorder %s19, 7
      %s243 = scalar_select %p242, %s19, 7
      %s244 = smul.addr %s243, 8
      %s245 = smul.addr %s244, 4
      %s246 = scalar_lea.vmem %s1, %s245
      %s247 = smul.u32 8, %s21
      %p248 = scmp.lt.s32.totalorder %s19, 7
      %s249 = scalar_select %p248, %s19, 7
      %p250 = scmp.lt.s32.totalorder %s20, 1
      %s251 = scalar_select %p250, %s20, 1
      %p252 = scmp.lt.s32.totalorder %s247, 7
      %s253 = scalar_select %p252, %s247, 7
      %s254 = smul.addr %s251, 8
      %s255 = sadd.s32 %s253, %s254
      %s256 = smul.addr %s249, 16
      %s257 = sadd.s32 %s255, %s256
      %s258 = smul.addr %s257, 4
      %s259 = scalar_lea.vmem %s3, %s258
      %s260 = smul.u32 8, %s21
      %v262 = vld [vmem:[%s240] sm:$0xf]
      %v263 = vld [vmem:[%s240 + $0x4] sm:$0xf]
      %v264 = vld [vmem:[%s240 + $0x8] sm:$0xf]
      %v265 = vld [vmem:[%s240 + $0xc] sm:$0xf]
      %v266 = vld [vmem:[%s240 + $0x10] sm:$0xf]
      %v267 = vld [vmem:[%s240 + $0x14] sm:$0xf]
      %v268 = vld [vmem:[%s240 + $0x18] sm:$0xf]
      %v269 = vld [vmem:[%s240 + $0x1c] sm:$0xf]
      %v270 = vld [vmem:[%s246] sm:$0xf]
      %v271 = vld [vmem:[%s246 + $0x4] sm:$0xf]
      %v272 = vld [vmem:[%s246 + $0x8] sm:$0xf]
      %v273 = vld [vmem:[%s246 + $0xc] sm:$0xf]
      %v274 = vld [vmem:[%s246 + $0x10] sm:$0xf]
      %v275 = vld [vmem:[%s246 + $0x14] sm:$0xf]
      %v276 = vld [vmem:[%s246 + $0x18] sm:$0xf]
      %v277 = vld [vmem:[%s246 + $0x1c] sm:$0xf]
      %v278 = vld [vmem:[%s2] sm:$0x1]
      %v280 = vperm.slane %v278, 0
      %v290 = vunpack.c.l.b16 %v262
      %v291 = vunpack.c.l.b16 %v263
      %v292 = vunpack.c.l.b16 %v264
      %v293 = vunpack.c.l.b16 %v265
      %v294 = vunpack.c.l.b16 %v266
      %v295 = vunpack.c.l.b16 %v267
      %v296 = vunpack.c.l.b16 %v268
      %v297 = vunpack.c.l.b16 %v269
      %v298 = vpack.c.b16 %v291, %v290
      %v299 = vpack.c.b16 %v293, %v292
      %v300 = vpack.c.b16 %v295, %v294
      %v301 = vpack.c.b16 %v297, %v296
      %v310 = vunpack.c.l.b16 %v270
      %v311 = vunpack.c.l.b16 %v271
      %v312 = vunpack.c.l.b16 %v272
      %v313 = vunpack.c.l.b16 %v273
      %v314 = vunpack.c.l.b16 %v274
      %v315 = vunpack.c.l.b16 %v275
      %v316 = vunpack.c.l.b16 %v276
      %v317 = vunpack.c.l.b16 %v277
      %v318 = vpack.c.b16 %v311, %v310
      %v319 = vpack.c.b16 %v313, %v312
      %v320 = vpack.c.b16 %v315, %v314
      %v321 = vpack.c.b16 %v317, %v316
      %vm326 = vcmask 523264
      %v328 = vsel %vm326, %v298, 0
      %v331 = vsel %vm326, %v299, 0
      %v334 = vsel %vm326, %v300, 0
      %v337 = vsel %vm326, %v301, 0
      %339 = vmatpush.bf16.msra.mxu0 0
      %340 = vmatpush.bf16.msra.mxu0 0
      %341 = vmatpush.bf16.msra.mxu0 0
      %342 = vmatpush.bf16.msra.mxu0 0
      %343 = vmatpush.bf16.msra.mxu0 %v321
      %344 = vmatpush.bf16.msra.mxu0 %v320
      %345 = vmatpush.bf16.msra.mxu0 %v319
      %346 = vmatpush.bf16.msra.mxu0 %v318
      %347 = vmatmul.bf16.gmra.mxu0 %v328
      %v348 = vpop.f32.mrf.mxu0
      %v349 = vadd.f32 %v280, %v348
      %v350 = vpop.f32.mrf.mxu0
      %v351 = vadd.f32 %v280, %v350
      %352 = vmatmul.bf16.gmra.mxu0 %v331
      %v353 = vpop.f32.mrf.mxu0
      %v354 = vadd.f32 %v280, %v353
      %v355 = vpop.f32.mrf.mxu0
      %v356 = vadd.f32 %v280, %v355
      %357 = vmatmul.bf16.gmra.mxu0 %v334
      %v358 = vpop.f32.mrf.mxu0
      %v359 = vadd.f32 %v280, %v358
      %v360 = vpop.f32.mrf.mxu0
      %v361 = vadd.f32 %v280, %v360
      %362 = vmatmul.bf16.gmra.mxu0 %v337
      %v363 = vpop.f32.mrf.mxu0
      %v364 = vadd.f32 %v280, %v363
      %v365 = vpop.f32.mrf.mxu0
      %v366 = vadd.f32 %v280, %v365
      %367 = vdwg.mxu0
      %v368 = vtanh.pop %v349
      %v369 = vtanh.pop %v351
      %v370 = vtanh.pop %v354
      %v371 = vtanh.pop %v356
      %v372 = vtanh.pop %v359
      %v373 = vtanh.pop %v361
      %v374 = vtanh.pop %v364
      %v375 = vtanh.pop %v366
      %v376 = vpack.c.bf16 %v368, %v368
      %v377 = vpack.c.bf16 %v369, %v369
      %v378 = vpack.c.bf16 %v370, %v370
      %v379 = vpack.c.bf16 %v371, %v371
      %v380 = vpack.c.bf16 %v372, %v372
      %v381 = vpack.c.bf16 %v373, %v373
      %v382 = vpack.c.bf16 %v374, %v374
      %v383 = vpack.c.bf16 %v375, %v375
      %384 = vst [vmem:[%s259] sm:$0xf] %v376
      %385 = vst [vmem:[%s259 + $0x4] sm:$0xf] %v377
      %386 = vst [vmem:[%s259 + $0x8] sm:$0xf] %v378
      %387 = vst [vmem:[%s259 + $0xc] sm:$0xf] %v379
      %388 = vst [vmem:[%s259 + $0x10] sm:$0xf] %v380
      %389 = vst [vmem:[%s259 + $0x14] sm:$0xf] %v381
      %390 = vst [vmem:[%s259 + $0x18] sm:$0xf] %v382
      %391 = vst [vmem:[%s259 + $0x1c] sm:$0xf] %v383
      %s392 = smul.u32 8, %s21
      %p393 = scmp.lt.s32.totalorder %s19, 7
      %s394 = scalar_select %p393, %s19, 7
      %p395 = scmp.lt.s32.totalorder %s20, 1
      %s396 = scalar_select %p395, %s20, 1
      %p397 = scmp.lt.s32.totalorder %s392, 7
      %s398 = scalar_select %p397, %s392, 7
      %s399 = smul.addr %s396, 8
      %s400 = sadd.s32 %s398, %s399
      %s401 = smul.addr %s394, 16
      %s402 = sadd.s32 %s400, %s401
      %s403 = smul.addr %s402, 4
      %s404 = scalar_lea.vmem %s3, %s403
      // Predicated region
      $region33: #{_lambda_.17} parent=31 // pred_check
        %p405 = pneg %p132
      $region34: #{_lambda_.17} parent=31 // pred_check_branch
        %407 = sbr.rel (%p405) target = $region36
      $region35: #{_lambda_.17} parent=31 // pred_region
        %s408 = smul.u32 8, %s21
      $region36: #{_lambda_.17} parent=31 // pred_fallthru
        _
    $region32: #{_lambda_.17} parent=5 // pred_fallthru
      _
    %p409 = scmp.le.s32.totalorder 2, %s9
    // Predicated region
    $region37: #{_lambda_.17} parent=5 // pred_check
      %p410 = pneg %p409
    $region38: #{_lambda_.17} parent=5 // pred_check_branch
      %412 = sbr.rel (%p410) target = $region40
    $region39: #{_lambda_.17} parent=5 // pred_region
      %s413 = ssub.s32 %s9, 2
      // Predicated region
      $region41: #{_lambda_.17} parent=39 // pred_check
        %p414 = pneg %p138
      $region42: #{_lambda_.17} parent=39 // pred_check_branch
        %416 = sbr.rel (%p414) target = $region44
      $region43: #{_lambda_.17} parent=39 // pred_region
        %s417 = smul.u32 8, %s24
        %p418 = scmp.lt.s32.totalorder %s22, 7
        %s419 = scalar_select %p418, %s22, 7
        %p420 = scmp.lt.s32.totalorder %s23, 1
        %s421 = scalar_select %p420, %s23, 1
        %p422 = scmp.lt.s32.totalorder %s417, 7
        %s423 = scalar_select %p422, %s417, 7
        %s424 = smul.addr %s421, 8
        %s425 = sadd.s32 %s423, %s424
        %s426 = smul.addr %s419, 16
        %s427 = sadd.s32 %s425, %s426
        %s428 = smul.addr %s427, 4
        %s429 = scalar_lea.vmem %s3, %s428
      $region44: #{_lambda_.17} parent=39 // pred_fallthru
        _
    $region40: #{_lambda_.17} parent=5 // pred_fallthru
      _
  $region6: #{_lambda_.17} parent=0 // loop_footer
    %s13 = sadd.s32 1, %s9
  $region7: #{_lambda_.17} parent=0 // loop_footer_branch
    %8 = sbr.rel target = $region3
  $region8: #{_lambda_.17} parent=0 // loop_exit
    _

</llo_original>
